<compile_context>
chip_gen: v7x
topology: tpu7x:2x2x1
jax: 0.10.0
libtpu: 0.0.40
codegen_flags: <defaults>
</compile_context>

<pallas_src>
import functools
import math

import jax
import jax.numpy as jnp
from jax.experimental import pallas as pl
from jax.experimental.pallas import tpu as pltpu

BN_EPS = 1e-5


# ----------------------------------------------------------------------------
# small helpers
# ----------------------------------------------------------------------------
def _round_up(x, m):
    return (x + m - 1) // m * m


def _tiling(m):
    """Return (padded_M, TM). For this network M is always a multiple of 8 -> no padding."""
    mp = _round_up(m, 8)
    if mp >= 512 and mp % 128 == 0:
        return mp, 128          # >=4 grid steps -> >=2 per TC on v7x, overlap preserved
    return mp, mp               # small M: one block, grid=1 (avoid per-step overhead)


def _padded(a, mp):
    m = a.shape[0]
    return a if mp == m else jnp.pad(a, ((0, mp - m), (0, 0)))


# ----------------------------------------------------------------------------
# Pallas kernels (MXU operands bf16, f32 accumulate, f32 epilogues — v5e-safe)
# ----------------------------------------------------------------------------
def _mm_bias_act_kernel(a_ref, w_ref, b_ref, o_ref, *, act):
    """O = act(A @ W + b).  A:(TM,K) bf16  W:(K,N) bf16  b:(1,N) f32."""
    acc = jnp.dot(a_ref[...], w_ref[...], preferred_element_type=jnp.float32) + b_ref[...]
    if act == "relu":
        acc = jnp.maximum(acc, 0.0)
    elif act == "tanh":
        acc = jnp.tanh(acc)
    o_ref[...] = acc


def _mm_tanh_resadd_kernel(a_ref, w_ref, b_ref, base_ref, o_ref, *, alpha):
    """O = base + alpha * tanh(A @ W + b)   (output conv + watermark residual)."""
    acc = jnp.dot(a_ref[...], w_ref[...], preferred_element_type=jnp.float32) + b_ref[...]
    o_ref[...] = base_ref[...] + alpha * jnp.tanh(acc)


def _sa_mul_kernel(p_ref, w_ref, xc_ref, o_ref):
    """Spatial attention (VPU path, no N=1 MXU matmul): O = xc * sigmoid(sum(P * w, -1))."""
    att = jax.nn.sigmoid(
        jnp.sum(p_ref[...].astype(jnp.float32) * w_ref[...], axis=-1, keepdims=True))
    o_ref[...] = xc_ref[...] * att


def _sa_mul_add_relu_kernel(p_ref, w_ref, xc_ref, sc_ref, o_ref):
    """Spatial attention + residual shortcut + ReLU: O = relu(xc * att + sc)."""
    att = jax.nn.sigmoid(
        jnp.sum(p_ref[...].astype(jnp.float32) * w_ref[...], axis=-1, keepdims=True))
    o_ref[...] = jnp.maximum(xc_ref[...] * att + sc_ref[...], 0.0)


# ----------------------------------------------------------------------------
# pallas_call wrappers
# ----------------------------------------------------------------------------
def matmul_fused(a, w, bias, *, act="none", base=None, alpha=0.1):
    """One Pallas call: act(a@w + b)  or  base + alpha*tanh(a@w + b)."""
    M, K = a.shape
    N = w.shape[1]
    Mp, TM = _tiling(M)

    in_specs = [
        pl.BlockSpec((TM, K), lambda i: (i, 0)),
        pl.BlockSpec((K, N), lambda i: (0, 0)),
        pl.BlockSpec((1, N), lambda i: (0, 0)),
    ]
    args = [_padded(a, Mp), w, bias]
    if base is None:
        kernel = functools.partial(_mm_bias_act_kernel, act=act)
    else:
        in_specs.append(pl.BlockSpec((TM, N), lambda i: (i, 0)))
        args.append(_padded(base, Mp))
        kernel = functools.partial(_mm_tanh_resadd_kernel, alpha=alpha)

    out = pl.pallas_call(
        kernel,
        out_shape=jax.ShapeDtypeStruct((Mp, N), jnp.float32),
        grid=(Mp // TM,),
        in_specs=in_specs,
        out_specs=pl.BlockSpec((TM, N), lambda i: (i, 0)),
        compiler_params=pltpu.CompilerParams(dimension_semantics=("parallel",)),
    )(*args)
    return out if Mp == M else out[:M]


def spatial_attention_apply(patches, w_sa, xc, sc=None):
    """out = xc * sigmoid(<patches, w_sa>) [+ sc, then relu]   fused in one call."""
    M, K = patches.shape
    C = xc.shape[1]
    Mp, TM = _tiling(M)

    in_specs = [
        pl.BlockSpec((TM, K), lambda i: (i, 0)),
        pl.BlockSpec((1, K), lambda i: (0, 0)),
        pl.BlockSpec((TM, C), lambda i: (i, 0)),
    ]
    args = [_padded(patches, Mp), w_sa, _padded(xc, Mp)]
    if sc is None:
        kernel = _sa_mul_kernel
    else:
        in_specs.append(pl.BlockSpec((TM, C), lambda i: (i, 0)))
        args.append(_padded(sc, Mp))
        kernel = _sa_mul_add_relu_kernel

    out = pl.pallas_call(
        kernel,
        out_shape=jax.ShapeDtypeStruct((Mp, C), jnp.float32),
        grid=(Mp // TM,),
        in_specs=in_specs,
        out_specs=pl.BlockSpec((TM, C), lambda i: (i, 0)),
        compiler_params=pltpu.CompilerParams(dimension_semantics=("parallel",)),
    )(*args)
    return out if Mp == M else out[:M]


# ----------------------------------------------------------------------------
# conv glue (im2col in XLA — bf16 — matmul + epilogue in Pallas)
# ----------------------------------------------------------------------------
def _im2col(x, kh, kw, stride, pad):
    if pad:
        x = jnp.pad(x, ((0, 0), (pad, pad), (pad, pad), (0, 0)))
    B, Hp, Wp, C = x.shape
    Ho = (Hp - kh) // stride + 1
    Wo = (Wp - kw) // stride + 1
    cols = []
    for i in range(kh):
        for j in range(kw):
            cols.append(x[:, i:i + (Ho - 1) * stride + 1:stride,
                             j:j + (Wo - 1) * stride + 1:stride, :])
    patches = jnp.stack(cols, axis=3)                       # (B, Ho, Wo, kh*kw, C)
    return patches.reshape(B, Ho, Wo, kh * kw * C), Ho, Wo


def conv2d_fused(x, layer, *, stride=1, pad=1, act="none", base=None, alpha=0.1):
    """x NHWC; layer holds matmul-ready (BN-folded, bf16) weight and (1,N) f32 bias."""
    kh = layer["k"]
    patches, Ho, Wo = _im2col(x.astype(jnp.bfloat16), kh, kh, stride, pad)   # bf16 patches
    B = x.shape[0]
    M = B * Ho * Wo
    a = patches.reshape(M, -1)
    base2 = None if base is None else base.reshape(M, -1)
    y = matmul_fused(a, layer["wm"], layer["b"], act=act, base=base2, alpha=alpha)
    return y.reshape(B, Ho, Wo, layer["wm"].shape[1])


def conv_transpose2d_fused(x, layer, *, act="relu"):
    """ConvTranspose2d(k=4, stride=2, pad=1) + folded BN + ReLU via sub-pixel decomposition:
       one matmul on a 3x3 im2col of the UN-dilated input -> (M, 4*Cout) phase-packed output."""
    B, H, W, Cin = x.shape
    Cout = layer["cout"]
    patches, _, _ = _im2col(x.astype(jnp.bfloat16), 3, 3, 1, 1)   # (B, H, W, 9*Cin) bf16
    M = B * H * W
    y = matmul_fused(patches.reshape(M, -1), layer["wm"], layer["b"], act=act)  # (M, 4*Cout)
    y = y.reshape(B, H, W, 2, 2, Cout)
    y = jnp.transpose(y, (0, 1, 3, 2, 4, 5)).reshape(B, 2 * H, 2 * W, Cout)
    return y


# ----------------------------------------------------------------------------
# module blocks
# ----------------------------------------------------------------------------
def cbam_apply(x, p, residual=None):
    """CBAM; when `residual` is given, (+ residual, relu) is fused into the spatial kernel.
       Channel-attention FC is tiny (B x C) and left to XLA per perf review."""
    B, H, W, C = x.shape
    avg = jnp.mean(x, axis=(1, 2))                                   # (B, C)
    mx = jnp.max(x, axis=(1, 2))

    def fc(v):
        return jnp.maximum(v @ p["ca_w1"], 0.0) @ p["ca_w2"]

    att_c = jax.nn.sigmoid(fc(avg) + fc(mx))                         # (B, C)
    xc = x * att_c[:, None, None, :]
    pooled = jnp.concatenate([jnp.mean(xc, axis=-1, keepdims=True),
                              jnp.max(xc, axis=-1, keepdims=True)], axis=-1)   # (B, H, W, 2)
    patches, _, _ = _im2col(pooled.astype(jnp.bfloat16), 7, 7, 1, 3)  # (B, H, W, 98) bf16
    M = B * H * W
    sc2 = None if residual is None else residual.reshape(M, C)
    out = spatial_attention_apply(patches.reshape(M, -1), p["sa_w"], xc.reshape(M, C), sc2)
    return out.reshape(B, H, W, C)


def residual_block(x, p):
    stride = p["stride"]
    if "shortcut" in p:
        sc = conv2d_fused(x, p["shortcut"], stride=stride, pad=0, act="none")
    else:
        sc = x
    out = conv2d_fused(x, p["conv1"], stride=stride, pad=1, act="relu")   # conv+BN+ReLU fused
    out = conv2d_fused(out, p["conv2"], stride=1, pad=1, act="none")      # conv+BN fused
    return cbam_apply(out, p["cbam"], residual=sc)                        # CBAM + add + ReLU fused


def message_embedding(feat, msg, p):
    # message-expand MLP is (B, msg_dim): left to XLA so it fuses with the broadcast add.
    h = jnp.maximum(msg @ p["l1_w"] + p["l1_b"], 0.0)
    m = jnp.tanh(h @ p["l2_w"] + p["l2_b"])                               # (B, F)
    fused = feat + 0.1 * m[:, None, None, :]
    return conv2d_fused(fused, p["conv"], stride=1, pad=1, act="relu")    # conv+BN+ReLU fused


# ----------------------------------------------------------------------------
# parameter init (mirrors PyTorch _initialize_weights) + BN folding / repacking
# ----------------------------------------------------------------------------
def _fold_bn(bias, bn):
    g, beta, mean, var = bn
    scale = g / jnp.sqrt(var + BN_EPS)
    shift = beta - mean * scale
    b = (bias if bias is not None else 0.0) * scale + shift
    return scale, b


def _conv_entry(w_oihw, bias, bn=None):
    O, I, kh, kw = w_oihw.shape
    wm = jnp.transpose(w_oihw, (2, 3, 1, 0)).reshape(kh * kw * I, O)      # rows: (dy, dx, cin)
    if bn is not None:
        scale, b = _fold_bn(bias, bn)
        wm = wm * scale[None, :]
    else:
        b = bias if bias is not None else jnp.zeros((O,), jnp.float32)
    return {"wm": wm.astype(jnp.bfloat16), "b": b.reshape(1, O).astype(jnp.float32), "k": kh}


def _convT_entry(w_iokk, bias, bn):
    """ConvTranspose2d(k=4, s=2, p=1) -> sub-pixel weight on a 3x3 im2col of the input.
       out[2m+py, 2n+px] = sum_{dy,dx} patch[m,n,dy,dx] @ w[ky(py,dy), kx(px,dx)]."""
    Cin, Cout = w_iokk.shape[0], w_iokk.shape[1]
    scale, b = _fold_bn(bias, bn)
    tap = {0: {0: 3, 1: 1}, 1: {1: 2, 2: 0}}   # phase -> {patch offset -> transposed-kernel tap}
    wm = jnp.zeros((3, 3, Cin, 2, 2, Cout), jnp.float32)
    for py, ymap in tap.items():
        for dy, ky in ymap.items():
            for px, xmap in tap.items():
                for dx, kx in xmap.items():
                    wm = wm.at[dy, dx, :, py, px, :].set(w_iokk[:, :, ky, kx])
    wm = wm * scale[None, None, None, None, None, :]
    wm = wm.reshape(9 * Cin, 4 * Cout)
    b4 = jnp.tile(b, 4)                         # column order is (py, px, cout)
    return {"wm": wm.astype(jnp.bfloat16), "b": b4.reshape(1, 4 * Cout).astype(jnp.float32),
            "cout": Cout}


def init_params(key, latent=4, msg_dim=8, hidden=32):
    keys = iter(jax.random.split(key, 512))
    nk = lambda: next(keys)

    def conv_w(o, i, k):
        std = math.sqrt(2.0 / (o * k * k))            # kaiming_normal fan_out (OIHW)
        return jax.random.normal(nk(), (o, i, k, k), jnp.float32) * std

    def convT_w(i, o, k):
        std = math.sqrt(2.0 / (i * k * k))            # fan_out for (I,O,kh,kw) layout
        return jax.random.normal(nk(), (i, o, k, k), jnp.float32) * std

    def lin(i, o):
        w = jax.random.normal(nk(), (o, i), jnp.float32) * 0.01   # normal(0, 0.01), bias 0
        return w.T, jnp.zeros((o,), jnp.float32)

    def bn(c):  # (gamma, beta, running_mean, running_var) at init
        return (jnp.ones((c,), jnp.float32), jnp.zeros((c,), jnp.float32),
                jnp.zeros((c,), jnp.float32), jnp.ones((c,), jnp.float32))

    def cbam_p(c, reduction=16):
        mid = max(c // reduction, 1)                  # guard (== c//16 for c in {16, 32})
        w1 = conv_w(mid, c, 1).reshape(mid, c)
        w2 = conv_w(c, mid, 1).reshape(c, mid)
        sa = conv_w(1, 2, 7)
        return {"ca_w1": w1.T, "ca_w2": w2.T,
                "sa_w": jnp.transpose(sa, (2, 3, 1, 0)).reshape(1, 49 * 2)}

    def resblock(cin, cout, stride):
        p = {"stride": stride,
             "conv1": _conv_entry(conv_w(cout, cin, 3), None, bn(cout)),
             "conv2": _conv_entry(conv_w(cout, cout, 3), None, bn(cout)),
             "cbam": cbam_p(cout)}
        if stride != 1 or cin != cout:
            p["shortcut"] = _conv_entry(conv_w(cout, cin, 1), None, bn(cout))
        return p

    def msg_embed(md, f):
        l1w, l1b = lin(md, 2 * f)
        l2w, l2b = lin(2 * f, f)
        return {"l1_w": l1w, "l1_b": l1b, "l2_w": l2w, "l2_b": l2b,
                "conv": _conv_entry(conv_w(f, f, 3), jnp.zeros((f,), jnp.float32), bn(f))}

    h8, h4, h2 = hidden // 8, hidden // 4, hidden // 2
    return {
        "input_conv": _conv_entry(conv_w(h4, latent, 3), jnp.zeros((h4,), jnp.float32), bn(h4)),
        "layer1": [resblock(h4, h2, 2), resblock(h2, h2, 1)],
        "layer2": [resblock(h2, hidden, 2), resblock(hidden, hidden, 1)],
        "layer3": [resblock(hidden, hidden, 2), resblock(hidden, hidden, 1)],
        "me1": msg_embed(msg_dim, h2),
        "me2": msg_embed(msg_dim, hidden),
        "me3": msg_embed(msg_dim, hidden),
        "fusion": [resblock(hidden, hidden, 1), resblock(hidden, hidden, 1)],
        "fusion_cbam": cbam_p(hidden),
        "up1": _convT_entry(convT_w(hidden, h2, 4), jnp.zeros((h2,), jnp.float32), bn(h2)),
        "up2": _convT_entry(convT_w(h2, h4, 4), jnp.zeros((h4,), jnp.float32), bn(h4)),
        "up3": _convT_entry(convT_w(h4, h8, 4), jnp.zeros((h8,), jnp.float32), bn(h8)),
        "out_conv": _conv_entry(conv_w(latent, h8, 3), jnp.zeros((latent,), jnp.float32), None),
    }


# ----------------------------------------------------------------------------
# full forward pass
# ----------------------------------------------------------------------------
def robust_encoder_forward(params, image_latent, message):
    """image_latent: (B, C, H, W) NCHW; message: (B, msg_dim)."""
    p = params
    x_in = jnp.transpose(image_latent, (0, 2, 3, 1))          # NCHW -> NHWC

    x = conv2d_fused(x_in, p["input_conv"], stride=1, pad=1, act="relu")

    x1 = residual_block(x, p["layer1"][0])
    x1 = residual_block(x1, p["layer1"][1])
    x1 = message_embedding(x1, message, p["me1"])             # hidden//2, H/2

    x2 = residual_block(x1, p["layer2"][0])
    x2 = residual_block(x2, p["layer2"][1])
    x2 = message_embedding(x2, message, p["me2"])             # hidden,   H/4

    x3 = residual_block(x2, p["layer3"][0])
    x3 = residual_block(x3, p["layer3"][1])
    x3 = message_embedding(x3, message, p["me3"])             # hidden,   H/8

    x3 = residual_block(x3, p["fusion"][0])
    x3 = residual_block(x3, p["fusion"][1])
    x3 = cbam_apply(x3, p["fusion_cbam"])

    up1 = conv_transpose2d_fused(x3, p["up1"])                # hidden//2, H/4
    if up1.shape[-1] == x2.shape[-1]:                         # static guard (matches reference)
        up1 = up1 + x2
    up2 = conv_transpose2d_fused(up1, p["up2"])               # hidden//4, H/2
    if up2.shape[-1] == x1.shape[-1]:
        up2 = up2 + x1
    up3 = conv_transpose2d_fused(up2, p["up3"])               # hidden//8, H
    if up3.shape[-1] == x.shape[-1]:
        up3 = up3 + x

    # output conv + tanh + watermark residual add, fused into one kernel
    out = conv2d_fused(up3, p["out_conv"], stride=1, pad=1, base=x_in, alpha=0.1)
    return jnp.transpose(out, (0, 3, 1, 2))                   # back to NCHW


# ----------------------------------------------------------------------------
if __name__ == "__main__":
    B, C, H, W = 2, 4, 16, 16
    MSG_DIM, HIDDEN = 8, 32

    key = jax.random.PRNGKey(0)
    k_img, k_msg, k_par = jax.random.split(key, 3)
    image_latent = jax.random.normal(k_img, (B, C, H, W), jnp.float32)
    message = jax.random.normal(k_msg, (B, MSG_DIM), jnp.float32)

    params = init_params(k_par, latent=C, msg_dim=MSG_DIM, hidden=HIDDEN)

    fwd = jax.jit(functools.partial(robust_encoder_forward, params))
    out = fwd(image_latent, message)
    out = jax.block_until_ready(out)

    assert out.shape == (B, C, H, W), out.shape
    assert bool(jnp.all(jnp.isfinite(out)))
    print("KERNEL_OK")
</pallas_src>

<mosaic_0001>
module attributes {stable_mosaic.version = 11 : i64} {
  func.func @_mm_bias_act_kernel(%arg0: i32, %arg1: memref<128x36xbf16, #tpu.memory_space<vmem>>, %arg2: memref<36x8xbf16, #tpu.memory_space<vmem>>, %arg3: memref<1x8xf32, #tpu.memory_space<vmem>>, %arg4: memref<128x8xf32, #tpu.memory_space<vmem>>) attributes {dimension_semantics = [#tpu.dimension_semantics<parallel>], iteration_bounds = array<i64: 4>, scalar_prefetch = 0 : i64, scratch_operands = 0 : i64, tpu.core_type = #tpu.core_type<tc>, window_params = [{transform_indices = @transform_0, window_bounds = array<i64: 128, 36>}, {pipeline_mode = #tpu.pipeline_mode<synchronous>, transform_indices = @transform_1, window_bounds = array<i64: 36, 8>}, {pipeline_mode = #tpu.pipeline_mode<synchronous>, transform_indices = @transform_2, window_bounds = array<i64: 1, 8>}, {transform_indices = @transform_3, window_bounds = array<i64: 128, 8>}]} {
    %c0 = arith.constant 0 : index
    %c0_0 = arith.constant 0 : index
    %0 = vector.load %arg1[%c0, %c0_0] : memref<128x36xbf16, #tpu.memory_space<vmem>>, vector<128x36xbf16>
    %c0_1 = arith.constant 0 : index
    %c0_2 = arith.constant 0 : index
    %1 = vector.load %arg2[%c0_1, %c0_2] : memref<36x8xbf16, #tpu.memory_space<vmem>>, vector<36x8xbf16>
    %cst = arith.constant dense<0.000000e+00> : vector<128x8xf32>
    %2 = tpu.matmul %0, %1, %cst {dimension_numbers = #tpu.dot_dimension_numbers<[1], [0], [0], [1], [0, 0, 1, 1], [], []>} : vector<128x36xbf16>, vector<36x8xbf16>, vector<128x8xf32> -> vector<128x8xf32>
    %c0_3 = arith.constant 0 : index
    %c0_4 = arith.constant 0 : index
    %3 = vector.load %arg3[%c0_3, %c0_4] : memref<1x8xf32, #tpu.memory_space<vmem>>, vector<1x8xf32>
    %4 = vector.broadcast %3 : vector<1x8xf32> to vector<128x8xf32>
    %5 = arith.addf %2, %4 : vector<128x8xf32>
    %cst_5 = arith.constant 0.000000e+00 : f32
    %6 = vector.broadcast %cst_5 : f32 to vector<128x8xf32>
    %7 = arith.maximumf %5, %6 : vector<128x8xf32>
    %c0_6 = arith.constant 0 : index
    %c0_7 = arith.constant 0 : index
    %8 = vector.load %arg4[%c0_6, %c0_7] : memref<128x8xf32, #tpu.memory_space<vmem>>, vector<128x8xf32>
    tpu.vector_store %arg4[%c0_6, %c0_7], %7 {strides = array<i32>} : memref<128x8xf32, #tpu.memory_space<vmem>>, vector<128x8xf32>,
    return
  }
  func.func @transform_0(%arg0: i32) -> (i32, i32) {
    %c0_i32 = arith.constant 0 : i32
    %c0_i32_0 = arith.constant 0 : i32
    return %arg0, %c0_i32 : i32, i32
  }
  func.func @transform_1(%arg0: i32) -> (i32, i32) {
    %c0_i32 = arith.constant 0 : i32
    %c0_i32_0 = arith.constant 0 : i32
    %c0_i32_1 = arith.constant 0 : i32
    return %c0_i32, %c0_i32_0 : i32, i32
  }
  func.func @transform_2(%arg0: i32) -> (i32, i32) {
    %c0_i32 = arith.constant 0 : i32
    %c0_i32_0 = arith.constant 0 : i32
    %c0_i32_1 = arith.constant 0 : i32
    return %c0_i32, %c0_i32_0 : i32, i32
  }
  func.func @transform_3(%arg0: i32) -> (i32, i32) {
    %c0_i32 = arith.constant 0 : i32
    %c0_i32_0 = arith.constant 0 : i32
    return %arg0, %c0_i32 : i32, i32
  }
}

module attributes {stable_mosaic.version = 11 : i64} {
  func.func @_mm_bias_act_kernel(%arg0: i32, %arg1: memref<128x72xbf16, #tpu.memory_space<vmem>>, %arg2: memref<72x16xbf16, #tpu.memory_space<vmem>>, %arg3: memref<1x16xf32, #tpu.memory_space<vmem>>, %arg4: memref<128x16xf32, #tpu.memory_space<vmem>>) attributes {dimension_semantics = [#tpu.dimension_semantics<parallel>], iteration_bounds = array<i64: 1>, scalar_prefetch = 0 : i64, scratch_operands = 0 : i64, tpu.core_type = #tpu.core_type<tc>, window_params = [{transform_indices = @transform_0, window_bounds = array<i64: 128, 72>}, {pipeline_mode = #tpu.pipeline_mode<synchronous>, transform_indices = @transform_1, window_bounds = array<i64: 72, 16>}, {pipeline_mode = #tpu.pipeline_mode<synchronous>, transform_indices = @transform_2, window_bounds = array<i64: 1, 16>}, {transform_indices = @transform_3, window_bounds = array<i64: 128, 16>}]} {
    %c0 = arith.constant 0 : index
    %c0_0 = arith.constant 0 : index
    %0 = vector.load %arg1[%c0, %c0_0] : memref<128x72xbf16, #tpu.memory_space<vmem>>, vector<128x72xbf16>
    %c0_1 = arith.constant 0 : index
    %c0_2 = arith.constant 0 : index
    %1 = vector.load %arg2[%c0_1, %c0_2] : memref<72x16xbf16, #tpu.memory_space<vmem>>, vector<72x16xbf16>
    %cst = arith.constant dense<0.000000e+00> : vector<128x16xf32>
    %2 = tpu.matmul %0, %1, %cst {dimension_numbers = #tpu.dot_dimension_numbers<[1], [0], [0], [1], [0, 0, 1, 1], [], []>} : vector<128x72xbf16>, vector<72x16xbf16>, vector<128x16xf32> -> vector<128x16xf32>
    %c0_3 = arith.constant 0 : index
    %c0_4 = arith.constant 0 : index
    %3 = vector.load %arg3[%c0_3, %c0_4] : memref<1x16xf32, #tpu.memory_space<vmem>>, vector<1x16xf32>
    %4 = vector.broadcast %3 : vector<1x16xf32> to vector<128x16xf32>
    %5 = arith.addf %2, %4 : vector<128x16xf32>
    %cst_5 = arith.constant 0.000000e+00 : f32
    %6 = vector.broadcast %cst_5 : f32 to vector<128x16xf32>
    %7 = arith.maximumf %5, %6 : vector<128x16xf32>
    %c0_6 = arith.constant 0 : index
    %c0_7 = arith.constant 0 : index
    %8 = vector.load %arg4[%c0_6, %c0_7] : memref<128x16xf32, #tpu.memory_space<vmem>>, vector<128x16xf32>
    tpu.vector_store %arg4[%c0_6, %c0_7], %7 {strides = array<i32>} : memref<128x16xf32, #tpu.memory_space<vmem>>, vector<128x16xf32>,
    return
  }
  func.func @transform_0(%arg0: i32) -> (i32, i32) {
    %c0_i32 = arith.constant 0 : i32
    %c0_i32_0 = arith.constant 0 : i32
    return %arg0, %c0_i32 : i32, i32
  }
  func.func @transform_1(%arg0: i32) -> (i32, i32) {
    %c0_i32 = arith.constant 0 : i32
    %c0_i32_0 = arith.constant 0 : i32
    %c0_i32_1 = arith.constant 0 : i32
    return %c0_i32, %c0_i32_0 : i32, i32
  }
  func.func @transform_2(%arg0: i32) -> (i32, i32) {
    %c0_i32 = arith.constant 0 : i32
    %c0_i32_0 = arith.constant 0 : i32
    %c0_i32_1 = arith.constant 0 : i32
    return %c0_i32, %c0_i32_0 : i32, i32
  }
  func.func @transform_3(%arg0: i32) -> (i32, i32) {
    %c0_i32 = arith.constant 0 : i32
    %c0_i32_0 = arith.constant 0 : i32
    return %arg0, %c0_i32 : i32, i32
  }
}

module attributes {stable_mosaic.version = 11 : i64} {
  func.func @_mm_bias_act_kernel(%arg0: i32, %arg1: memref<128x144xbf16, #tpu.memory_space<vmem>>, %arg2: memref<144x16xbf16, #tpu.memory_space<vmem>>, %arg3: memref<1x16xf32, #tpu.memory_space<vmem>>, %arg4: memref<128x16xf32, #tpu.memory_space<vmem>>) attributes {dimension_semantics = [#tpu.dimension_semantics<parallel>], iteration_bounds = array<i64: 1>, scalar_prefetch = 0 : i64, scratch_operands = 0 : i64, tpu.core_type = #tpu.core_type<tc>, window_params = [{transform_indices = @transform_0, window_bounds = array<i64: 128, 144>}, {pipeline_mode = #tpu.pipeline_mode<synchronous>, transform_indices = @transform_1, window_bounds = array<i64: 144, 16>}, {pipeline_mode = #tpu.pipeline_mode<synchronous>, transform_indices = @transform_2, window_bounds = array<i64: 1, 16>}, {transform_indices = @transform_3, window_bounds = array<i64: 128, 16>}]} {
    %c0 = arith.constant 0 : index
    %c0_0 = arith.constant 0 : index
    %0 = vector.load %arg1[%c0, %c0_0] : memref<128x144xbf16, #tpu.memory_space<vmem>>, vector<128x144xbf16>
    %c0_1 = arith.constant 0 : index
    %c0_2 = arith.constant 0 : index
    %1 = vector.load %arg2[%c0_1, %c0_2] : memref<144x16xbf16, #tpu.memory_space<vmem>>, vector<144x16xbf16>
    %cst = arith.constant dense<0.000000e+00> : vector<128x16xf32>
    %2 = tpu.matmul %0, %1, %cst {dimension_numbers = #tpu.dot_dimension_numbers<[1], [0], [0], [1], [0, 0, 1, 1], [], []>} : vector<128x144xbf16>, vector<144x16xbf16>, vector<128x16xf32> -> vector<128x16xf32>
    %c0_3 = arith.constant 0 : index
    %c0_4 = arith.constant 0 : index
    %3 = vector.load %arg3[%c0_3, %c0_4] : memref<1x16xf32, #tpu.memory_space<vmem>>, vector<1x16xf32>
    %4 = vector.broadcast %3 : vector<1x16xf32> to vector<128x16xf32>
    %5 = arith.addf %2, %4 : vector<128x16xf32>
    %c0_5 = arith.constant 0 : index
    %c0_6 = arith.constant 0 : index
    %6 = vector.load %arg4[%c0_5, %c0_6] : memref<128x16xf32, #tpu.memory_space<vmem>>, vector<128x16xf32>
    tpu.vector_store %arg4[%c0_5, %c0_6], %5 {strides = array<i32>} : memref<128x16xf32, #tpu.memory_space<vmem>>, vector<128x16xf32>,
    return
  }
  func.func @transform_0(%arg0: i32) -> (i32, i32) {
    %c0_i32 = arith.constant 0 : i32
    %c0_i32_0 = arith.constant 0 : i32
    return %arg0, %c0_i32 : i32, i32
  }
  func.func @transform_1(%arg0: i32) -> (i32, i32) {
    %c0_i32 = arith.constant 0 : i32
    %c0_i32_0 = arith.constant 0 : i32
    %c0_i32_1 = arith.constant 0 : i32
    return %c0_i32, %c0_i32_0 : i32, i32
  }
  func.func @transform_2(%arg0: i32) -> (i32, i32) {
    %c0_i32 = arith.constant 0 : i32
    %c0_i32_0 = arith.constant 0 : i32
    %c0_i32_1 = arith.constant 0 : i32
    return %c0_i32, %c0_i32_0 : i32, i32
  }
  func.func @transform_3(%arg0: i32) -> (i32, i32) {
    %c0_i32 = arith.constant 0 : i32
    %c0_i32_0 = arith.constant 0 : i32
    return %arg0, %c0_i32 : i32, i32
  }
}

module attributes {stable_mosaic.version = 11 : i64} {
  func.func @_mm_bias_act_kernel(%arg0: i32, %arg1: memref<128x8xbf16, #tpu.memory_space<vmem>>, %arg2: memref<8x16xbf16, #tpu.memory_space<vmem>>, %arg3: memref<1x16xf32, #tpu.memory_space<vmem>>, %arg4: memref<128x16xf32, #tpu.memory_space<vmem>>) attributes {dimension_semantics = [#tpu.dimension_semantics<parallel>], iteration_bounds = array<i64: 1>, scalar_prefetch = 0 : i64, scratch_operands = 0 : i64, tpu.core_type = #tpu.core_type<tc>, window_params = [{transform_indices = @transform_0, window_bounds = array<i64: 128, 8>}, {pipeline_mode = #tpu.pipeline_mode<synchronous>, transform_indices = @transform_1, window_bounds = array<i64: 8, 16>}, {pipeline_mode = #tpu.pipeline_mode<synchronous>, transform_indices = @transform_2, window_bounds = array<i64: 1, 16>}, {transform_indices = @transform_3, window_bounds = array<i64: 128, 16>}]} {
    %c0 = arith.constant 0 : index
    %c0_0 = arith.constant 0 : index
    %0 = vector.load %arg1[%c0, %c0_0] : memref<128x8xbf16, #tpu.memory_space<vmem>>, vector<128x8xbf16>
    %c0_1 = arith.constant 0 : index
    %c0_2 = arith.constant 0 : index
    %1 = vector.load %arg2[%c0_1, %c0_2] : memref<8x16xbf16, #tpu.memory_space<vmem>>, vector<8x16xbf16>
    %cst = arith.constant dense<0.000000e+00> : vector<128x16xf32>
    %2 = tpu.matmul %0, %1, %cst {dimension_numbers = #tpu.dot_dimension_numbers<[1], [0], [0], [1], [0, 0, 1, 1], [], []>} : vector<128x8xbf16>, vector<8x16xbf16>, vector<128x16xf32> -> vector<128x16xf32>
    %c0_3 = arith.constant 0 : index
    %c0_4 = arith.constant 0 : index
    %3 = vector.load %arg3[%c0_3, %c0_4] : memref<1x16xf32, #tpu.memory_space<vmem>>, vector<1x16xf32>
    %4 = vector.broadcast %3 : vector<1x16xf32> to vector<128x16xf32>
    %5 = arith.addf %2, %4 : vector<128x16xf32>
    %c0_5 = arith.constant 0 : index
    %c0_6 = arith.constant 0 : index
    %6 = vector.load %arg4[%c0_5, %c0_6] : memref<128x16xf32, #tpu.memory_space<vmem>>, vector<128x16xf32>
    tpu.vector_store %arg4[%c0_5, %c0_6], %5 {strides = array<i32>} : memref<128x16xf32, #tpu.memory_space<vmem>>, vector<128x16xf32>,
    return
  }
  func.func @transform_0(%arg0: i32) -> (i32, i32) {
    %c0_i32 = arith.constant 0 : i32
    %c0_i32_0 = arith.constant 0 : i32
    return %arg0, %c0_i32 : i32, i32
  }
  func.func @transform_1(%arg0: i32) -> (i32, i32) {
    %c0_i32 = arith.constant 0 : i32
    %c0_i32_0 = arith.constant 0 : i32
    %c0_i32_1 = arith.constant 0 : i32
    return %c0_i32, %c0_i32_0 : i32, i32
  }
  func.func @transform_2(%arg0: i32) -> (i32, i32) {
    %c0_i32 = arith.constant 0 : i32
    %c0_i32_0 = arith.constant 0 : i32
    %c0_i32_1 = arith.constant 0 : i32
    return %c0_i32, %c0_i32_0 : i32, i32
  }
  func.func @transform_3(%arg0: i32) -> (i32, i32) {
    %c0_i32 = arith.constant 0 : i32
    %c0_i32_0 = arith.constant 0 : i32
    return %arg0, %c0_i32 : i32, i32
  }
}

module attributes {stable_mosaic.version = 11 : i64} {
  func.func @_sa_mul_add_relu_kernel(%arg0: i32, %arg1: memref<128x98xbf16, #tpu.memory_space<vmem>>, %arg2: memref<1x98xf32, #tpu.memory_space<vmem>>, %arg3: memref<128x16xf32, #tpu.memory_space<vmem>>, %arg4: memref<128x16xf32, #tpu.memory_space<vmem>>, %arg5: memref<128x16xf32, #tpu.memory_space<vmem>>) attributes {dimension_semantics = [#tpu.dimension_semantics<parallel>], iteration_bounds = array<i64: 1>, scalar_prefetch = 0 : i64, scratch_operands = 0 : i64, tpu.core_type = #tpu.core_type<tc>, window_params = [{transform_indices = @transform_0, window_bounds = array<i64: 128, 98>}, {pipeline_mode = #tpu.pipeline_mode<synchronous>, transform_indices = @transform_1, window_bounds = array<i64: 1, 98>}, {transform_indices = @transform_2, window_bounds = array<i64: 128, 16>}, {transform_indices = @transform_3, window_bounds = array<i64: 128, 16>}, {transform_indices = @transform_4, window_bounds = array<i64: 128, 16>}]} {
    %c0 = arith.constant 0 : index
    %c0_0 = arith.constant 0 : index
    %0 = vector.load %arg1[%c0, %c0_0] : memref<128x98xbf16, #tpu.memory_space<vmem>>, vector<128x98xbf16>
    %1 = arith.extf %0 : vector<128x98xbf16> to vector<128x98xf32>
    %c0_1 = arith.constant 0 : index
    %c0_2 = arith.constant 0 : index
    %2 = vector.load %arg2[%c0_1, %c0_2] : memref<1x98xf32, #tpu.memory_space<vmem>>, vector<1x98xf32>
    %3 = vector.broadcast %2 : vector<1x98xf32> to vector<128x98xf32>
    %4 = arith.mulf %1, %3 : vector<128x98xf32>
    %cst = arith.constant dense<0.000000e+00> : vector<128xf32>
    %5 = vector.multi_reduction <add>, %4, %cst [1] : vector<128x98xf32> to vector<128xf32>
    %6 = vector.shape_cast %5 : vector<128xf32> to vector<128x1xf32>
    %7 = arith.negf %6 : vector<128x1xf32>
    %8 = math.exp %7 : vector<128x1xf32>
    %cst_3 = arith.constant 1.000000e+00 : f32
    %9 = vector.broadcast %cst_3 : f32 to vector<128x1xf32>
    %10 = arith.addf %9, %8 : vector<128x1xf32>
    %11 = arith.divf %9, %10 : vector<128x1xf32>
    %c0_4 = arith.constant 0 : index
    %c0_5 = arith.constant 0 : index
    %12 = vector.load %arg3[%c0_4, %c0_5] : memref<128x16xf32, #tpu.memory_space<vmem>>, vector<128x16xf32>
    %13 = vector.broadcast %11 : vector<128x1xf32> to vector<128x16xf32>
    %14 = arith.mulf %12, %13 : vector<128x16xf32>
    %c0_6 = arith.constant 0 : index
    %c0_7 = arith.constant 0 : index
    %15 = vector.load %arg4[%c0_6, %c0_7] : memref<128x16xf32, #tpu.memory_space<vmem>>, vector<128x16xf32>
    %16 = arith.addf %14, %15 : vector<128x16xf32>
    %cst_8 = arith.constant 0.000000e+00 : f32
    %17 = vector.broadcast %cst_8 : f32 to vector<128x16xf32>
    %18 = arith.maximumf %16, %17 : vector<128x16xf32>
    %c0_9 = arith.constant 0 : index
    %c0_10 = arith.constant 0 : index
    %19 = vector.load %arg5[%c0_9, %c0_10] : memref<128x16xf32, #tpu.memory_space<vmem>>, vector<128x16xf32>
    tpu.vector_store %arg5[%c0_9, %c0_10], %18 {strides = array<i32>} : memref<128x16xf32, #tpu.memory_space<vmem>>, vector<128x16xf32>,
    return
  }
  func.func @transform_0(%arg0: i32) -> (i32, i32) {
    %c0_i32 = arith.constant 0 : i32
    %c0_i32_0 = arith.constant 0 : i32
    return %arg0, %c0_i32 : i32, i32
  }
  func.func @transform_1(%arg0: i32) -> (i32, i32) {
    %c0_i32 = arith.constant 0 : i32
    %c0_i32_0 = arith.constant 0 : i32
    %c0_i32_1 = arith.constant 0 : i32
    return %c0_i32, %c0_i32_0 : i32, i32
  }
  func.func @transform_2(%arg0: i32) -> (i32, i32) {
    %c0_i32 = arith.constant 0 : i32
    %c0_i32_0 = arith.constant 0 : i32
    return %arg0, %c0_i32 : i32, i32
  }
  func.func @transform_3(%arg0: i32) -> (i32, i32) {
    %c0_i32 = arith.constant 0 : i32
    %c0_i32_0 = arith.constant 0 : i32
    return %arg0, %c0_i32 : i32, i32
  }
  func.func @transform_4(%arg0: i32) -> (i32, i32) {
    %c0_i32 = arith.constant 0 : i32
    %c0_i32_0 = arith.constant 0 : i32
    return %arg0, %c0_i32 : i32, i32
  }
}

module attributes {stable_mosaic.version = 11 : i64} {
  func.func @_mm_bias_act_kernel(%arg0: i32, %arg1: memref<128x144xbf16, #tpu.memory_space<vmem>>, %arg2: memref<144x16xbf16, #tpu.memory_space<vmem>>, %arg3: memref<1x16xf32, #tpu.memory_space<vmem>>, %arg4: memref<128x16xf32, #tpu.memory_space<vmem>>) attributes {dimension_semantics = [#tpu.dimension_semantics<parallel>], iteration_bounds = array<i64: 1>, scalar_prefetch = 0 : i64, scratch_operands = 0 : i64, tpu.core_type = #tpu.core_type<tc>, window_params = [{transform_indices = @transform_0, window_bounds = array<i64: 128, 144>}, {pipeline_mode = #tpu.pipeline_mode<synchronous>, transform_indices = @transform_1, window_bounds = array<i64: 144, 16>}, {pipeline_mode = #tpu.pipeline_mode<synchronous>, transform_indices = @transform_2, window_bounds = array<i64: 1, 16>}, {transform_indices = @transform_3, window_bounds = array<i64: 128, 16>}]} {
    %c0 = arith.constant 0 : index
    %c0_0 = arith.constant 0 : index
    %0 = vector.load %arg1[%c0, %c0_0] : memref<128x144xbf16, #tpu.memory_space<vmem>>, vector<128x144xbf16>
    %c0_1 = arith.constant 0 : index
    %c0_2 = arith.constant 0 : index
    %1 = vector.load %arg2[%c0_1, %c0_2] : memref<144x16xbf16, #tpu.memory_space<vmem>>, vector<144x16xbf16>
    %cst = arith.constant dense<0.000000e+00> : vector<128x16xf32>
    %2 = tpu.matmul %0, %1, %cst {dimension_numbers = #tpu.dot_dimension_numbers<[1], [0], [0], [1], [0, 0, 1, 1], [], []>} : vector<128x144xbf16>, vector<144x16xbf16>, vector<128x16xf32> -> vector<128x16xf32>
    %c0_3 = arith.constant 0 : index
    %c0_4 = arith.constant 0 : index
    %3 = vector.load %arg3[%c0_3, %c0_4] : memref<1x16xf32, #tpu.memory_space<vmem>>, vector<1x16xf32>
    %4 = vector.broadcast %3 : vector<1x16xf32> to vector<128x16xf32>
    %5 = arith.addf %2, %4 : vector<128x16xf32>
    %cst_5 = arith.constant 0.000000e+00 : f32
    %6 = vector.broadcast %cst_5 : f32 to vector<128x16xf32>
    %7 = arith.maximumf %5, %6 : vector<128x16xf32>
    %c0_6 = arith.constant 0 : index
    %c0_7 = arith.constant 0 : index
    %8 = vector.load %arg4[%c0_6, %c0_7] : memref<128x16xf32, #tpu.memory_space<vmem>>, vector<128x16xf32>
    tpu.vector_store %arg4[%c0_6, %c0_7], %7 {strides = array<i32>} : memref<128x16xf32, #tpu.memory_space<vmem>>, vector<128x16xf32>,
    return
  }
  func.func @transform_0(%arg0: i32) -> (i32, i32) {
    %c0_i32 = arith.constant 0 : i32
    %c0_i32_0 = arith.constant 0 : i32
    return %arg0, %c0_i32 : i32, i32
  }
  func.func @transform_1(%arg0: i32) -> (i32, i32) {
    %c0_i32 = arith.constant 0 : i32
    %c0_i32_0 = arith.constant 0 : i32
    %c0_i32_1 = arith.constant 0 : i32
    return %c0_i32, %c0_i32_0 : i32, i32
  }
  func.func @transform_2(%arg0: i32) -> (i32, i32) {
    %c0_i32 = arith.constant 0 : i32
    %c0_i32_0 = arith.constant 0 : i32
    %c0_i32_1 = arith.constant 0 : i32
    return %c0_i32, %c0_i32_0 : i32, i32
  }
  func.func @transform_3(%arg0: i32) -> (i32, i32) {
    %c0_i32 = arith.constant 0 : i32
    %c0_i32_0 = arith.constant 0 : i32
    return %arg0, %c0_i32 : i32, i32
  }
}

module attributes {stable_mosaic.version = 11 : i64} {
  func.func @_mm_bias_act_kernel(%arg0: i32, %arg1: memref<32x144xbf16, #tpu.memory_space<vmem>>, %arg2: memref<144x32xbf16, #tpu.memory_space<vmem>>, %arg3: memref<1x32xf32, #tpu.memory_space<vmem>>, %arg4: memref<32x32xf32, #tpu.memory_space<vmem>>) attributes {dimension_semantics = [#tpu.dimension_semantics<parallel>], iteration_bounds = array<i64: 1>, scalar_prefetch = 0 : i64, scratch_operands = 0 : i64, tpu.core_type = #tpu.core_type<tc>, window_params = [{transform_indices = @transform_0, window_bounds = array<i64: 32, 144>}, {pipeline_mode = #tpu.pipeline_mode<synchronous>, transform_indices = @transform_1, window_bounds = array<i64: 144, 32>}, {pipeline_mode = #tpu.pipeline_mode<synchronous>, transform_indices = @transform_2, window_bounds = array<i64: 1, 32>}, {transform_indices = @transform_3, window_bounds = array<i64: 32, 32>}]} {
    %c0 = arith.constant 0 : index
    %c0_0 = arith.constant 0 : index
    %0 = vector.load %arg1[%c0, %c0_0] : memref<32x144xbf16, #tpu.memory_space<vmem>>, vector<32x144xbf16>
    %c0_1 = arith.constant 0 : index
    %c0_2 = arith.constant 0 : index
    %1 = vector.load %arg2[%c0_1, %c0_2] : memref<144x32xbf16, #tpu.memory_space<vmem>>, vector<144x32xbf16>
    %cst = arith.constant dense<0.000000e+00> : vector<32x32xf32>
    %2 = tpu.matmul %0, %1, %cst {dimension_numbers = #tpu.dot_dimension_numbers<[1], [0], [0], [1], [0, 0, 1, 1], [], []>} : vector<32x144xbf16>, vector<144x32xbf16>, vector<32x32xf32> -> vector<32x32xf32>
    %c0_3 = arith.constant 0 : index
    %c0_4 = arith.constant 0 : index
    %3 = vector.load %arg3[%c0_3, %c0_4] : memref<1x32xf32, #tpu.memory_space<vmem>>, vector<1x32xf32>
    %4 = vector.broadcast %3 : vector<1x32xf32> to vector<32x32xf32>
    %5 = arith.addf %2, %4 : vector<32x32xf32>
    %cst_5 = arith.constant 0.000000e+00 : f32
    %6 = vector.broadcast %cst_5 : f32 to vector<32x32xf32>
    %7 = arith.maximumf %5, %6 : vector<32x32xf32>
    %c0_6 = arith.constant 0 : index
    %c0_7 = arith.constant 0 : index
    %8 = vector.load %arg4[%c0_6, %c0_7] : memref<32x32xf32, #tpu.memory_space<vmem>>, vector<32x32xf32>
    tpu.vector_store %arg4[%c0_6, %c0_7], %7 {strides = array<i32>} : memref<32x32xf32, #tpu.memory_space<vmem>>, vector<32x32xf32>,
    return
  }
  func.func @transform_0(%arg0: i32) -> (i32, i32) {
    %c0_i32 = arith.constant 0 : i32
    %c0_i32_0 = arith.constant 0 : i32
    return %arg0, %c0_i32 : i32, i32
  }
  func.func @transform_1(%arg0: i32) -> (i32, i32) {
    %c0_i32 = arith.constant 0 : i32
    %c0_i32_0 = arith.constant 0 : i32
    %c0_i32_1 = arith.constant 0 : i32
    return %c0_i32, %c0_i32_0 : i32, i32
  }
  func.func @transform_2(%arg0: i32) -> (i32, i32) {
    %c0_i32 = arith.constant 0 : i32
    %c0_i32_0 = arith.constant 0 : i32
    %c0_i32_1 = arith.constant 0 : i32
    return %c0_i32, %c0_i32_0 : i32, i32
  }
  func.func @transform_3(%arg0: i32) -> (i32, i32) {
    %c0_i32 = arith.constant 0 : i32
    %c0_i32_0 = arith.constant 0 : i32
    return %arg0, %c0_i32 : i32, i32
  }
}

module attributes {stable_mosaic.version = 11 : i64} {
  func.func @_mm_bias_act_kernel(%arg0: i32, %arg1: memref<32x288xbf16, #tpu.memory_space<vmem>>, %arg2: memref<288x32xbf16, #tpu.memory_space<vmem>>, %arg3: memref<1x32xf32, #tpu.memory_space<vmem>>, %arg4: memref<32x32xf32, #tpu.memory_space<vmem>>) attributes {dimension_semantics = [#tpu.dimension_semantics<parallel>], iteration_bounds = array<i64: 1>, scalar_prefetch = 0 : i64, scratch_operands = 0 : i64, tpu.core_type = #tpu.core_type<tc>, window_params = [{transform_indices = @transform_0, window_bounds = array<i64: 32, 288>}, {pipeline_mode = #tpu.pipeline_mode<synchronous>, transform_indices = @transform_1, window_bounds = array<i64: 288, 32>}, {pipeline_mode = #tpu.pipeline_mode<synchronous>, transform_indices = @transform_2, window_bounds = array<i64: 1, 32>}, {transform_indices = @transform_3, window_bounds = array<i64: 32, 32>}]} {
    %c0 = arith.constant 0 : index
    %c0_0 = arith.constant 0 : index
    %0 = vector.load %arg1[%c0, %c0_0] : memref<32x288xbf16, #tpu.memory_space<vmem>>, vector<32x288xbf16>
    %c0_1 = arith.constant 0 : index
    %c0_2 = arith.constant 0 : index
    %1 = vector.load %arg2[%c0_1, %c0_2] : memref<288x32xbf16, #tpu.memory_space<vmem>>, vector<288x32xbf16>
    %cst = arith.constant dense<0.000000e+00> : vector<32x32xf32>
    %2 = tpu.matmul %0, %1, %cst {dimension_numbers = #tpu.dot_dimension_numbers<[1], [0], [0], [1], [0, 0, 1, 1], [], []>} : vector<32x288xbf16>, vector<288x32xbf16>, vector<32x32xf32> -> vector<32x32xf32>
    %c0_3 = arith.constant 0 : index
    %c0_4 = arith.constant 0 : index
    %3 = vector.load %arg3[%c0_3, %c0_4] : memref<1x32xf32, #tpu.memory_space<vmem>>, vector<1x32xf32>
    %4 = vector.broadcast %3 : vector<1x32xf32> to vector<32x32xf32>
    %5 = arith.addf %2, %4 : vector<32x32xf32>
    %c0_5 = arith.constant 0 : index
    %c0_6 = arith.constant 0 : index
    %6 = vector.load %arg4[%c0_5, %c0_6] : memref<32x32xf32, #tpu.memory_space<vmem>>, vector<32x32xf32>
    tpu.vector_store %arg4[%c0_5, %c0_6], %5 {strides = array<i32>} : memref<32x32xf32, #tpu.memory_space<vmem>>, vector<32x32xf32>,
    return
  }
  func.func @transform_0(%arg0: i32) -> (i32, i32) {
    %c0_i32 = arith.constant 0 : i32
    %c0_i32_0 = arith.constant 0 : i32
    return %arg0, %c0_i32 : i32, i32
  }
  func.func @transform_1(%arg0: i32) -> (i32, i32) {
    %c0_i32 = arith.constant 0 : i32
    %c0_i32_0 = arith.constant 0 : i32
    %c0_i32_1 = arith.constant 0 : i32
    return %c0_i32, %c0_i32_0 : i32, i32
  }
  func.func @transform_2(%arg0: i32) -> (i32, i32) {
    %c0_i32 = arith.constant 0 : i32
    %c0_i32_0 = arith.constant 0 : i32
    %c0_i32_1 = arith.constant 0 : i32
    return %c0_i32, %c0_i32_0 : i32, i32
  }
  func.func @transform_3(%arg0: i32) -> (i32, i32) {
    %c0_i32 = arith.constant 0 : i32
    %c0_i32_0 = arith.constant 0 : i32
    return %arg0, %c0_i32 : i32, i32
  }
}

module attributes {stable_mosaic.version = 11 : i64} {
  func.func @_sa_mul_add_relu_kernel(%arg0: i32, %arg1: memref<32x98xbf16, #tpu.memory_space<vmem>>, %arg2: memref<1x98xf32, #tpu.memory_space<vmem>>, %arg3: memref<32x32xf32, #tpu.memory_space<vmem>>, %arg4: memref<32x32xf32, #tpu.memory_space<vmem>>, %arg5: memref<32x32xf32, #tpu.memory_space<vmem>>) attributes {dimension_semantics = [#tpu.dimension_semantics<parallel>], iteration_bounds = array<i64: 1>, scalar_prefetch = 0 : i64, scratch_operands = 0 : i64, tpu.core_type = #tpu.core_type<tc>, window_params = [{transform_indices = @transform_0, window_bounds = array<i64: 32, 98>}, {pipeline_mode = #tpu.pipeline_mode<synchronous>, transform_indices = @transform_1, window_bounds = array<i64: 1, 98>}, {transform_indices = @transform_2, window_bounds = array<i64: 32, 32>}, {transform_indices = @transform_3, window_bounds = array<i64: 32, 32>}, {transform_indices = @transform_4, window_bounds = array<i64: 32, 32>}]} {
    %c0 = arith.constant 0 : index
    %c0_0 = arith.constant 0 : index
    %0 = vector.load %arg1[%c0, %c0_0] : memref<32x98xbf16, #tpu.memory_space<vmem>>, vector<32x98xbf16>
    %1 = arith.extf %0 : vector<32x98xbf16> to vector<32x98xf32>
    %c0_1 = arith.constant 0 : index
    %c0_2 = arith.constant 0 : index
    %2 = vector.load %arg2[%c0_1, %c0_2] : memref<1x98xf32, #tpu.memory_space<vmem>>, vector<1x98xf32>
    %3 = vector.broadcast %2 : vector<1x98xf32> to vector<32x98xf32>
    %4 = arith.mulf %1, %3 : vector<32x98xf32>
    %cst = arith.constant dense<0.000000e+00> : vector<32xf32>
    %5 = vector.multi_reduction <add>, %4, %cst [1] : vector<32x98xf32> to vector<32xf32>
    %6 = vector.shape_cast %5 : vector<32xf32> to vector<32x1xf32>
    %7 = arith.negf %6 : vector<32x1xf32>
    %8 = math.exp %7 : vector<32x1xf32>
    %cst_3 = arith.constant 1.000000e+00 : f32
    %9 = vector.broadcast %cst_3 : f32 to vector<32x1xf32>
    %10 = arith.addf %9, %8 : vector<32x1xf32>
    %11 = arith.divf %9, %10 : vector<32x1xf32>
    %c0_4 = arith.constant 0 : index
    %c0_5 = arith.constant 0 : index
    %12 = vector.load %arg3[%c0_4, %c0_5] : memref<32x32xf32, #tpu.memory_space<vmem>>, vector<32x32xf32>
    %13 = vector.broadcast %11 : vector<32x1xf32> to vector<32x32xf32>
    %14 = arith.mulf %12, %13 : vector<32x32xf32>
    %c0_6 = arith.constant 0 : index
    %c0_7 = arith.constant 0 : index
    %15 = vector.load %arg4[%c0_6, %c0_7] : memref<32x32xf32, #tpu.memory_space<vmem>>, vector<32x32xf32>
    %16 = arith.addf %14, %15 : vector<32x32xf32>
    %cst_8 = arith.constant 0.000000e+00 : f32
    %17 = vector.broadcast %cst_8 : f32 to vector<32x32xf32>
    %18 = arith.maximumf %16, %17 : vector<32x32xf32>
    %c0_9 = arith.constant 0 : index
    %c0_10 = arith.constant 0 : index
    %19 = vector.load %arg5[%c0_9, %c0_10] : memref<32x32xf32, #tpu.memory_space<vmem>>, vector<32x32xf32>
    tpu.vector_store %arg5[%c0_9, %c0_10], %18 {strides = array<i32>} : memref<32x32xf32, #tpu.memory_space<vmem>>, vector<32x32xf32>,
    return
  }
  func.func @transform_0(%arg0: i32) -> (i32, i32) {
    %c0_i32 = arith.constant 0 : i32
    %c0_i32_0 = arith.constant 0 : i32
    return %arg0, %c0_i32 : i32, i32
  }
  func.func @transform_1(%arg0: i32) -> (i32, i32) {
    %c0_i32 = arith.constant 0 : i32
    %c0_i32_0 = arith.constant 0 : i32
    %c0_i32_1 = arith.constant 0 : i32
    return %c0_i32, %c0_i32_0 : i32, i32
  }
  func.func @transform_2(%arg0: i32) -> (i32, i32) {
    %c0_i32 = arith.constant 0 : i32
    %c0_i32_0 = arith.constant 0 : i32
    return %arg0, %c0_i32 : i32, i32
  }
  func.func @transform_3(%arg0: i32) -> (i32, i32) {
    %c0_i32 = arith.constant 0 : i32
    %c0_i32_0 = arith.constant 0 : i32
    return %arg0, %c0_i32 : i32, i32
  }
  func.func @transform_4(%arg0: i32) -> (i32, i32) {
    %c0_i32 = arith.constant 0 : i32
    %c0_i32_0 = arith.constant 0 : i32
    return %arg0, %c0_i32 : i32, i32
  }
}

module attributes {stable_mosaic.version = 11 : i64} {
  func.func @_mm_bias_act_kernel(%arg0: i32, %arg1: memref<32x16xbf16, #tpu.memory_space<vmem>>, %arg2: memref<16x32xbf16, #tpu.memory_space<vmem>>, %arg3: memref<1x32xf32, #tpu.memory_space<vmem>>, %arg4: memref<32x32xf32, #tpu.memory_space<vmem>>) attributes {dimension_semantics = [#tpu.dimension_semantics<parallel>], iteration_bounds = array<i64: 1>, scalar_prefetch = 0 : i64, scratch_operands = 0 : i64, tpu.core_type = #tpu.core_type<tc>, window_params = [{transform_indices = @transform_0, window_bounds = array<i64: 32, 16>}, {pipeline_mode = #tpu.pipeline_mode<synchronous>, transform_indices = @transform_1, window_bounds = array<i64: 16, 32>}, {pipeline_mode = #tpu.pipeline_mode<synchronous>, transform_indices = @transform_2, window_bounds = array<i64: 1, 32>}, {transform_indices = @transform_3, window_bounds = array<i64: 32, 32>}]} {
    %c0 = arith.constant 0 : index
    %c0_0 = arith.constant 0 : index
    %0 = vector.load %arg1[%c0, %c0_0] : memref<32x16xbf16, #tpu.memory_space<vmem>>, vector<32x16xbf16>
    %c0_1 = arith.constant 0 : index
    %c0_2 = arith.constant 0 : index
    %1 = vector.load %arg2[%c0_1, %c0_2] : memref<16x32xbf16, #tpu.memory_space<vmem>>, vector<16x32xbf16>
    %cst = arith.constant dense<0.000000e+00> : vector<32x32xf32>
    %2 = tpu.matmul %0, %1, %cst {dimension_numbers = #tpu.dot_dimension_numbers<[1], [0], [0], [1], [0, 0, 1, 1], [], []>} : vector<32x16xbf16>, vector<16x32xbf16>, vector<32x32xf32> -> vector<32x32xf32>
    %c0_3 = arith.constant 0 : index
    %c0_4 = arith.constant 0 : index
    %3 = vector.load %arg3[%c0_3, %c0_4] : memref<1x32xf32, #tpu.memory_space<vmem>>, vector<1x32xf32>
    %4 = vector.broadcast %3 : vector<1x32xf32> to vector<32x32xf32>
    %5 = arith.addf %2, %4 : vector<32x32xf32>
    %c0_5 = arith.constant 0 : index
    %c0_6 = arith.constant 0 : index
    %6 = vector.load %arg4[%c0_5, %c0_6] : memref<32x32xf32, #tpu.memory_space<vmem>>, vector<32x32xf32>
    tpu.vector_store %arg4[%c0_5, %c0_6], %5 {strides = array<i32>} : memref<32x32xf32, #tpu.memory_space<vmem>>, vector<32x32xf32>,
    return
  }
  func.func @transform_0(%arg0: i32) -> (i32, i32) {
    %c0_i32 = arith.constant 0 : i32
    %c0_i32_0 = arith.constant 0 : i32
    return %arg0, %c0_i32 : i32, i32
  }
  func.func @transform_1(%arg0: i32) -> (i32, i32) {
    %c0_i32 = arith.constant 0 : i32
    %c0_i32_0 = arith.constant 0 : i32
    %c0_i32_1 = arith.constant 0 : i32
    return %c0_i32, %c0_i32_0 : i32, i32
  }
  func.func @transform_2(%arg0: i32) -> (i32, i32) {
    %c0_i32 = arith.constant 0 : i32
    %c0_i32_0 = arith.constant 0 : i32
    %c0_i32_1 = arith.constant 0 : i32
    return %c0_i32, %c0_i32_0 : i32, i32
  }
  func.func @transform_3(%arg0: i32) -> (i32, i32) {
    %c0_i32 = arith.constant 0 : i32
    %c0_i32_0 = arith.constant 0 : i32
    return %arg0, %c0_i32 : i32, i32
  }
}

module attributes {stable_mosaic.version = 11 : i64} {
  func.func @_mm_bias_act_kernel(%arg0: i32, %arg1: memref<32x288xbf16, #tpu.memory_space<vmem>>, %arg2: memref<288x32xbf16, #tpu.memory_space<vmem>>, %arg3: memref<1x32xf32, #tpu.memory_space<vmem>>, %arg4: memref<32x32xf32, #tpu.memory_space<vmem>>) attributes {dimension_semantics = [#tpu.dimension_semantics<parallel>], iteration_bounds = array<i64: 1>, scalar_prefetch = 0 : i64, scratch_operands = 0 : i64, tpu.core_type = #tpu.core_type<tc>, window_params = [{transform_indices = @transform_0, window_bounds = array<i64: 32, 288>}, {pipeline_mode = #tpu.pipeline_mode<synchronous>, transform_indices = @transform_1, window_bounds = array<i64: 288, 32>}, {pipeline_mode = #tpu.pipeline_mode<synchronous>, transform_indices = @transform_2, window_bounds = array<i64: 1, 32>}, {transform_indices = @transform_3, window_bounds = array<i64: 32, 32>}]} {
    %c0 = arith.constant 0 : index
    %c0_0 = arith.constant 0 : index
    %0 = vector.load %arg1[%c0, %c0_0] : memref<32x288xbf16, #tpu.memory_space<vmem>>, vector<32x288xbf16>
    %c0_1 = arith.constant 0 : index
    %c0_2 = arith.constant 0 : index
    %1 = vector.load %arg2[%c0_1, %c0_2] : memref<288x32xbf16, #tpu.memory_space<vmem>>, vector<288x32xbf16>
    %cst = arith.constant dense<0.000000e+00> : vector<32x32xf32>
    %2 = tpu.matmul %0, %1, %cst {dimension_numbers = #tpu.dot_dimension_numbers<[1], [0], [0], [1], [0, 0, 1, 1], [], []>} : vector<32x288xbf16>, vector<288x32xbf16>, vector<32x32xf32> -> vector<32x32xf32>
    %c0_3 = arith.constant 0 : index
    %c0_4 = arith.constant 0 : index
    %3 = vector.load %arg3[%c0_3, %c0_4] : memref<1x32xf32, #tpu.memory_space<vmem>>, vector<1x32xf32>
    %4 = vector.broadcast %3 : vector<1x32xf32> to vector<32x32xf32>
    %5 = arith.addf %2, %4 : vector<32x32xf32>
    %cst_5 = arith.constant 0.000000e+00 : f32
    %6 = vector.broadcast %cst_5 : f32 to vector<32x32xf32>
    %7 = arith.maximumf %5, %6 : vector<32x32xf32>
    %c0_6 = arith.constant 0 : index
    %c0_7 = arith.constant 0 : index
    %8 = vector.load %arg4[%c0_6, %c0_7] : memref<32x32xf32, #tpu.memory_space<vmem>>, vector<32x32xf32>
    tpu.vector_store %arg4[%c0_6, %c0_7], %7 {strides = array<i32>} : memref<32x32xf32, #tpu.memory_space<vmem>>, vector<32x32xf32>,
    return
  }
  func.func @transform_0(%arg0: i32) -> (i32, i32) {
    %c0_i32 = arith.constant 0 : i32
    %c0_i32_0 = arith.constant 0 : i32
    return %arg0, %c0_i32 : i32, i32
  }
  func.func @transform_1(%arg0: i32) -> (i32, i32) {
    %c0_i32 = arith.constant 0 : i32
    %c0_i32_0 = arith.constant 0 : i32
    %c0_i32_1 = arith.constant 0 : i32
    return %c0_i32, %c0_i32_0 : i32, i32
  }
  func.func @transform_2(%arg0: i32) -> (i32, i32) {
    %c0_i32 = arith.constant 0 : i32
    %c0_i32_0 = arith.constant 0 : i32
    %c0_i32_1 = arith.constant 0 : i32
    return %c0_i32, %c0_i32_0 : i32, i32
  }
  func.func @transform_3(%arg0: i32) -> (i32, i32) {
    %c0_i32 = arith.constant 0 : i32
    %c0_i32_0 = arith.constant 0 : i32
    return %arg0, %c0_i32 : i32, i32
  }
}

module attributes {stable_mosaic.version = 11 : i64} {
  func.func @_mm_bias_act_kernel(%arg0: i32, %arg1: memref<8x288xbf16, #tpu.memory_space<vmem>>, %arg2: memref<288x32xbf16, #tpu.memory_space<vmem>>, %arg3: memref<1x32xf32, #tpu.memory_space<vmem>>, %arg4: memref<8x32xf32, #tpu.memory_space<vmem>>) attributes {dimension_semantics = [#tpu.dimension_semantics<parallel>], iteration_bounds = array<i64: 1>, scalar_prefetch = 0 : i64, scratch_operands = 0 : i64, tpu.core_type = #tpu.core_type<tc>, window_params = [{transform_indices = @transform_0, window_bounds = array<i64: 8, 288>}, {pipeline_mode = #tpu.pipeline_mode<synchronous>, transform_indices = @transform_1, window_bounds = array<i64: 288, 32>}, {pipeline_mode = #tpu.pipeline_mode<synchronous>, transform_indices = @transform_2, window_bounds = array<i64: 1, 32>}, {transform_indices = @transform_3, window_bounds = array<i64: 8, 32>}]} {
    %c0 = arith.constant 0 : index
    %c0_0 = arith.constant 0 : index
    %0 = vector.load %arg1[%c0, %c0_0] : memref<8x288xbf16, #tpu.memory_space<vmem>>, vector<8x288xbf16>
    %c0_1 = arith.constant 0 : index
    %c0_2 = arith.constant 0 : index
    %1 = vector.load %arg2[%c0_1, %c0_2] : memref<288x32xbf16, #tpu.memory_space<vmem>>, vector<288x32xbf16>
    %cst = arith.constant dense<0.000000e+00> : vector<8x32xf32>
    %2 = tpu.matmul %0, %1, %cst {dimension_numbers = #tpu.dot_dimension_numbers<[1], [0], [0], [1], [0, 0, 1, 1], [], []>} : vector<8x288xbf16>, vector<288x32xbf16>, vector<8x32xf32> -> vector<8x32xf32>
    %c0_3 = arith.constant 0 : index
    %c0_4 = arith.constant 0 : index
    %3 = vector.load %arg3[%c0_3, %c0_4] : memref<1x32xf32, #tpu.memory_space<vmem>>, vector<1x32xf32>
    %4 = vector.broadcast %3 : vector<1x32xf32> to vector<8x32xf32>
    %5 = arith.addf %2, %4 : vector<8x32xf32>
    %cst_5 = arith.constant 0.000000e+00 : f32
    %6 = vector.broadcast %cst_5 : f32 to vector<8x32xf32>
    %7 = arith.maximumf %5, %6 : vector<8x32xf32>
    %c0_6 = arith.constant 0 : index
    %c0_7 = arith.constant 0 : index
    %8 = vector.load %arg4[%c0_6, %c0_7] : memref<8x32xf32, #tpu.memory_space<vmem>>, vector<8x32xf32>
    tpu.vector_store %arg4[%c0_6, %c0_7], %7 {strides = array<i32>} : memref<8x32xf32, #tpu.memory_space<vmem>>, vector<8x32xf32>,
    return
  }
  func.func @transform_0(%arg0: i32) -> (i32, i32) {
    %c0_i32 = arith.constant 0 : i32
    %c0_i32_0 = arith.constant 0 : i32
    return %arg0, %c0_i32 : i32, i32
  }
  func.func @transform_1(%arg0: i32) -> (i32, i32) {
    %c0_i32 = arith.constant 0 : i32
    %c0_i32_0 = arith.constant 0 : i32
    %c0_i32_1 = arith.constant 0 : i32
    return %c0_i32, %c0_i32_0 : i32, i32
  }
  func.func @transform_2(%arg0: i32) -> (i32, i32) {
    %c0_i32 = arith.constant 0 : i32
    %c0_i32_0 = arith.constant 0 : i32
    %c0_i32_1 = arith.constant 0 : i32
    return %c0_i32, %c0_i32_0 : i32, i32
  }
  func.func @transform_3(%arg0: i32) -> (i32, i32) {
    %c0_i32 = arith.constant 0 : i32
    %c0_i32_0 = arith.constant 0 : i32
    return %arg0, %c0_i32 : i32, i32
  }
}

module attributes {stable_mosaic.version = 11 : i64} {
  func.func @_mm_bias_act_kernel(%arg0: i32, %arg1: memref<8x288xbf16, #tpu.memory_space<vmem>>, %arg2: memref<288x32xbf16, #tpu.memory_space<vmem>>, %arg3: memref<1x32xf32, #tpu.memory_space<vmem>>, %arg4: memref<8x32xf32, #tpu.memory_space<vmem>>) attributes {dimension_semantics = [#tpu.dimension_semantics<parallel>], iteration_bounds = array<i64: 1>, scalar_prefetch = 0 : i64, scratch_operands = 0 : i64, tpu.core_type = #tpu.core_type<tc>, window_params = [{transform_indices = @transform_0, window_bounds = array<i64: 8, 288>}, {pipeline_mode = #tpu.pipeline_mode<synchronous>, transform_indices = @transform_1, window_bounds = array<i64: 288, 32>}, {pipeline_mode = #tpu.pipeline_mode<synchronous>, transform_indices = @transform_2, window_bounds = array<i64: 1, 32>}, {transform_indices = @transform_3, window_bounds = array<i64: 8, 32>}]} {
    %c0 = arith.constant 0 : index
    %c0_0 = arith.constant 0 : index
    %0 = vector.load %arg1[%c0, %c0_0] : memref<8x288xbf16, #tpu.memory_space<vmem>>, vector<8x288xbf16>
    %c0_1 = arith.constant 0 : index
    %c0_2 = arith.constant 0 : index
    %1 = vector.load %arg2[%c0_1, %c0_2] : memref<288x32xbf16, #tpu.memory_space<vmem>>, vector<288x32xbf16>
    %cst = arith.constant dense<0.000000e+00> : vector<8x32xf32>
    %2 = tpu.matmul %0, %1, %cst {dimension_numbers = #tpu.dot_dimension_numbers<[1], [0], [0], [1], [0, 0, 1, 1], [], []>} : vector<8x288xbf16>, vector<288x32xbf16>, vector<8x32xf32> -> vector<8x32xf32>
    %c0_3 = arith.constant 0 : index
    %c0_4 = arith.constant 0 : index
    %3 = vector.load %arg3[%c0_3, %c0_4] : memref<1x32xf32, #tpu.memory_space<vmem>>, vector<1x32xf32>
    %4 = vector.broadcast %3 : vector<1x32xf32> to vector<8x32xf32>
    %5 = arith.addf %2, %4 : vector<8x32xf32>
    %c0_5 = arith.constant 0 : index
    %c0_6 = arith.constant 0 : index
    %6 = vector.load %arg4[%c0_5, %c0_6] : memref<8x32xf32, #tpu.memory_space<vmem>>, vector<8x32xf32>
    tpu.vector_store %arg4[%c0_5, %c0_6], %5 {strides = array<i32>} : memref<8x32xf32, #tpu.memory_space<vmem>>, vector<8x32xf32>,
    return
  }
  func.func @transform_0(%arg0: i32) -> (i32, i32) {
    %c0_i32 = arith.constant 0 : i32
    %c0_i32_0 = arith.constant 0 : i32
    return %arg0, %c0_i32 : i32, i32
  }
  func.func @transform_1(%arg0: i32) -> (i32, i32) {
    %c0_i32 = arith.constant 0 : i32
    %c0_i32_0 = arith.constant 0 : i32
    %c0_i32_1 = arith.constant 0 : i32
    return %c0_i32, %c0_i32_0 : i32, i32
  }
  func.func @transform_2(%arg0: i32) -> (i32, i32) {
    %c0_i32 = arith.constant 0 : i32
    %c0_i32_0 = arith.constant 0 : i32
    %c0_i32_1 = arith.constant 0 : i32
    return %c0_i32, %c0_i32_0 : i32, i32
  }
  func.func @transform_3(%arg0: i32) -> (i32, i32) {
    %c0_i32 = arith.constant 0 : i32
    %c0_i32_0 = arith.constant 0 : i32
    return %arg0, %c0_i32 : i32, i32
  }
}

module attributes {stable_mosaic.version = 11 : i64} {
  func.func @_sa_mul_kernel(%arg0: i32, %arg1: memref<8x98xbf16, #tpu.memory_space<vmem>>, %arg2: memref<1x98xf32, #tpu.memory_space<vmem>>, %arg3: memref<8x32xf32, #tpu.memory_space<vmem>>, %arg4: memref<8x32xf32, #tpu.memory_space<vmem>>) attributes {dimension_semantics = [#tpu.dimension_semantics<parallel>], iteration_bounds = array<i64: 1>, scalar_prefetch = 0 : i64, scratch_operands = 0 : i64, tpu.core_type = #tpu.core_type<tc>, window_params = [{transform_indices = @transform_0, window_bounds = array<i64: 8, 98>}, {pipeline_mode = #tpu.pipeline_mode<synchronous>, transform_indices = @transform_1, window_bounds = array<i64: 1, 98>}, {transform_indices = @transform_2, window_bounds = array<i64: 8, 32>}, {transform_indices = @transform_3, window_bounds = array<i64: 8, 32>}]} {
    %c0 = arith.constant 0 : index
    %c0_0 = arith.constant 0 : index
    %0 = vector.load %arg1[%c0, %c0_0] : memref<8x98xbf16, #tpu.memory_space<vmem>>, vector<8x98xbf16>
    %1 = arith.extf %0 : vector<8x98xbf16> to vector<8x98xf32>
    %c0_1 = arith.constant 0 : index
    %c0_2 = arith.constant 0 : index
    %2 = vector.load %arg2[%c0_1, %c0_2] : memref<1x98xf32, #tpu.memory_space<vmem>>, vector<1x98xf32>
    %3 = vector.broadcast %2 : vector<1x98xf32> to vector<8x98xf32>
    %4 = arith.mulf %1, %3 : vector<8x98xf32>
    %cst = arith.constant dense<0.000000e+00> : vector<8xf32>
    %5 = vector.multi_reduction <add>, %4, %cst [1] : vector<8x98xf32> to vector<8xf32>
    %6 = vector.shape_cast %5 : vector<8xf32> to vector<8x1xf32>
    %7 = arith.negf %6 : vector<8x1xf32>
    %8 = math.exp %7 : vector<8x1xf32>
    %cst_3 = arith.constant 1.000000e+00 : f32
    %9 = vector.broadcast %cst_3 : f32 to vector<8x1xf32>
    %10 = arith.addf %9, %8 : vector<8x1xf32>
    %11 = arith.divf %9, %10 : vector<8x1xf32>
    %c0_4 = arith.constant 0 : index
    %c0_5 = arith.constant 0 : index
    %12 = vector.load %arg3[%c0_4, %c0_5] : memref<8x32xf32, #tpu.memory_space<vmem>>, vector<8x32xf32>
    %13 = vector.broadcast %11 : vector<8x1xf32> to vector<8x32xf32>
    %14 = arith.mulf %12, %13 : vector<8x32xf32>
    %c0_6 = arith.constant 0 : index
    %c0_7 = arith.constant 0 : index
    %15 = vector.load %arg4[%c0_6, %c0_7] : memref<8x32xf32, #tpu.memory_space<vmem>>, vector<8x32xf32>
    tpu.vector_store %arg4[%c0_6, %c0_7], %14 {strides = array<i32>} : memref<8x32xf32, #tpu.memory_space<vmem>>, vector<8x32xf32>,
    return
  }
  func.func @transform_0(%arg0: i32) -> (i32, i32) {
    %c0_i32 = arith.constant 0 : i32
    %c0_i32_0 = arith.constant 0 : i32
    return %arg0, %c0_i32 : i32, i32
  }
  func.func @transform_1(%arg0: i32) -> (i32, i32) {
    %c0_i32 = arith.constant 0 : i32
    %c0_i32_0 = arith.constant 0 : i32
    %c0_i32_1 = arith.constant 0 : i32
    return %c0_i32, %c0_i32_0 : i32, i32
  }
  func.func @transform_2(%arg0: i32) -> (i32, i32) {
    %c0_i32 = arith.constant 0 : i32
    %c0_i32_0 = arith.constant 0 : i32
    return %arg0, %c0_i32 : i32, i32
  }
  func.func @transform_3(%arg0: i32) -> (i32, i32) {
    %c0_i32 = arith.constant 0 : i32
    %c0_i32_0 = arith.constant 0 : i32
    return %arg0, %c0_i32 : i32, i32
  }
}

module attributes {stable_mosaic.version = 11 : i64} {
  func.func @_mm_bias_act_kernel(%arg0: i32, %arg1: memref<8x32xbf16, #tpu.memory_space<vmem>>, %arg2: memref<32x32xbf16, #tpu.memory_space<vmem>>, %arg3: memref<1x32xf32, #tpu.memory_space<vmem>>, %arg4: memref<8x32xf32, #tpu.memory_space<vmem>>) attributes {dimension_semantics = [#tpu.dimension_semantics<parallel>], iteration_bounds = array<i64: 1>, scalar_prefetch = 0 : i64, scratch_operands = 0 : i64, tpu.core_type = #tpu.core_type<tc>, window_params = [{transform_indices = @transform_0, window_bounds = array<i64: 8, 32>}, {pipeline_mode = #tpu.pipeline_mode<synchronous>, transform_indices = @transform_1, window_bounds = array<i64: 32, 32>}, {pipeline_mode = #tpu.pipeline_mode<synchronous>, transform_indices = @transform_2, window_bounds = array<i64: 1, 32>}, {transform_indices = @transform_3, window_bounds = array<i64: 8, 32>}]} {
    %c0 = arith.constant 0 : index
    %c0_0 = arith.constant 0 : index
    %0 = vector.load %arg1[%c0, %c0_0] : memref<8x32xbf16, #tpu.memory_space<vmem>>, vector<8x32xbf16>
    %c0_1 = arith.constant 0 : index
    %c0_2 = arith.constant 0 : index
    %1 = vector.load %arg2[%c0_1, %c0_2] : memref<32x32xbf16, #tpu.memory_space<vmem>>, vector<32x32xbf16>
    %cst = arith.constant dense<0.000000e+00> : vector<8x32xf32>
    %2 = tpu.matmul %0, %1, %cst {dimension_numbers = #tpu.dot_dimension_numbers<[1], [0], [0], [1], [0, 0, 1, 1], [], []>} : vector<8x32xbf16>, vector<32x32xbf16>, vector<8x32xf32> -> vector<8x32xf32>
    %c0_3 = arith.constant 0 : index
    %c0_4 = arith.constant 0 : index
    %3 = vector.load %arg3[%c0_3, %c0_4] : memref<1x32xf32, #tpu.memory_space<vmem>>, vector<1x32xf32>
    %4 = vector.broadcast %3 : vector<1x32xf32> to vector<8x32xf32>
    %5 = arith.addf %2, %4 : vector<8x32xf32>
    %c0_5 = arith.constant 0 : index
    %c0_6 = arith.constant 0 : index
    %6 = vector.load %arg4[%c0_5, %c0_6] : memref<8x32xf32, #tpu.memory_space<vmem>>, vector<8x32xf32>
    tpu.vector_store %arg4[%c0_5, %c0_6], %5 {strides = array<i32>} : memref<8x32xf32, #tpu.memory_space<vmem>>, vector<8x32xf32>,
    return
  }
  func.func @transform_0(%arg0: i32) -> (i32, i32) {
    %c0_i32 = arith.constant 0 : i32
    %c0_i32_0 = arith.constant 0 : i32
    return %arg0, %c0_i32 : i32, i32
  }
  func.func @transform_1(%arg0: i32) -> (i32, i32) {
    %c0_i32 = arith.constant 0 : i32
    %c0_i32_0 = arith.constant 0 : i32
    %c0_i32_1 = arith.constant 0 : i32
    return %c0_i32, %c0_i32_0 : i32, i32
  }
  func.func @transform_2(%arg0: i32) -> (i32, i32) {
    %c0_i32 = arith.constant 0 : i32
    %c0_i32_0 = arith.constant 0 : i32
    %c0_i32_1 = arith.constant 0 : i32
    return %c0_i32, %c0_i32_0 : i32, i32
  }
  func.func @transform_3(%arg0: i32) -> (i32, i32) {
    %c0_i32 = arith.constant 0 : i32
    %c0_i32_0 = arith.constant 0 : i32
    return %arg0, %c0_i32 : i32, i32
  }
}

module attributes {stable_mosaic.version = 11 : i64} {
  func.func @_sa_mul_add_relu_kernel(%arg0: i32, %arg1: memref<8x98xbf16, #tpu.memory_space<vmem>>, %arg2: memref<1x98xf32, #tpu.memory_space<vmem>>, %arg3: memref<8x32xf32, #tpu.memory_space<vmem>>, %arg4: memref<8x32xf32, #tpu.memory_space<vmem>>, %arg5: memref<8x32xf32, #tpu.memory_space<vmem>>) attributes {dimension_semantics = [#tpu.dimension_semantics<parallel>], iteration_bounds = array<i64: 1>, scalar_prefetch = 0 : i64, scratch_operands = 0 : i64, tpu.core_type = #tpu.core_type<tc>, window_params = [{transform_indices = @transform_0, window_bounds = array<i64: 8, 98>}, {pipeline_mode = #tpu.pipeline_mode<synchronous>, transform_indices = @transform_1, window_bounds = array<i64: 1, 98>}, {transform_indices = @transform_2, window_bounds = array<i64: 8, 32>}, {transform_indices = @transform_3, window_bounds = array<i64: 8, 32>}, {transform_indices = @transform_4, window_bounds = array<i64: 8, 32>}]} {
    %c0 = arith.constant 0 : index
    %c0_0 = arith.constant 0 : index
    %0 = vector.load %arg1[%c0, %c0_0] : memref<8x98xbf16, #tpu.memory_space<vmem>>, vector<8x98xbf16>
    %1 = arith.extf %0 : vector<8x98xbf16> to vector<8x98xf32>
    %c0_1 = arith.constant 0 : index
    %c0_2 = arith.constant 0 : index
    %2 = vector.load %arg2[%c0_1, %c0_2] : memref<1x98xf32, #tpu.memory_space<vmem>>, vector<1x98xf32>
    %3 = vector.broadcast %2 : vector<1x98xf32> to vector<8x98xf32>
    %4 = arith.mulf %1, %3 : vector<8x98xf32>
    %cst = arith.constant dense<0.000000e+00> : vector<8xf32>
    %5 = vector.multi_reduction <add>, %4, %cst [1] : vector<8x98xf32> to vector<8xf32>
    %6 = vector.shape_cast %5 : vector<8xf32> to vector<8x1xf32>
    %7 = arith.negf %6 : vector<8x1xf32>
    %8 = math.exp %7 : vector<8x1xf32>
    %cst_3 = arith.constant 1.000000e+00 : f32
    %9 = vector.broadcast %cst_3 : f32 to vector<8x1xf32>
    %10 = arith.addf %9, %8 : vector<8x1xf32>
    %11 = arith.divf %9, %10 : vector<8x1xf32>
    %c0_4 = arith.constant 0 : index
    %c0_5 = arith.constant 0 : index
    %12 = vector.load %arg3[%c0_4, %c0_5] : memref<8x32xf32, #tpu.memory_space<vmem>>, vector<8x32xf32>
    %13 = vector.broadcast %11 : vector<8x1xf32> to vector<8x32xf32>
    %14 = arith.mulf %12, %13 : vector<8x32xf32>
    %c0_6 = arith.constant 0 : index
    %c0_7 = arith.constant 0 : index
    %15 = vector.load %arg4[%c0_6, %c0_7] : memref<8x32xf32, #tpu.memory_space<vmem>>, vector<8x32xf32>
    %16 = arith.addf %14, %15 : vector<8x32xf32>
    %cst_8 = arith.constant 0.000000e+00 : f32
    %17 = vector.broadcast %cst_8 : f32 to vector<8x32xf32>
    %18 = arith.maximumf %16, %17 : vector<8x32xf32>
    %c0_9 = arith.constant 0 : index
    %c0_10 = arith.constant 0 : index
    %19 = vector.load %arg5[%c0_9, %c0_10] : memref<8x32xf32, #tpu.memory_space<vmem>>, vector<8x32xf32>
    tpu.vector_store %arg5[%c0_9, %c0_10], %18 {strides = array<i32>} : memref<8x32xf32, #tpu.memory_space<vmem>>, vector<8x32xf32>,
    return
  }
  func.func @transform_0(%arg0: i32) -> (i32, i32) {
    %c0_i32 = arith.constant 0 : i32
    %c0_i32_0 = arith.constant 0 : i32
    return %arg0, %c0_i32 : i32, i32
  }
  func.func @transform_1(%arg0: i32) -> (i32, i32) {
    %c0_i32 = arith.constant 0 : i32
    %c0_i32_0 = arith.constant 0 : i32
    %c0_i32_1 = arith.constant 0 : i32
    return %c0_i32, %c0_i32_0 : i32, i32
  }
  func.func @transform_2(%arg0: i32) -> (i32, i32) {
    %c0_i32 = arith.constant 0 : i32
    %c0_i32_0 = arith.constant 0 : i32
    return %arg0, %c0_i32 : i32, i32
  }
  func.func @transform_3(%arg0: i32) -> (i32, i32) {
    %c0_i32 = arith.constant 0 : i32
    %c0_i32_0 = arith.constant 0 : i32
    return %arg0, %c0_i32 : i32, i32
  }
  func.func @transform_4(%arg0: i32) -> (i32, i32) {
    %c0_i32 = arith.constant 0 : i32
    %c0_i32_0 = arith.constant 0 : i32
    return %arg0, %c0_i32 : i32, i32
  }
}

module attributes {stable_mosaic.version = 11 : i64} {
  func.func @_mm_bias_act_kernel(%arg0: i32, %arg1: memref<8x288xbf16, #tpu.memory_space<vmem>>, %arg2: memref<288x64xbf16, #tpu.memory_space<vmem>>, %arg3: memref<1x64xf32, #tpu.memory_space<vmem>>, %arg4: memref<8x64xf32, #tpu.memory_space<vmem>>) attributes {dimension_semantics = [#tpu.dimension_semantics<parallel>], iteration_bounds = array<i64: 1>, scalar_prefetch = 0 : i64, scratch_operands = 0 : i64, tpu.core_type = #tpu.core_type<tc>, window_params = [{transform_indices = @transform_0, window_bounds = array<i64: 8, 288>}, {pipeline_mode = #tpu.pipeline_mode<synchronous>, transform_indices = @transform_1, window_bounds = array<i64: 288, 64>}, {pipeline_mode = #tpu.pipeline_mode<synchronous>, transform_indices = @transform_2, window_bounds = array<i64: 1, 64>}, {transform_indices = @transform_3, window_bounds = array<i64: 8, 64>}]} {
    %c0 = arith.constant 0 : index
    %c0_0 = arith.constant 0 : index
    %0 = vector.load %arg1[%c0, %c0_0] : memref<8x288xbf16, #tpu.memory_space<vmem>>, vector<8x288xbf16>
    %c0_1 = arith.constant 0 : index
    %c0_2 = arith.constant 0 : index
    %1 = vector.load %arg2[%c0_1, %c0_2] : memref<288x64xbf16, #tpu.memory_space<vmem>>, vector<288x64xbf16>
    %cst = arith.constant dense<0.000000e+00> : vector<8x64xf32>
    %2 = tpu.matmul %0, %1, %cst {dimension_numbers = #tpu.dot_dimension_numbers<[1], [0], [0], [1], [0, 0, 1, 1], [], []>} : vector<8x288xbf16>, vector<288x64xbf16>, vector<8x64xf32> -> vector<8x64xf32>
    %c0_3 = arith.constant 0 : index
    %c0_4 = arith.constant 0 : index
    %3 = vector.load %arg3[%c0_3, %c0_4] : memref<1x64xf32, #tpu.memory_space<vmem>>, vector<1x64xf32>
    %4 = vector.broadcast %3 : vector<1x64xf32> to vector<8x64xf32>
    %5 = arith.addf %2, %4 : vector<8x64xf32>
    %cst_5 = arith.constant 0.000000e+00 : f32
    %6 = vector.broadcast %cst_5 : f32 to vector<8x64xf32>
    %7 = arith.maximumf %5, %6 : vector<8x64xf32>
    %c0_6 = arith.constant 0 : index
    %c0_7 = arith.constant 0 : index
    %8 = vector.load %arg4[%c0_6, %c0_7] : memref<8x64xf32, #tpu.memory_space<vmem>>, vector<8x64xf32>
    tpu.vector_store %arg4[%c0_6, %c0_7], %7 {strides = array<i32>} : memref<8x64xf32, #tpu.memory_space<vmem>>, vector<8x64xf32>,
    return
  }
  func.func @transform_0(%arg0: i32) -> (i32, i32) {
    %c0_i32 = arith.constant 0 : i32
    %c0_i32_0 = arith.constant 0 : i32
    return %arg0, %c0_i32 : i32, i32
  }
  func.func @transform_1(%arg0: i32) -> (i32, i32) {
    %c0_i32 = arith.constant 0 : i32
    %c0_i32_0 = arith.constant 0 : i32
    %c0_i32_1 = arith.constant 0 : i32
    return %c0_i32, %c0_i32_0 : i32, i32
  }
  func.func @transform_2(%arg0: i32) -> (i32, i32) {
    %c0_i32 = arith.constant 0 : i32
    %c0_i32_0 = arith.constant 0 : i32
    %c0_i32_1 = arith.constant 0 : i32
    return %c0_i32, %c0_i32_0 : i32, i32
  }
  func.func @transform_3(%arg0: i32) -> (i32, i32) {
    %c0_i32 = arith.constant 0 : i32
    %c0_i32_0 = arith.constant 0 : i32
    return %arg0, %c0_i32 : i32, i32
  }
}

module attributes {stable_mosaic.version = 11 : i64} {
  func.func @_mm_tanh_resadd_kernel(%arg0: i32, %arg1: memref<128x36xbf16, #tpu.memory_space<vmem>>, %arg2: memref<36x4xbf16, #tpu.memory_space<vmem>>, %arg3: memref<1x4xf32, #tpu.memory_space<vmem>>, %arg4: memref<128x4xf32, #tpu.memory_space<vmem>>, %arg5: memref<128x4xf32, #tpu.memory_space<vmem>>) attributes {dimension_semantics = [#tpu.dimension_semantics<parallel>], iteration_bounds = array<i64: 4>, scalar_prefetch = 0 : i64, scratch_operands = 0 : i64, tpu.core_type = #tpu.core_type<tc>, window_params = [{transform_indices = @transform_0, window_bounds = array<i64: 128, 36>}, {pipeline_mode = #tpu.pipeline_mode<synchronous>, transform_indices = @transform_1, window_bounds = array<i64: 36, 4>}, {pipeline_mode = #tpu.pipeline_mode<synchronous>, transform_indices = @transform_2, window_bounds = array<i64: 1, 4>}, {transform_indices = @transform_3, window_bounds = array<i64: 128, 4>}, {transform_indices = @transform_4, window_bounds = array<i64: 128, 4>}]} {
    %c0 = arith.constant 0 : index
    %c0_0 = arith.constant 0 : index
    %0 = vector.load %arg1[%c0, %c0_0] : memref<128x36xbf16, #tpu.memory_space<vmem>>, vector<128x36xbf16>
    %c0_1 = arith.constant 0 : index
    %c0_2 = arith.constant 0 : index
    %1 = vector.load %arg2[%c0_1, %c0_2] : memref<36x4xbf16, #tpu.memory_space<vmem>>, vector<36x4xbf16>
    %cst = arith.constant dense<0.000000e+00> : vector<128x4xf32>
    %2 = tpu.matmul %0, %1, %cst {dimension_numbers = #tpu.dot_dimension_numbers<[1], [0], [0], [1], [0, 0, 1, 1], [], []>} : vector<128x36xbf16>, vector<36x4xbf16>, vector<128x4xf32> -> vector<128x4xf32>
    %c0_3 = arith.constant 0 : index
    %c0_4 = arith.constant 0 : index
    %3 = vector.load %arg3[%c0_3, %c0_4] : memref<1x4xf32, #tpu.memory_space<vmem>>, vector<1x4xf32>
    %4 = vector.broadcast %3 : vector<1x4xf32> to vector<128x4xf32>
    %5 = arith.addf %2, %4 : vector<128x4xf32>
    %c0_5 = arith.constant 0 : index
    %c0_6 = arith.constant 0 : index
    %6 = vector.load %arg4[%c0_5, %c0_6] : memref<128x4xf32, #tpu.memory_space<vmem>>, vector<128x4xf32>
    %7 = math.tanh %5 : vector<128x4xf32>
    %cst_7 = arith.constant 1.000000e-01 : f32
    %8 = vector.broadcast %cst_7 : f32 to vector<128x4xf32>
    %9 = arith.mulf %8, %7 : vector<128x4xf32>
    %10 = arith.addf %6, %9 : vector<128x4xf32>
    %c0_8 = arith.constant 0 : index
    %c0_9 = arith.constant 0 : index
    %11 = vector.load %arg5[%c0_8, %c0_9] : memref<128x4xf32, #tpu.memory_space<vmem>>, vector<128x4xf32>
    tpu.vector_store %arg5[%c0_8, %c0_9], %10 {strides = array<i32>} : memref<128x4xf32, #tpu.memory_space<vmem>>, vector<128x4xf32>,
    return
  }
  func.func @transform_0(%arg0: i32) -> (i32, i32) {
    %c0_i32 = arith.constant 0 : i32
    %c0_i32_0 = arith.constant 0 : i32
    return %arg0, %c0_i32 : i32, i32
  }
  func.func @transform_1(%arg0: i32) -> (i32, i32) {
    %c0_i32 = arith.constant 0 : i32
    %c0_i32_0 = arith.constant 0 : i32
    %c0_i32_1 = arith.constant 0 : i32
    return %c0_i32, %c0_i32_0 : i32, i32
  }
  func.func @transform_2(%arg0: i32) -> (i32, i32) {
    %c0_i32 = arith.constant 0 : i32
    %c0_i32_0 = arith.constant 0 : i32
    %c0_i32_1 = arith.constant 0 : i32
    return %c0_i32, %c0_i32_0 : i32, i32
  }
  func.func @transform_3(%arg0: i32) -> (i32, i32) {
    %c0_i32 = arith.constant 0 : i32
    %c0_i32_0 = arith.constant 0 : i32
    return %arg0, %c0_i32 : i32, i32
  }
  func.func @transform_4(%arg0: i32) -> (i32, i32) {
    %c0_i32 = arith.constant 0 : i32
    %c0_i32_0 = arith.constant 0 : i32
    return %arg0, %c0_i32 : i32, i32
  }
}

</mosaic_0001>

<llo_original>
// kernel: robust_encoder_forward.36
$region0: #{robust_encoder_forward.36}
  #allocation0 [shape = 'u32[]', space=smem, size = 0x4, offset = 0x4, fixed_abs, tag = 'smem constant byte address 0x4 - core index']
  #allocation1 [shape = 'u32[144,128]{1,0:T(1,128)}', space=vmem, size = 0x12000, scoped, tag = 'internal scratch']
  %s0 = inlined_call_operand.vmem [shape: bf16[512,36], index: 0, kind: input, shape index: {}]
  %s1 = inlined_call_operand.vmem [shape: bf16[36,8], index: 1, kind: input, shape index: {}]
  %s2 = inlined_call_operand.vmem [shape: f32[1,8], index: 2, kind: input, shape index: {}]
  %s3 = inlined_call_operand.vmem [shape: f32[512,8], index: 3, kind: output, shape index: {}]
  %s4 = sld [smem:[#allocation0]]
  $region45: #{robust_encoder_forward.36} parent=0
    _
  %s6 = ssub.s32 1, %s4
  %s7 = scalar_select 0, %s6, %s4
  loop: start=0, step=1, limit=6
  $region2: #{robust_encoder_forward.36} parent=0 // loop_pre_header
    _
  $region3: #{robust_encoder_forward.36} parent=0 // loop_header
    %s9 = sphi 0, %s13
    %p10 = scmp.ge.s32.totalorder %s9, 6
    %s19 = sphi 0, %s21
    %s22 = sphi 0, %s19
    %s23 = sphi 0, %s22
    %s39 = sphi 0, %s23
    %s43 = sphi 0, %s43
    %s45 = sphi 0, %s43
    %s46 = sphi 0, %s45
    %s60 = sphi 0, %s46
    %s64 = sphi 0, %s64
    %s66 = sphi 0, %s64
    %s67 = sphi 0, %s66
    %s81 = sphi 0, %s67
    %s87 = sphi 0, %s89
    %s90 = sphi 0, %s87
    %s91 = sphi 0, %s90
    %s107 = sphi 0, %s91
  $region4: #{robust_encoder_forward.36} parent=0 // loop_header_branch
    %12 = sbr.rel (%p10) target = $region8
  $region5: #{robust_encoder_forward.36} parent=0 // loop_body
    %s14 = ssub.s32 %s9, 1
    %s15 = ssub.s32 %s9, 2
    %s16 = sadd.s32 %s9, 1
    %s17 = ssub.s32 %s9, %s16
    %p18 = scmp.eq.s32.totalorder %s17, 0
    %s20 = sadd.s32 %s19, 1
    %s21 = scalar_select %p18, %s19, %s20
    %p24 = pneg %p18
    %p25 = scmp.eq.s32.totalorder %s9, 3
    %p26 = por %p24, %p25
    %p27 = scmp.ne.s32.totalorder %s19, %s22
    %p28 = scmp.eq.s32.totalorder %s9, 0
    %p29 = por %p27, %p28
    %p30 = scmp.ne.s32.totalorder %s19, %s22
    %p31 = scmp.eq.s32.totalorder %s14, 3
    %p32 = por %p30, %p31
    %p33 = scmp.ne.s32.totalorder %s22, %s23
    %p34 = scmp.eq.s32.totalorder %s14, 0
    %p35 = por %p33, %p34
    %p36 = scmp.ne.s32.totalorder %s22, %s23
    %p37 = scmp.eq.s32.totalorder %s15, 3
    %p38 = por %p36, %p37
    %p40 = scmp.ne.s32.totalorder %s23, %s39
    %p41 = scmp.eq.s32.totalorder %s15, 0
    %p42 = por %p40, %p41
    %s44 = sadd.s32 %s43, 1
    %p47 = scmp.eq.s32.totalorder %s9, 3
    %p48 = scmp.ne.s32.totalorder %s43, %s45
    %p49 = scmp.eq.s32.totalorder %s9, 0
    %p50 = por %p48, %p49
    %p51 = scmp.ne.s32.totalorder %s43, %s45
    %p52 = scmp.eq.s32.totalorder %s14, 3
    %p53 = por %p51, %p52
    %p54 = scmp.ne.s32.totalorder %s45, %s46
    %p55 = scmp.eq.s32.totalorder %s14, 0
    %p56 = por %p54, %p55
    %p57 = scmp.ne.s32.totalorder %s45, %s46
    %p58 = scmp.eq.s32.totalorder %s15, 3
    %p59 = por %p57, %p58
    %p61 = scmp.ne.s32.totalorder %s46, %s60
    %p62 = scmp.eq.s32.totalorder %s15, 0
    %p63 = por %p61, %p62
    %s65 = sadd.s32 %s64, 1
    %p68 = scmp.eq.s32.totalorder %s9, 3
    %p69 = scmp.ne.s32.totalorder %s64, %s66
    %p70 = scmp.eq.s32.totalorder %s9, 0
    %p71 = por %p69, %p70
    %p72 = scmp.ne.s32.totalorder %s64, %s66
    %p73 = scmp.eq.s32.totalorder %s14, 3
    %p74 = por %p72, %p73
    %p75 = scmp.ne.s32.totalorder %s66, %s67
    %p76 = scmp.eq.s32.totalorder %s14, 0
    %p77 = por %p75, %p76
    %p78 = scmp.ne.s32.totalorder %s66, %s67
    %p79 = scmp.eq.s32.totalorder %s15, 3
    %p80 = por %p78, %p79
    %p82 = scmp.ne.s32.totalorder %s67, %s81
    %p83 = scmp.eq.s32.totalorder %s15, 0
    %p84 = por %p82, %p83
    %s85 = ssub.s32 %s9, %s16
    %p86 = scmp.eq.s32.totalorder %s85, 0
    %s88 = sadd.s32 %s87, 1
    %s89 = scalar_select %p86, %s87, %s88
    %p92 = pneg %p86
    %p93 = scmp.eq.s32.totalorder %s9, 3
    %p94 = por %p92, %p93
    %p95 = scmp.ne.s32.totalorder %s87, %s90
    %p96 = scmp.eq.s32.totalorder %s9, 0
    %p97 = por %p95, %p96
    %p98 = scmp.ne.s32.totalorder %s87, %s90
    %p99 = scmp.eq.s32.totalorder %s14, 3
    %p100 = por %p98, %p99
    %p101 = scmp.ne.s32.totalorder %s90, %s91
    %p102 = scmp.eq.s32.totalorder %s14, 0
    %p103 = por %p101, %p102
    %p104 = scmp.ne.s32.totalorder %s90, %s91
    %p105 = scmp.eq.s32.totalorder %s15, 3
    %p106 = por %p104, %p105
    %p108 = scmp.ne.s32.totalorder %s91, %s107
    %p109 = scmp.eq.s32.totalorder %s15, 0
    %p110 = por %p108, %p109
    %p111 = scmp.le.s32.totalorder 1, %s9
    %p112 = scmp.lt.s32.totalorder %s9, 5
    %p113 = pnand %p111, %p112
    %p114 = pneg %p113
    // Predicated region
    $region9: #{robust_encoder_forward.36} parent=5 // pred_check
      _
    $region10: #{robust_encoder_forward.36} parent=5 // pred_check_branch
      %116 = sbr.rel (%p113) target = $region12
    $region11: #{robust_encoder_forward.36} parent=5 // pred_region
      %s117 = ssub.s32 %s9, 1
      // Predicated region
      $region13: #{robust_encoder_forward.36} parent=11 // pred_check
        %p118 = pneg %p56
      $region14: #{robust_encoder_forward.36} parent=11 // pred_check_branch
        %120 = sbr.rel (%p118) target = $region16
      $region15: #{robust_encoder_forward.36} parent=11 // pred_region
        _
      $region16: #{robust_encoder_forward.36} parent=11 // pred_fallthru
        _
      // Predicated region
      $region17: #{robust_encoder_forward.36} parent=11 // pred_check
        %p121 = pneg %p77
      $region18: #{robust_encoder_forward.36} parent=11 // pred_check_branch
        %123 = sbr.rel (%p121) target = $region20
      $region19: #{robust_encoder_forward.36} parent=11 // pred_region
        _
      $region20: #{robust_encoder_forward.36} parent=11 // pred_fallthru
        _
    $region12: #{robust_encoder_forward.36} parent=5 // pred_fallthru
      _
    %p124 = scmp.lt.s32.totalorder %s9, 4
    // Predicated region
    $region21: #{robust_encoder_forward.36} parent=5 // pred_check
      %p125 = pneg %p124
    $region22: #{robust_encoder_forward.36} parent=5 // pred_check_branch
      %127 = sbr.rel (%p125) target = $region24
    $region23: #{robust_encoder_forward.36} parent=5 // pred_region
      // Predicated region
      $region25: #{robust_encoder_forward.36} parent=23 // pred_check
        %p128 = pneg %p29
      $region26: #{robust_encoder_forward.36} parent=23 // pred_check_branch
        %130 = sbr.rel (%p128) target = $region28
      $region27: #{robust_encoder_forward.36} parent=23 // pred_region
        %s131 = smul.u32 16, %s9
        %p132 = scmp.lt.s32.totalorder %s131, 63
        %s133 = scalar_select %p132, %s131, 63
        %s134 = smul.addr %s133, 4
        %s135 = scalar_lea.vmem %s0, %s134
        %s136 = smul.u32 16, %s9
      $region28: #{robust_encoder_forward.36} parent=23 // pred_fallthru
        _
    $region24: #{robust_encoder_forward.36} parent=5 // pred_fallthru
      _
    %p137 = scmp.le.s32.totalorder 1, %s9
    %p138 = scmp.lt.s32.totalorder %s9, 5
    %p139 = pnand %p137, %p138
    %p140 = pneg %p139
    // Predicated region
    $region29: #{robust_encoder_forward.36} parent=5 // pred_check
      _
    $region30: #{robust_encoder_forward.36} parent=5 // pred_check_branch
      %142 = sbr.rel (%p139) target = $region32
    $region31: #{robust_encoder_forward.36} parent=5 // pred_region
      %s143 = ssub.s32 %s9, 1
      %s144 = smul.u32 16, %s14
      %p145 = scmp.lt.s32.totalorder %s144, 63
      %s146 = scalar_select %p145, %s144, 63
      %s147 = smul.addr %s146, 4
      %s148 = scalar_lea.vmem %s0, %s147
      %p149 = pneg %p35
      %p150 = pneg %p32
      %p151 = pneg %p56
      %p152 = pneg %p53
      %p153 = pneg %p77
      %p154 = pneg %p74
      %p155 = pneg %p103
      %p156 = pneg %p100
      %s157 = smul.u32 16, %s14
      %p158 = scmp.lt.s32.totalorder %s157, 63
      %s159 = scalar_select %p158, %s157, 63
      %s160 = smul.addr %s159, 8
      %s161 = scalar_lea.vmem %s3, %s160
      %s162 = smul.u32 16, %s14
      %p163 = scmp.lt.s32.totalorder %s162, 63
      %s164 = scalar_select %p163, %s162, 63
      %s165 = smul.addr %s164, 4
      %s166 = scalar_lea.vmem %s0, %s165
      %s167 = smul.u32 16, %s14
      %s168 = smul.u32 16, %s14
      %p169 = scmp.lt.s32.totalorder %s168, 63
      %s170 = scalar_select %p169, %s168, 63
      %s171 = smul.addr %s170, 8
      %s172 = scalar_lea.vmem %s3, %s171
      %s173 = smul.u32 16, %s14
      %v175 = vld [vmem:[%s166] sm:$0xf]
      %v176 = vld [vmem:[%s166 + $0x4] sm:$0xf]
      %v177 = vld [vmem:[%s166 + $0x8] sm:$0xf]
      %v178 = vld [vmem:[%s166 + $0xc] sm:$0xf]
      %v179 = vld [vmem:[%s166 + $0x10] sm:$0xf]
      %v180 = vld [vmem:[%s166 + $0x14] sm:$0xf]
      %v181 = vld [vmem:[%s166 + $0x18] sm:$0xf]
      %v182 = vld [vmem:[%s166 + $0x1c] sm:$0xf]
      %v183 = vld [vmem:[%s166 + $0x20] sm:$0xf]
      %v184 = vld [vmem:[%s166 + $0x24] sm:$0xf]
      %v185 = vld [vmem:[%s166 + $0x28] sm:$0xf]
      %v186 = vld [vmem:[%s166 + $0x2c] sm:$0xf]
      %v187 = vld [vmem:[%s166 + $0x30] sm:$0xf]
      %v188 = vld [vmem:[%s166 + $0x34] sm:$0xf]
      %v189 = vld [vmem:[%s166 + $0x38] sm:$0xf]
      %v190 = vld [vmem:[%s166 + $0x3c] sm:$0xf]
      %v191 = vld [vmem:[%s1] sm:$0xf]
      %v192 = vld [vmem:[%s1 + $0x4] sm:$0xf]
      %v193 = vld [vmem:[%s1 + $0x8] sm:$0xf]
      %v194 = vld [vmem:[%s1 + $0xc] sm:$0xf]
      %v195 = vld [vmem:[%s1 + $0x10] sm:$0x3]
      %v196 = vld [vmem:[%s2] sm:$0x1]
      %v198 = vlaneseq
      %v199 = vshrl.u32 %v198, 7
      %v200 = vsub.s32 0, %v199
      %v201 = vrot.slane %v196, %v200
      %v219 = vunpack.c.l.b16 %v175
      %v220 = vunpack.c.l.b16 %v176
      %v221 = vunpack.c.l.b16 %v177
      %v222 = vunpack.c.l.b16 %v178
      %v223 = vunpack.c.l.b16 %v179
      %v224 = vunpack.c.l.b16 %v180
      %v225 = vunpack.c.l.b16 %v181
      %v226 = vunpack.c.l.b16 %v182
      %v227 = vunpack.c.l.b16 %v183
      %v228 = vunpack.c.l.b16 %v184
      %v229 = vunpack.c.l.b16 %v185
      %v230 = vunpack.c.l.b16 %v186
      %v231 = vunpack.c.l.b16 %v187
      %v232 = vunpack.c.l.b16 %v188
      %v233 = vunpack.c.l.b16 %v189
      %v234 = vunpack.c.l.b16 %v190
      %v235 = vpack.c.b16 %v220, %v219
      %v236 = vpack.c.b16 %v222, %v221
      %v237 = vpack.c.b16 %v224, %v223
      %v238 = vpack.c.b16 %v226, %v225
      %v239 = vpack.c.b16 %v228, %v227
      %v240 = vpack.c.b16 %v230, %v229
      %v241 = vpack.c.b16 %v232, %v231
      %v242 = vpack.c.b16 %v234, %v233
      %v248 = vunpack.c.l.b16 %v191
      %v249 = vunpack.c.l.b16 %v192
      %v250 = vunpack.c.l.b16 %v193
      %v251 = vunpack.c.l.b16 %v194
      %v252 = vunpack.c.l.b16 %v195
      %v253 = vpack.c.b16 %v249, %v248
      %v254 = vpack.c.b16 %v251, %v250
      %v255 = vpack.c.b16 %v252, %v252
      %vm258 = vcmask 293888
      %v260 = vsel %vm258, %v235, 0
      %v263 = vsel %vm258, %v236, 0
      %v266 = vsel %vm258, %v237, 0
      %v269 = vsel %vm258, %v238, 0
      %v272 = vsel %vm258, %v239, 0
      %v275 = vsel %vm258, %v240, 0
      %v278 = vsel %vm258, %v241, 0
      %v281 = vsel %vm258, %v242, 0
      %vm283 = vcmask 1041408
      %v285 = vsel %vm283, %v255, 0
      %287 = vmatprep.subr.bf16.mxu0 0
      %288 = vmatpush1.bf16.msra.mxu0 %v253
      %289 = vmatprep.subr.bf16.mxu0 0
      %290 = vmatpush1.bf16.msra.mxu0 %v254
      %291 = vmatprep.subr.bf16.mxu0 0
      %292 = vmatpush1.bf16.msra.mxu0 %v285
      %293 = vmatprep.subr.bf16.mxu0 0
      %294 = vmatpush1.bf16.msra.mxu0 0
      %295 = vmatprep.subr.bf16.mxu0 0
      %296 = vmatpush1.bf16.msra.mxu0 0
      %297 = vmatprep.subr.bf16.mxu0 0
      %298 = vmatpush1.bf16.msra.mxu0 0
      %299 = vmatprep.subr.bf16.mxu0 0
      %300 = vmatpush1.bf16.msra.mxu0 0
      %301 = vmatprep.subr.bf16.mxu0 0
      %302 = vmatpush1.bf16.msra.mxu0 0
      %303 = vmatprep.subr.bf16.mxu0 0
      %304 = vmatpush1.bf16.msra.mxu0 0
      %305 = vmatprep.subr.bf16.mxu0 0
      %306 = vmatpush1.bf16.msra.mxu0 0
      %307 = vmatprep.subr.bf16.mxu0 0
      %308 = vmatpush1.bf16.msra.mxu0 0
      %309 = vmatprep.subr.bf16.mxu0 0
      %310 = vmatpush1.bf16.msra.mxu0 0
      %311 = vmatprep.subr.bf16.mxu0 0
      %312 = vmatpush1.bf16.msra.mxu0 0
      %313 = vmatprep.subr.bf16.mxu0 0
      %314 = vmatpush1.bf16.msra.mxu0 0
      %315 = vmatprep.subr.bf16.mxu0 0
      %316 = vmatpush1.bf16.msra.mxu0 0
      %317 = vmatprep.subr.bf16.mxu0 0
      %318 = vmatpush1.bf16.msra.mxu0 0
      %319 = vmatprep.mubr.bf16.mxu0 0
      %320 = vmatmul.mubr.bf16.gmra.mrb[0].mxu0 %v260
      %v321 = vpop.f32.mrb[0].mxu0
      %v322 = vadd.f32 %v201, %v321
      %v323 = vpop.f32.mrb[0].mxu0
      %v324 = vpop.f32.mrb[0].mxu0
      %v325 = vadd.f32 %v201, %v324
      %v326 = vpop.f32.mrb[0].mxu0
      %327 = vmatprep.mubr.bf16.mxu0 0
      %328 = vmatmul.mubr.bf16.gmra.mrb[0].mxu0 %v263
      %v329 = vpop.f32.mrb[0].mxu0
      %v330 = vadd.f32 %v201, %v329
      %v331 = vpop.f32.mrb[0].mxu0
      %v332 = vpop.f32.mrb[0].mxu0
      %v333 = vadd.f32 %v201, %v332
      %v334 = vpop.f32.mrb[0].mxu0
      %335 = vmatprep.mubr.bf16.mxu0 0
      %336 = vmatmul.mubr.bf16.gmra.mrb[0].mxu0 %v266
      %v337 = vpop.f32.mrb[0].mxu0
      %v338 = vadd.f32 %v201, %v337
      %v339 = vpop.f32.mrb[0].mxu0
      %v340 = vpop.f32.mrb[0].mxu0
      %v341 = vadd.f32 %v201, %v340
      %v342 = vpop.f32.mrb[0].mxu0
      %343 = vmatprep.mubr.bf16.mxu0 0
      %344 = vmatmul.mubr.bf16.gmra.mrb[0].mxu0 %v269
      %v345 = vpop.f32.mrb[0].mxu0
      %v346 = vadd.f32 %v201, %v345
      %v347 = vpop.f32.mrb[0].mxu0
      %v348 = vpop.f32.mrb[0].mxu0
      %v349 = vadd.f32 %v201, %v348
      %v350 = vpop.f32.mrb[0].mxu0
      %351 = vmatprep.mubr.bf16.mxu0 0
      %352 = vmatmul.mubr.bf16.gmra.mrb[0].mxu0 %v272
      %v353 = vpop.f32.mrb[0].mxu0
      %v354 = vadd.f32 %v201, %v353
      %v355 = vpop.f32.mrb[0].mxu0
      %v356 = vpop.f32.mrb[0].mxu0
      %v357 = vadd.f32 %v201, %v356
      %v358 = vpop.f32.mrb[0].mxu0
      %359 = vmatprep.mubr.bf16.mxu0 0
      %360 = vmatmul.mubr.bf16.gmra.mrb[0].mxu0 %v275
      %v361 = vpop.f32.mrb[0].mxu0
      %v362 = vadd.f32 %v201, %v361
      %v363 = vpop.f32.mrb[0].mxu0
      %v364 = vpop.f32.mrb[0].mxu0
      %v365 = vadd.f32 %v201, %v364
      %v366 = vpop.f32.mrb[0].mxu0
      %367 = vmatprep.mubr.bf16.mxu0 0
      %368 = vmatmul.mubr.bf16.gmra.mrb[0].mxu0 %v278
      %v369 = vpop.f32.mrb[0].mxu0
      %v370 = vadd.f32 %v201, %v369
      %v371 = vpop.f32.mrb[0].mxu0
      %v372 = vpop.f32.mrb[0].mxu0
      %v373 = vadd.f32 %v201, %v372
      %v374 = vpop.f32.mrb[0].mxu0
      %375 = vmatprep.mubr.bf16.mxu0 0
      %376 = vmatmul.mubr.bf16.gmra.mrb[0].mxu0 %v281
      %v377 = vpop.f32.mrb[0].mxu0
      %v378 = vadd.f32 %v201, %v377
      %v379 = vpop.f32.mrb[0].mxu0
      %v380 = vpop.f32.mrb[0].mxu0
      %v381 = vadd.f32 %v201, %v380
      %v382 = vpop.f32.mrb[0].mxu0
      %383 = vdwg.mxu0
      %v384 = vmax.f32 %v322, 0.0
      %v385 = vmax.f32 %v325, 0.0
      %v386 = vmax.f32 %v330, 0.0
      %v387 = vmax.f32 %v333, 0.0
      %v388 = vmax.f32 %v338, 0.0
      %v389 = vmax.f32 %v341, 0.0
      %v390 = vmax.f32 %v346, 0.0
      %v391 = vmax.f32 %v349, 0.0
      %v392 = vmax.f32 %v354, 0.0
      %v393 = vmax.f32 %v357, 0.0
      %v394 = vmax.f32 %v362, 0.0
      %v395 = vmax.f32 %v365, 0.0
      %v396 = vmax.f32 %v370, 0.0
      %v397 = vmax.f32 %v373, 0.0
      %v398 = vmax.f32 %v378, 0.0
      %v399 = vmax.f32 %v381, 0.0
      %vm400 = vcmask 64512
      %401 = vst.msk [vmem:[%s172] sm:$0xff] %vm400, %v384
      %402 = vst.msk [vmem:[%s172 + $0x8] sm:$0xff] %vm400, %v385
      %403 = vst.msk [vmem:[%s172 + $0x10] sm:$0xff] %vm400, %v386
      %404 = vst.msk [vmem:[%s172 + $0x18] sm:$0xff] %vm400, %v387
      %405 = vst.msk [vmem:[%s172 + $0x20] sm:$0xff] %vm400, %v388
      %406 = vst.msk [vmem:[%s172 + $0x28] sm:$0xff] %vm400, %v389
      %407 = vst.msk [vmem:[%s172 + $0x30] sm:$0xff] %vm400, %v390
      %408 = vst.msk [vmem:[%s172 + $0x38] sm:$0xff] %vm400, %v391
      %409 = vst.msk [vmem:[%s172 + $0x40] sm:$0xff] %vm400, %v392
      %410 = vst.msk [vmem:[%s172 + $0x48] sm:$0xff] %vm400, %v393
      %411 = vst.msk [vmem:[%s172 + $0x50] sm:$0xff] %vm400, %v394
      %412 = vst.msk [vmem:[%s172 + $0x58] sm:$0xff] %vm400, %v395
      %413 = vst.msk [vmem:[%s172 + $0x60] sm:$0xff] %vm400, %v396
      %414 = vst.msk [vmem:[%s172 + $0x68] sm:$0xff] %vm400, %v397
      %415 = vst.msk [vmem:[%s172 + $0x70] sm:$0xff] %vm400, %v398
      %416 = vst.msk [vmem:[%s172 + $0x78] sm:$0xff] %vm400, %v399
      %s417 = smul.u32 16, %s14
      %p418 = scmp.lt.s32.totalorder %s417, 63
      %s419 = scalar_select %p418, %s417, 63
      %s420 = smul.addr %s419, 8
      %s421 = scalar_lea.vmem %s3, %s420
      // Predicated region
      $region33: #{robust_encoder_forward.36} parent=31 // pred_check
        %p422 = pneg %p100
      $region34: #{robust_encoder_forward.36} parent=31 // pred_check_branch
        %424 = sbr.rel (%p422) target = $region36
      $region35: #{robust_encoder_forward.36} parent=31 // pred_region
        %s425 = smul.u32 16, %s14
      $region36: #{robust_encoder_forward.36} parent=31 // pred_fallthru
        _
    $region32: #{robust_encoder_forward.36} parent=5 // pred_fallthru
      _
    %p426 = scmp.le.s32.totalorder 2, %s9
    // Predicated region
    $region37: #{robust_encoder_forward.36} parent=5 // pred_check
      %p427 = pneg %p426
    $region38: #{robust_encoder_forward.36} parent=5 // pred_check_branch
      %429 = sbr.rel (%p427) target = $region40
    $region39: #{robust_encoder_forward.36} parent=5 // pred_region
      %s430 = ssub.s32 %s9, 2
      // Predicated region
      $region41: #{robust_encoder_forward.36} parent=39 // pred_check
        %p431 = pneg %p106
      $region42: #{robust_encoder_forward.36} parent=39 // pred_check_branch
        %433 = sbr.rel (%p431) target = $region44
      $region43: #{robust_encoder_forward.36} parent=39 // pred_region
        %s434 = smul.u32 16, %s15
        %p435 = scmp.lt.s32.totalorder %s434, 63
        %s436 = scalar_select %p435, %s434, 63
        %s437 = smul.addr %s436, 8
        %s438 = scalar_lea.vmem %s3, %s437
      $region44: #{robust_encoder_forward.36} parent=39 // pred_fallthru
        _
    $region40: #{robust_encoder_forward.36} parent=5 // pred_fallthru
      _
  $region6: #{robust_encoder_forward.36} parent=0 // loop_footer
    %s13 = sadd.s32 1, %s9
  $region7: #{robust_encoder_forward.36} parent=0 // loop_footer_branch
    %8 = sbr.rel target = $region3
  $region8: #{robust_encoder_forward.36} parent=0 // loop_exit
    _

// kernel: robust_encoder_forward.38
$region0: #{robust_encoder_forward.38}
  #allocation0 [shape = 'u32[]', space=smem, size = 0x4, offset = 0x4, fixed_abs, tag = 'smem constant byte address 0x4 - core index']
  #allocation1 [shape = 'u32[144,128]{1,0:T(1,128)}', space=vmem, size = 0x12000, scoped, tag = 'internal scratch']
  %s0 = inlined_call_operand.vmem [shape: bf16[128,72], index: 0, kind: input, shape index: {}]
  %s1 = inlined_call_operand.vmem [shape: bf16[72,16], index: 1, kind: input, shape index: {}]
  %s2 = inlined_call_operand.vmem [shape: f32[1,16], index: 2, kind: input, shape index: {}]
  %s3 = inlined_call_operand.vmem [shape: f32[128,16], index: 3, kind: output, shape index: {}]
  %s4 = sld [smem:[#allocation0]]
  $region22: #{robust_encoder_forward.38} parent=0
    _
  %s6 = ssub.s32 1, %s4
  %s7 = scalar_select 0, %s6, %s4
  // Predicated region
  $region2: #{robust_encoder_forward.38} parent=0 // pred_check
    _
  $region3: #{robust_encoder_forward.38} parent=0 // pred_check_branch
    %9 = sbr.rel (0) target = $region5
  $region4: #{robust_encoder_forward.38} parent=0 // pred_region
    _
  $region5: #{robust_encoder_forward.38} parent=0 // pred_fallthru
    _
  // Predicated region
  $region6: #{robust_encoder_forward.38} parent=0 // pred_check
    _
  $region7: #{robust_encoder_forward.38} parent=0 // pred_check_branch
    %11 = sbr.rel (0) target = $region9
  $region8: #{robust_encoder_forward.38} parent=0 // pred_region
    _
  $region9: #{robust_encoder_forward.38} parent=0 // pred_fallthru
    _
  // Predicated region
  $region10: #{robust_encoder_forward.38} parent=0 // pred_check
    _
  $region11: #{robust_encoder_forward.38} parent=0 // pred_check_branch
    %13 = sbr.rel (0) target = $region13
  $region12: #{robust_encoder_forward.38} parent=0 // pred_region
    _
  $region13: #{robust_encoder_forward.38} parent=0 // pred_fallthru
    _
  %v15 = vld [vmem:[%s0] sm:$0xf]
  %v16 = vld [vmem:[%s0 + $0x4] sm:$0xf]
  %v17 = vld [vmem:[%s0 + $0x8] sm:$0xf]
  %v18 = vld [vmem:[%s0 + $0xc] sm:$0xf]
  %v19 = vld [vmem:[%s0 + $0x10] sm:$0xf]
  %v20 = vld [vmem:[%s0 + $0x14] sm:$0xf]
  %v21 = vld [vmem:[%s0 + $0x18] sm:$0xf]
  %v22 = vld [vmem:[%s0 + $0x1c] sm:$0xf]
  %v23 = vld [vmem:[%s0 + $0x20] sm:$0xf]
  %v24 = vld [vmem:[%s0 + $0x24] sm:$0xf]
  %v25 = vld [vmem:[%s0 + $0x28] sm:$0xf]
  %v26 = vld [vmem:[%s0 + $0x2c] sm:$0xf]
  %v27 = vld [vmem:[%s0 + $0x30] sm:$0xf]
  %v28 = vld [vmem:[%s0 + $0x34] sm:$0xf]
  %v29 = vld [vmem:[%s0 + $0x38] sm:$0xf]
  %v30 = vld [vmem:[%s0 + $0x3c] sm:$0xf]
  %v31 = vld [vmem:[%s1] sm:$0xf]
  %v32 = vld [vmem:[%s1 + $0x4] sm:$0xf]
  %v33 = vld [vmem:[%s1 + $0x8] sm:$0xf]
  %v34 = vld [vmem:[%s1 + $0xc] sm:$0xf]
  %v35 = vld [vmem:[%s1 + $0x10] sm:$0xf]
  %v36 = vld [vmem:[%s1 + $0x14] sm:$0xf]
  %v37 = vld [vmem:[%s1 + $0x18] sm:$0xf]
  %v38 = vld [vmem:[%s1 + $0x1c] sm:$0xf]
  %v39 = vld [vmem:[%s1 + $0x20] sm:$0xf]
  %v40 = vld [vmem:[%s2] sm:$0x1]
  %v42 = vlaneseq
  %v43 = vshrl.u32 %v42, 7
  %v44 = vsub.s32 0, %v43
  %v45 = vrot.slane %v40, %v44
  %v63 = vunpack.c.l.b16 %v15
  %v64 = vunpack.c.l.b16 %v16
  %v65 = vunpack.c.l.b16 %v17
  %v66 = vunpack.c.l.b16 %v18
  %v67 = vunpack.c.l.b16 %v19
  %v68 = vunpack.c.l.b16 %v20
  %v69 = vunpack.c.l.b16 %v21
  %v70 = vunpack.c.l.b16 %v22
  %v71 = vunpack.c.l.b16 %v23
  %v72 = vunpack.c.l.b16 %v24
  %v73 = vunpack.c.l.b16 %v25
  %v74 = vunpack.c.l.b16 %v26
  %v75 = vunpack.c.l.b16 %v27
  %v76 = vunpack.c.l.b16 %v28
  %v77 = vunpack.c.l.b16 %v29
  %v78 = vunpack.c.l.b16 %v30
  %v79 = vpack.c.b16 %v64, %v63
  %v80 = vpack.c.b16 %v66, %v65
  %v81 = vpack.c.b16 %v68, %v67
  %v82 = vpack.c.b16 %v70, %v69
  %v83 = vpack.c.b16 %v72, %v71
  %v84 = vpack.c.b16 %v74, %v73
  %v85 = vpack.c.b16 %v76, %v75
  %v86 = vpack.c.b16 %v78, %v77
  %v96 = vunpack.c.l.b16 %v31
  %v97 = vunpack.c.l.b16 %v32
  %v98 = vunpack.c.l.b16 %v33
  %v99 = vunpack.c.l.b16 %v34
  %v100 = vunpack.c.l.b16 %v35
  %v101 = vunpack.c.l.b16 %v36
  %v102 = vunpack.c.l.b16 %v37
  %v103 = vunpack.c.l.b16 %v38
  %v104 = vunpack.c.l.b16 %v39
  %v105 = vpack.c.b16 %v97, %v96
  %v106 = vpack.c.b16 %v99, %v98
  %v107 = vpack.c.b16 %v101, %v100
  %v108 = vpack.c.b16 %v103, %v102
  %v109 = vpack.c.b16 %v104, %v104
  %vm114 = vcmask 588800
  %v116 = vsel %vm114, %v79, 0
  %v119 = vsel %vm114, %v80, 0
  %v122 = vsel %vm114, %v81, 0
  %v125 = vsel %vm114, %v82, 0
  %v128 = vsel %vm114, %v83, 0
  %v131 = vsel %vm114, %v84, 0
  %v134 = vsel %vm114, %v85, 0
  %v137 = vsel %vm114, %v86, 0
  %vm139 = vcmask 1043456
  %v141 = vsel %vm139, %v109, 0
  %143 = vmatprep.subr.bf16.mxu0 0
  %144 = vmatpush1.bf16.msra.mxu0 %v105
  %145 = vmatprep.subr.bf16.mxu0 0
  %146 = vmatpush1.bf16.msra.mxu0 %v106
  %147 = vmatprep.subr.bf16.mxu0 0
  %148 = vmatpush1.bf16.msra.mxu0 %v107
  %149 = vmatprep.subr.bf16.mxu0 0
  %150 = vmatpush1.bf16.msra.mxu0 %v108
  %151 = vmatprep.subr.bf16.mxu0 0
  %152 = vmatpush1.bf16.msra.mxu0 %v141
  %153 = vmatprep.subr.bf16.mxu0 0
  %154 = vmatpush1.bf16.msra.mxu0 0
  %155 = vmatprep.subr.bf16.mxu0 0
  %156 = vmatpush1.bf16.msra.mxu0 0
  %157 = vmatprep.subr.bf16.mxu0 0
  %158 = vmatpush1.bf16.msra.mxu0 0
  %159 = vmatprep.subr.bf16.mxu0 0
  %160 = vmatpush1.bf16.msra.mxu0 0
  %161 = vmatprep.subr.bf16.mxu0 0
  %162 = vmatpush1.bf16.msra.mxu0 0
  %163 = vmatprep.subr.bf16.mxu0 0
  %164 = vmatpush1.bf16.msra.mxu0 0
  %165 = vmatprep.subr.bf16.mxu0 0
  %166 = vmatpush1.bf16.msra.mxu0 0
  %167 = vmatprep.subr.bf16.mxu0 0
  %168 = vmatpush1.bf16.msra.mxu0 0
  %169 = vmatprep.subr.bf16.mxu0 0
  %170 = vmatpush1.bf16.msra.mxu0 0
  %171 = vmatprep.subr.bf16.mxu0 0
  %172 = vmatpush1.bf16.msra.mxu0 0
  %173 = vmatprep.subr.bf16.mxu0 0
  %174 = vmatpush1.bf16.msra.mxu0 0
  %175 = vmatprep.mubr.bf16.mxu0 0
  %176 = vmatmul.mubr.bf16.gmra.mrb[0].mxu0 %v116
  %v177 = vpop.f32.mrb[0].mxu0
  %v178 = vadd.f32 %v45, %v177
  %v179 = vpop.f32.mrb[0].mxu0
  %v180 = vpop.f32.mrb[0].mxu0
  %v181 = vadd.f32 %v45, %v180
  %v182 = vpop.f32.mrb[0].mxu0
  %183 = vmatprep.mubr.bf16.mxu0 0
  %184 = vmatmul.mubr.bf16.gmra.mrb[0].mxu0 %v119
  %v185 = vpop.f32.mrb[0].mxu0
  %v186 = vadd.f32 %v45, %v185
  %v187 = vpop.f32.mrb[0].mxu0
  %v188 = vpop.f32.mrb[0].mxu0
  %v189 = vadd.f32 %v45, %v188
  %v190 = vpop.f32.mrb[0].mxu0
  %191 = vmatprep.mubr.bf16.mxu0 0
  %192 = vmatmul.mubr.bf16.gmra.mrb[0].mxu0 %v122
  %v193 = vpop.f32.mrb[0].mxu0
  %v194 = vadd.f32 %v45, %v193
  %v195 = vpop.f32.mrb[0].mxu0
  %v196 = vpop.f32.mrb[0].mxu0
  %v197 = vadd.f32 %v45, %v196
  %v198 = vpop.f32.mrb[0].mxu0
  %199 = vmatprep.mubr.bf16.mxu0 0
  %200 = vmatmul.mubr.bf16.gmra.mrb[0].mxu0 %v125
  %v201 = vpop.f32.mrb[0].mxu0
  %v202 = vadd.f32 %v45, %v201
  %v203 = vpop.f32.mrb[0].mxu0
  %v204 = vpop.f32.mrb[0].mxu0
  %v205 = vadd.f32 %v45, %v204
  %v206 = vpop.f32.mrb[0].mxu0
  %207 = vmatprep.mubr.bf16.mxu0 0
  %208 = vmatmul.mubr.bf16.gmra.mrb[0].mxu0 %v128
  %v209 = vpop.f32.mrb[0].mxu0
  %v210 = vadd.f32 %v45, %v209
  %v211 = vpop.f32.mrb[0].mxu0
  %v212 = vpop.f32.mrb[0].mxu0
  %v213 = vadd.f32 %v45, %v212
  %v214 = vpop.f32.mrb[0].mxu0
  %215 = vmatprep.mubr.bf16.mxu0 0
  %216 = vmatmul.mubr.bf16.gmra.mrb[0].mxu0 %v131
  %v217 = vpop.f32.mrb[0].mxu0
  %v218 = vadd.f32 %v45, %v217
  %v219 = vpop.f32.mrb[0].mxu0
  %v220 = vpop.f32.mrb[0].mxu0
  %v221 = vadd.f32 %v45, %v220
  %v222 = vpop.f32.mrb[0].mxu0
  %223 = vmatprep.mubr.bf16.mxu0 0
  %224 = vmatmul.mubr.bf16.gmra.mrb[0].mxu0 %v134
  %v225 = vpop.f32.mrb[0].mxu0
  %v226 = vadd.f32 %v45, %v225
  %v227 = vpop.f32.mrb[0].mxu0
  %v228 = vpop.f32.mrb[0].mxu0
  %v229 = vadd.f32 %v45, %v228
  %v230 = vpop.f32.mrb[0].mxu0
  %231 = vmatprep.mubr.bf16.mxu0 0
  %232 = vmatmul.mubr.bf16.gmra.mrb[0].mxu0 %v137
  %v233 = vpop.f32.mrb[0].mxu0
  %v234 = vadd.f32 %v45, %v233
  %v235 = vpop.f32.mrb[0].mxu0
  %v236 = vpop.f32.mrb[0].mxu0
  %v237 = vadd.f32 %v45, %v236
  %v238 = vpop.f32.mrb[0].mxu0
  %239 = vdwg.mxu0
  %v240 = vmax.f32 %v178, 0.0
  %v241 = vmax.f32 %v181, 0.0
  %v242 = vmax.f32 %v186, 0.0
  %v243 = vmax.f32 %v189, 0.0
  %v244 = vmax.f32 %v194, 0.0
  %v245 = vmax.f32 %v197, 0.0
  %v246 = vmax.f32 %v202, 0.0
  %v247 = vmax.f32 %v205, 0.0
  %v248 = vmax.f32 %v210, 0.0
  %v249 = vmax.f32 %v213, 0.0
  %v250 = vmax.f32 %v218, 0.0
  %v251 = vmax.f32 %v221, 0.0
  %v252 = vmax.f32 %v226, 0.0
  %v253 = vmax.f32 %v229, 0.0
  %v254 = vmax.f32 %v234, 0.0
  %v255 = vmax.f32 %v237, 0.0
  %vm256 = vcmask 130048
  %257 = vst.msk [vmem:[%s3] sm:$0xff] %vm256, %v240
  %258 = vst.msk [vmem:[%s3 + $0x8] sm:$0xff] %vm256, %v241
  %259 = vst.msk [vmem:[%s3 + $0x10] sm:$0xff] %vm256, %v242
  %260 = vst.msk [vmem:[%s3 + $0x18] sm:$0xff] %vm256, %v243
  %261 = vst.msk [vmem:[%s3 + $0x20] sm:$0xff] %vm256, %v244
  %262 = vst.msk [vmem:[%s3 + $0x28] sm:$0xff] %vm256, %v245
  %263 = vst.msk [vmem:[%s3 + $0x30] sm:$0xff] %vm256, %v246
  %264 = vst.msk [vmem:[%s3 + $0x38] sm:$0xff] %vm256, %v247
  %265 = vst.msk [vmem:[%s3 + $0x40] sm:$0xff] %vm256, %v248
  %266 = vst.msk [vmem:[%s3 + $0x48] sm:$0xff] %vm256, %v249
  %267 = vst.msk [vmem:[%s3 + $0x50] sm:$0xff] %vm256, %v250
  %268 = vst.msk [vmem:[%s3 + $0x58] sm:$0xff] %vm256, %v251
  %269 = vst.msk [vmem:[%s3 + $0x60] sm:$0xff] %vm256, %v252
  %270 = vst.msk [vmem:[%s3 + $0x68] sm:$0xff] %vm256, %v253
  %271 = vst.msk [vmem:[%s3 + $0x70] sm:$0xff] %vm256, %v254
  %272 = vst.msk [vmem:[%s3 + $0x78] sm:$0xff] %vm256, %v255
  // Predicated region
  $region14: #{robust_encoder_forward.38} parent=0 // pred_check
    _
  $region15: #{robust_encoder_forward.38} parent=0 // pred_check_branch
    %274 = sbr.rel (0) target = $region17
  $region16: #{robust_encoder_forward.38} parent=0 // pred_region
    _
  $region17: #{robust_encoder_forward.38} parent=0 // pred_fallthru
    _
  // Predicated region
  $region18: #{robust_encoder_forward.38} parent=0 // pred_check
    _
  $region19: #{robust_encoder_forward.38} parent=0 // pred_check_branch
    %276 = sbr.rel (0) target = $region21
  $region20: #{robust_encoder_forward.38} parent=0 // pred_region
    _
  $region21: #{robust_encoder_forward.38} parent=0 // pred_fallthru
    _

// kernel: robust_encoder_forward.39
$region0: #{robust_encoder_forward.39}
  #allocation0 [shape = 'u32[]', space=smem, size = 0x4, offset = 0x4, fixed_abs, tag = 'smem constant byte address 0x4 - core index']
  #allocation1 [shape = 'u32[144,128]{1,0:T(1,128)}', space=vmem, size = 0x12000, scoped, tag = 'internal scratch']
  %s0 = inlined_call_operand.vmem [shape: bf16[128,144], index: 0, kind: input, shape index: {}]
  %s1 = inlined_call_operand.vmem [shape: bf16[144,16], index: 1, kind: input, shape index: {}]
  %s2 = inlined_call_operand.vmem [shape: f32[1,16], index: 2, kind: input, shape index: {}]
  %s3 = inlined_call_operand.vmem [shape: f32[128,16], index: 3, kind: output, shape index: {}]
  %s4 = sld [smem:[#allocation0]]
  $region22: #{robust_encoder_forward.39} parent=0
    _
  %s6 = ssub.s32 1, %s4
  %s7 = scalar_select 0, %s6, %s4
  // Predicated region
  $region2: #{robust_encoder_forward.39} parent=0 // pred_check
    _
  $region3: #{robust_encoder_forward.39} parent=0 // pred_check_branch
    %9 = sbr.rel (0) target = $region5
  $region4: #{robust_encoder_forward.39} parent=0 // pred_region
    _
  $region5: #{robust_encoder_forward.39} parent=0 // pred_fallthru
    _
  // Predicated region
  $region6: #{robust_encoder_forward.39} parent=0 // pred_check
    _
  $region7: #{robust_encoder_forward.39} parent=0 // pred_check_branch
    %11 = sbr.rel (0) target = $region9
  $region8: #{robust_encoder_forward.39} parent=0 // pred_region
    _
  $region9: #{robust_encoder_forward.39} parent=0 // pred_fallthru
    _
  // Predicated region
  $region10: #{robust_encoder_forward.39} parent=0 // pred_check
    _
  $region11: #{robust_encoder_forward.39} parent=0 // pred_check_branch
    %13 = sbr.rel (0) target = $region13
  $region12: #{robust_encoder_forward.39} parent=0 // pred_region
    _
  $region13: #{robust_encoder_forward.39} parent=0 // pred_fallthru
    _
  %v15 = vld [vmem:[%s0] sm:$0xff]
  %v16 = vld [vmem:[%s0 + $0x8] sm:$0xff]
  %v17 = vld [vmem:[%s0 + $0x10] sm:$0xff]
  %v18 = vld [vmem:[%s0 + $0x18] sm:$0xff]
  %v19 = vld [vmem:[%s0 + $0x20] sm:$0xff]
  %v20 = vld [vmem:[%s0 + $0x28] sm:$0xff]
  %v21 = vld [vmem:[%s0 + $0x30] sm:$0xff]
  %v22 = vld [vmem:[%s0 + $0x38] sm:$0xff]
  %v23 = vld [vmem:[%s0 + $0x40] sm:$0xff]
  %v24 = vld [vmem:[%s0 + $0x48] sm:$0xff]
  %v25 = vld [vmem:[%s0 + $0x50] sm:$0xff]
  %v26 = vld [vmem:[%s0 + $0x58] sm:$0xff]
  %v27 = vld [vmem:[%s0 + $0x60] sm:$0xff]
  %v28 = vld [vmem:[%s0 + $0x68] sm:$0xff]
  %v29 = vld [vmem:[%s0 + $0x70] sm:$0xff]
  %v30 = vld [vmem:[%s0 + $0x78] sm:$0xff]
  %v31 = vld [vmem:[%s1] sm:$0xf]
  %v32 = vld [vmem:[%s1 + $0x4] sm:$0xf]
  %v33 = vld [vmem:[%s1 + $0x8] sm:$0xf]
  %v34 = vld [vmem:[%s1 + $0xc] sm:$0xf]
  %v35 = vld [vmem:[%s1 + $0x10] sm:$0xf]
  %v36 = vld [vmem:[%s1 + $0x14] sm:$0xf]
  %v37 = vld [vmem:[%s1 + $0x18] sm:$0xf]
  %v38 = vld [vmem:[%s1 + $0x1c] sm:$0xf]
  %v39 = vld [vmem:[%s1 + $0x20] sm:$0xf]
  %v40 = vld [vmem:[%s1 + $0x24] sm:$0xf]
  %v41 = vld [vmem:[%s1 + $0x28] sm:$0xf]
  %v42 = vld [vmem:[%s1 + $0x2c] sm:$0xf]
  %v43 = vld [vmem:[%s1 + $0x30] sm:$0xf]
  %v44 = vld [vmem:[%s1 + $0x34] sm:$0xf]
  %v45 = vld [vmem:[%s1 + $0x38] sm:$0xf]
  %v46 = vld [vmem:[%s1 + $0x3c] sm:$0xf]
  %v47 = vld [vmem:[%s1 + $0x40] sm:$0xf]
  %v48 = vld [vmem:[%s1 + $0x44] sm:$0xf]
  %v49 = vld [vmem:[%s2] sm:$0x1]
  %v51 = vlaneseq
  %v52 = vshrl.u32 %v51, 7
  %v53 = vsub.s32 0, %v52
  %v54 = vrot.slane %v49, %v53
  %v72 = vunpack.c.l.b16 %v15
  %v73 = vunpack.c.h.b16 %v15
  %v74 = vunpack.c.l.b16 %v16
  %v75 = vunpack.c.h.b16 %v16
  %v76 = vunpack.c.l.b16 %v17
  %v77 = vunpack.c.h.b16 %v17
  %v78 = vunpack.c.l.b16 %v18
  %v79 = vunpack.c.h.b16 %v18
  %v80 = vunpack.c.l.b16 %v19
  %v81 = vunpack.c.h.b16 %v19
  %v82 = vunpack.c.l.b16 %v20
  %v83 = vunpack.c.h.b16 %v20
  %v84 = vunpack.c.l.b16 %v21
  %v85 = vunpack.c.h.b16 %v21
  %v86 = vunpack.c.l.b16 %v22
  %v87 = vunpack.c.h.b16 %v22
  %v88 = vunpack.c.l.b16 %v23
  %v89 = vunpack.c.h.b16 %v23
  %v90 = vunpack.c.l.b16 %v24
  %v91 = vunpack.c.h.b16 %v24
  %v92 = vunpack.c.l.b16 %v25
  %v93 = vunpack.c.h.b16 %v25
  %v94 = vunpack.c.l.b16 %v26
  %v95 = vunpack.c.h.b16 %v26
  %v96 = vunpack.c.l.b16 %v27
  %v97 = vunpack.c.h.b16 %v27
  %v98 = vunpack.c.l.b16 %v28
  %v99 = vunpack.c.h.b16 %v28
  %v100 = vunpack.c.l.b16 %v29
  %v101 = vunpack.c.h.b16 %v29
  %v102 = vunpack.c.l.b16 %v30
  %v103 = vunpack.c.h.b16 %v30
  %v104 = vpack.c.b16 %v74, %v72
  %v105 = vpack.c.b16 %v75, %v73
  %v106 = vpack.c.b16 %v78, %v76
  %v107 = vpack.c.b16 %v79, %v77
  %v108 = vpack.c.b16 %v82, %v80
  %v109 = vpack.c.b16 %v83, %v81
  %v110 = vpack.c.b16 %v86, %v84
  %v111 = vpack.c.b16 %v87, %v85
  %v112 = vpack.c.b16 %v90, %v88
  %v113 = vpack.c.b16 %v91, %v89
  %v114 = vpack.c.b16 %v94, %v92
  %v115 = vpack.c.b16 %v95, %v93
  %v116 = vpack.c.b16 %v98, %v96
  %v117 = vpack.c.b16 %v99, %v97
  %v118 = vpack.c.b16 %v102, %v100
  %v119 = vpack.c.b16 %v103, %v101
  %v146 = vunpack.c.l.b16 %v31
  %v147 = vunpack.c.l.b16 %v32
  %v148 = vunpack.c.l.b16 %v33
  %v149 = vunpack.c.l.b16 %v34
  %v150 = vunpack.c.l.b16 %v35
  %v151 = vunpack.c.l.b16 %v36
  %v152 = vunpack.c.l.b16 %v37
  %v153 = vunpack.c.l.b16 %v38
  %v154 = vunpack.c.l.b16 %v39
  %v155 = vunpack.c.l.b16 %v40
  %v156 = vunpack.c.l.b16 %v41
  %v157 = vunpack.c.l.b16 %v42
  %v158 = vunpack.c.l.b16 %v43
  %v159 = vunpack.c.l.b16 %v44
  %v160 = vunpack.c.l.b16 %v45
  %v161 = vunpack.c.l.b16 %v46
  %v162 = vunpack.c.l.b16 %v47
  %v163 = vunpack.c.l.b16 %v48
  %v164 = vpack.c.b16 %v147, %v146
  %v165 = vpack.c.b16 %v149, %v148
  %v166 = vpack.c.b16 %v151, %v150
  %v167 = vpack.c.b16 %v153, %v152
  %v168 = vpack.c.b16 %v155, %v154
  %v169 = vpack.c.b16 %v157, %v156
  %v170 = vpack.c.b16 %v159, %v158
  %v171 = vpack.c.b16 %v161, %v160
  %v172 = vpack.c.b16 %v163, %v162
  %vm182 = vcmask 130048
  %v184 = vsel %vm182, %v105, 0
  %v187 = vsel %vm182, %v107, 0
  %v190 = vsel %vm182, %v109, 0
  %v193 = vsel %vm182, %v111, 0
  %v196 = vsel %vm182, %v113, 0
  %v199 = vsel %vm182, %v115, 0
  %v202 = vsel %vm182, %v117, 0
  %v205 = vsel %vm182, %v119, 0
  %207 = vmatprep.subr.bf16.mxu0 0
  %208 = vmatpush1.bf16.msra.mxu0 %v164
  %209 = vmatprep.subr.bf16.mxu0 0
  %210 = vmatpush1.bf16.msra.mxu0 %v165
  %211 = vmatprep.subr.bf16.mxu0 0
  %212 = vmatpush1.bf16.msra.mxu0 %v166
  %213 = vmatprep.subr.bf16.mxu0 0
  %214 = vmatpush1.bf16.msra.mxu0 %v167
  %215 = vmatprep.subr.bf16.mxu0 0
  %216 = vmatpush1.bf16.msra.mxu0 %v168
  %217 = vmatprep.subr.bf16.mxu0 0
  %218 = vmatpush1.bf16.msra.mxu0 %v169
  %219 = vmatprep.subr.bf16.mxu0 0
  %220 = vmatpush1.bf16.msra.mxu0 %v170
  %221 = vmatprep.subr.bf16.mxu0 0
  %222 = vmatpush1.bf16.msra.mxu0 %v171
  %223 = vmatprep.subr.bf16.mxu0 0
  %224 = vmatpush1.bf16.msra.mxu0 %v172
  %225 = vmatprep.subr.bf16.mxu0 0
  %226 = vmatpush1.bf16.msra.mxu0 0
  %227 = vmatprep.subr.bf16.mxu0 0
  %228 = vmatpush1.bf16.msra.mxu0 0
  %229 = vmatprep.subr.bf16.mxu0 0
  %230 = vmatpush1.bf16.msra.mxu0 0
  %231 = vmatprep.subr.bf16.mxu0 0
  %232 = vmatpush1.bf16.msra.mxu0 0
  %233 = vmatprep.subr.bf16.mxu0 0
  %234 = vmatpush1.bf16.msra.mxu0 0
  %235 = vmatprep.subr.bf16.mxu0 0
  %236 = vmatpush1.bf16.msra.mxu0 0
  %237 = vmatprep.subr.bf16.mxu0 0
  %238 = vmatpush1.bf16.msra.mxu0 0
  %239 = vmatprep.mubr.bf16.mxu0 %v184
  %240 = vmatmul.mubr.bf16.gmra.mrb[0].mxu0 %v104
  %v241 = vpop.f32.mrb[0].mxu0
  %v242 = vadd.f32 %v54, %v241
  %v243 = vpop.f32.mrb[0].mxu0
  %v244 = vpop.f32.mrb[0].mxu0
  %v245 = vadd.f32 %v54, %v244
  %v246 = vpop.f32.mrb[0].mxu0
  %247 = vmatprep.mubr.bf16.mxu0 %v187
  %248 = vmatmul.mubr.bf16.gmra.mrb[0].mxu0 %v106
  %v249 = vpop.f32.mrb[0].mxu0
  %v250 = vadd.f32 %v54, %v249
  %v251 = vpop.f32.mrb[0].mxu0
  %v252 = vpop.f32.mrb[0].mxu0
  %v253 = vadd.f32 %v54, %v252
  %v254 = vpop.f32.mrb[0].mxu0
  %255 = vmatprep.mubr.bf16.mxu0 %v190
  %256 = vmatmul.mubr.bf16.gmra.mrb[0].mxu0 %v108
  %v257 = vpop.f32.mrb[0].mxu0
  %v258 = vadd.f32 %v54, %v257
  %v259 = vpop.f32.mrb[0].mxu0
  %v260 = vpop.f32.mrb[0].mxu0
  %v261 = vadd.f32 %v54, %v260
  %v262 = vpop.f32.mrb[0].mxu0
  %263 = vmatprep.mubr.bf16.mxu0 %v193
  %264 = vmatmul.mubr.bf16.gmra.mrb[0].mxu0 %v110
  %v265 = vpop.f32.mrb[0].mxu0
  %v266 = vadd.f32 %v54, %v265
  %v267 = vpop.f32.mrb[0].mxu0
  %v268 = vpop.f32.mrb[0].mxu0
  %v269 = vadd.f32 %v54, %v268
  %v270 = vpop.f32.mrb[0].mxu0
  %271 = vmatprep.mubr.bf16.mxu0 %v196
  %272 = vmatmul.mubr.bf16.gmra.mrb[0].mxu0 %v112
  %v273 = vpop.f32.mrb[0].mxu0
  %v274 = vadd.f32 %v54, %v273
  %v275 = vpop.f32.mrb[0].mxu0
  %v276 = vpop.f32.mrb[0].mxu0
  %v277 = vadd.f32 %v54, %v276
  %v278 = vpop.f32.mrb[0].mxu0
  %279 = vmatprep.mubr.bf16.mxu0 %v199
  %280 = vmatmul.mubr.bf16.gmra.mrb[0].mxu0 %v114
  %v281 = vpop.f32.mrb[0].mxu0
  %v282 = vadd.f32 %v54, %v281
  %v283 = vpop.f32.mrb[0].mxu0
  %v284 = vpop.f32.mrb[0].mxu0
  %v285 = vadd.f32 %v54, %v284
  %v286 = vpop.f32.mrb[0].mxu0
  %287 = vmatprep.mubr.bf16.mxu0 %v202
  %288 = vmatmul.mubr.bf16.gmra.mrb[0].mxu0 %v116
  %v289 = vpop.f32.mrb[0].mxu0
  %v290 = vadd.f32 %v54, %v289
  %v291 = vpop.f32.mrb[0].mxu0
  %v292 = vpop.f32.mrb[0].mxu0
  %v293 = vadd.f32 %v54, %v292
  %v294 = vpop.f32.mrb[0].mxu0
  %295 = vmatprep.mubr.bf16.mxu0 %v205
  %296 = vmatmul.mubr.bf16.gmra.mrb[0].mxu0 %v118
  %v297 = vpop.f32.mrb[0].mxu0
  %v298 = vadd.f32 %v54, %v297
  %v299 = vpop.f32.mrb[0].mxu0
  %v300 = vpop.f32.mrb[0].mxu0
  %v301 = vadd.f32 %v54, %v300
  %v302 = vpop.f32.mrb[0].mxu0
  %303 = vdwg.mxu0
  %304 = vst.msk [vmem:[%s3] sm:$0xff] %vm182, %v242
  %305 = vst.msk [vmem:[%s3 + $0x8] sm:$0xff] %vm182, %v245
  %306 = vst.msk [vmem:[%s3 + $0x10] sm:$0xff] %vm182, %v250
  %307 = vst.msk [vmem:[%s3 + $0x18] sm:$0xff] %vm182, %v253
  %308 = vst.msk [vmem:[%s3 + $0x20] sm:$0xff] %vm182, %v258
  %309 = vst.msk [vmem:[%s3 + $0x28] sm:$0xff] %vm182, %v261
  %310 = vst.msk [vmem:[%s3 + $0x30] sm:$0xff] %vm182, %v266
  %311 = vst.msk [vmem:[%s3 + $0x38] sm:$0xff] %vm182, %v269
  %312 = vst.msk [vmem:[%s3 + $0x40] sm:$0xff] %vm182, %v274
  %313 = vst.msk [vmem:[%s3 + $0x48] sm:$0xff] %vm182, %v277
  %314 = vst.msk [vmem:[%s3 + $0x50] sm:$0xff] %vm182, %v282
  %315 = vst.msk [vmem:[%s3 + $0x58] sm:$0xff] %vm182, %v285
  %316 = vst.msk [vmem:[%s3 + $0x60] sm:$0xff] %vm182, %v290
  %317 = vst.msk [vmem:[%s3 + $0x68] sm:$0xff] %vm182, %v293
  %318 = vst.msk [vmem:[%s3 + $0x70] sm:$0xff] %vm182, %v298
  %319 = vst.msk [vmem:[%s3 + $0x78] sm:$0xff] %vm182, %v301
  // Predicated region
  $region14: #{robust_encoder_forward.39} parent=0 // pred_check
    _
  $region15: #{robust_encoder_forward.39} parent=0 // pred_check_branch
    %321 = sbr.rel (0) target = $region17
  $region16: #{robust_encoder_forward.39} parent=0 // pred_region
    _
  $region17: #{robust_encoder_forward.39} parent=0 // pred_fallthru
    _
  // Predicated region
  $region18: #{robust_encoder_forward.39} parent=0 // pred_check
    _
  $region19: #{robust_encoder_forward.39} parent=0 // pred_check_branch
    %323 = sbr.rel (0) target = $region21
  $region20: #{robust_encoder_forward.39} parent=0 // pred_region
    _
  $region21: #{robust_encoder_forward.39} parent=0 // pred_fallthru
    _

// kernel: robust_encoder_forward.40
$region0: #{robust_encoder_forward.40}
  #allocation0 [shape = 'u32[]', space=smem, size = 0x4, offset = 0x4, fixed_abs, tag = 'smem constant byte address 0x4 - core index']
  #allocation1 [shape = 'u32[144,128]{1,0:T(1,128)}', space=vmem, size = 0x12000, scoped, tag = 'internal scratch']
  %s0 = inlined_call_operand.vmem [shape: bf16[128,98], index: 0, kind: input, shape index: {}]
  %s1 = inlined_call_operand.vmem [shape: f32[1,98], index: 1, kind: input, shape index: {}]
  %s2 = inlined_call_operand.vmem [shape: f32[128,16], index: 2, kind: input, shape index: {}]
  %s3 = inlined_call_operand.vmem [shape: f32[128,16], index: 3, kind: input, shape index: {}]
  %s4 = inlined_call_operand.vmem [shape: f32[128,16], index: 4, kind: output, shape index: {}]
  %s5 = sld [smem:[#allocation0]]
  $region26: #{robust_encoder_forward.40} parent=0
    _
  %s7 = ssub.s32 1, %s5
  %s8 = scalar_select 0, %s7, %s5
  // Predicated region
  $region2: #{robust_encoder_forward.40} parent=0 // pred_check
    _
  $region3: #{robust_encoder_forward.40} parent=0 // pred_check_branch
    %10 = sbr.rel (0) target = $region5
  $region4: #{robust_encoder_forward.40} parent=0 // pred_region
    _
  $region5: #{robust_encoder_forward.40} parent=0 // pred_fallthru
    _
  // Predicated region
  $region6: #{robust_encoder_forward.40} parent=0 // pred_check
    _
  $region7: #{robust_encoder_forward.40} parent=0 // pred_check_branch
    %12 = sbr.rel (0) target = $region9
  $region8: #{robust_encoder_forward.40} parent=0 // pred_region
    _
  $region9: #{robust_encoder_forward.40} parent=0 // pred_fallthru
    _
  // Predicated region
  $region10: #{robust_encoder_forward.40} parent=0 // pred_check
    _
  $region11: #{robust_encoder_forward.40} parent=0 // pred_check_branch
    %14 = sbr.rel (0) target = $region13
  $region12: #{robust_encoder_forward.40} parent=0 // pred_region
    _
  $region13: #{robust_encoder_forward.40} parent=0 // pred_fallthru
    _
  // Predicated region
  $region14: #{robust_encoder_forward.40} parent=0 // pred_check
    _
  $region15: #{robust_encoder_forward.40} parent=0 // pred_check_branch
    %16 = sbr.rel (0) target = $region17
  $region16: #{robust_encoder_forward.40} parent=0 // pred_region
    _
  $region17: #{robust_encoder_forward.40} parent=0 // pred_fallthru
    _
  %v17 = vld [vmem:[%s0] sm:$0xf]
  %v18 = vld [vmem:[%s0 + $0x4] sm:$0xf]
  %v19 = vld [vmem:[%s0 + $0x8] sm:$0xf]
  %v20 = vld [vmem:[%s0 + $0xc] sm:$0xf]
  %v21 = vld [vmem:[%s0 + $0x10] sm:$0xf]
  %v22 = vld [vmem:[%s0 + $0x14] sm:$0xf]
  %v23 = vld [vmem:[%s0 + $0x18] sm:$0xf]
  %v24 = vld [vmem:[%s0 + $0x1c] sm:$0xf]
  %v25 = vld [vmem:[%s0 + $0x20] sm:$0xf]
  %v26 = vld [vmem:[%s0 + $0x24] sm:$0xf]
  %v27 = vld [vmem:[%s0 + $0x28] sm:$0xf]
  %v28 = vld [vmem:[%s0 + $0x2c] sm:$0xf]
  %v29 = vld [vmem:[%s0 + $0x30] sm:$0xf]
  %v30 = vld [vmem:[%s0 + $0x34] sm:$0xf]
  %v31 = vld [vmem:[%s0 + $0x38] sm:$0xf]
  %v32 = vld [vmem:[%s0 + $0x3c] sm:$0xf]
  %v33 = vunpack.c.l.bf16 %v17
  %v34 = vunpack.c.l.bf16 %v18
  %v35 = vunpack.c.l.bf16 %v19
  %v36 = vunpack.c.l.bf16 %v20
  %v37 = vunpack.c.l.bf16 %v21
  %v38 = vunpack.c.l.bf16 %v22
  %v39 = vunpack.c.l.bf16 %v23
  %v40 = vunpack.c.l.bf16 %v24
  %v41 = vunpack.c.l.bf16 %v25
  %v42 = vunpack.c.l.bf16 %v26
  %v43 = vunpack.c.l.bf16 %v27
  %v44 = vunpack.c.l.bf16 %v28
  %v45 = vunpack.c.l.bf16 %v29
  %v46 = vunpack.c.l.bf16 %v30
  %v47 = vunpack.c.l.bf16 %v31
  %v48 = vunpack.c.l.bf16 %v32
  %v49 = vld [vmem:[%s1] sm:$0x1]
  %v51 = vlaneseq
  %v52 = vshrl.u32 %v51, 7
  %v53 = vsub.s32 0, %v52
  %v54 = vrot.slane %v49, %v53
  %v56 = vmul.f32 %v33, %v54
  %v57 = vmul.f32 %v34, %v54
  %v58 = vmul.f32 %v35, %v54
  %v59 = vmul.f32 %v36, %v54
  %v60 = vmul.f32 %v37, %v54
  %v61 = vmul.f32 %v38, %v54
  %v62 = vmul.f32 %v39, %v54
  %v63 = vmul.f32 %v40, %v54
  %v64 = vmul.f32 %v41, %v54
  %v65 = vmul.f32 %v42, %v54
  %v66 = vmul.f32 %v43, %v54
  %v67 = vmul.f32 %v44, %v54
  %v68 = vmul.f32 %v45, %v54
  %v69 = vmul.f32 %v46, %v54
  %v70 = vmul.f32 %v47, %v54
  %v71 = vmul.f32 %v48, %v54
  %vm72 = vcmask 801792
  %v73 = vsel %vm72, %v56, 0.0
  %74 = vadd.xlane.f32.xlu0 %v73
  %v75 = vpop.xlane.xlu0 %74
  %v76 = vsel %vm72, %v57, 0.0
  %77 = vadd.xlane.f32.xlu0 %v76
  %v78 = vpop.xlane.xlu0 %77
  %v79 = vsel %vm72, %v58, 0.0
  %80 = vadd.xlane.f32.xlu0 %v79
  %v81 = vpop.xlane.xlu0 %80
  %v82 = vsel %vm72, %v59, 0.0
  %83 = vadd.xlane.f32.xlu0 %v82
  %v84 = vpop.xlane.xlu0 %83
  %v85 = vsel %vm72, %v60, 0.0
  %86 = vadd.xlane.f32.xlu0 %v85
  %v87 = vpop.xlane.xlu0 %86
  %v88 = vsel %vm72, %v61, 0.0
  %89 = vadd.xlane.f32.xlu0 %v88
  %v90 = vpop.xlane.xlu0 %89
  %v91 = vsel %vm72, %v62, 0.0
  %92 = vadd.xlane.f32.xlu0 %v91
  %v93 = vpop.xlane.xlu0 %92
  %v94 = vsel %vm72, %v63, 0.0
  %95 = vadd.xlane.f32.xlu0 %v94
  %v96 = vpop.xlane.xlu0 %95
  %v97 = vsel %vm72, %v64, 0.0
  %98 = vadd.xlane.f32.xlu0 %v97
  %v99 = vpop.xlane.xlu0 %98
  %v100 = vsel %vm72, %v65, 0.0
  %101 = vadd.xlane.f32.xlu0 %v100
  %v102 = vpop.xlane.xlu0 %101
  %v103 = vsel %vm72, %v66, 0.0
  %104 = vadd.xlane.f32.xlu0 %v103
  %v105 = vpop.xlane.xlu0 %104
  %v106 = vsel %vm72, %v67, 0.0
  %107 = vadd.xlane.f32.xlu0 %v106
  %v108 = vpop.xlane.xlu0 %107
  %v109 = vsel %vm72, %v68, 0.0
  %110 = vadd.xlane.f32.xlu0 %v109
  %v111 = vpop.xlane.xlu0 %110
  %v112 = vsel %vm72, %v69, 0.0
  %113 = vadd.xlane.f32.xlu0 %v112
  %v114 = vpop.xlane.xlu0 %113
  %v115 = vsel %vm72, %v70, 0.0
  %116 = vadd.xlane.f32.xlu0 %v115
  %v117 = vpop.xlane.xlu0 %116
  %v118 = vsel %vm72, %v71, 0.0
  %119 = vadd.xlane.f32.xlu0 %v118
  %v120 = vpop.xlane.xlu0 %119
  %v121 = vxor.u32 %v75, 2147483648
  %v122 = vxor.u32 %v78, 2147483648
  %v123 = vxor.u32 %v81, 2147483648
  %v124 = vxor.u32 %v84, 2147483648
  %v125 = vxor.u32 %v87, 2147483648
  %v126 = vxor.u32 %v90, 2147483648
  %v127 = vxor.u32 %v93, 2147483648
  %v128 = vxor.u32 %v96, 2147483648
  %v129 = vxor.u32 %v99, 2147483648
  %v130 = vxor.u32 %v102, 2147483648
  %v131 = vxor.u32 %v105, 2147483648
  %v132 = vxor.u32 %v108, 2147483648
  %v133 = vxor.u32 %v111, 2147483648
  %v134 = vxor.u32 %v114, 2147483648
  %v135 = vxor.u32 %v117, 2147483648
  %v136 = vxor.u32 %v120, 2147483648
  %v137 = vmul.f32 %v121, 1.442695
  %v138 = vpow.pop %v137
  %v139 = vmul.f32 %v122, 1.442695
  %v140 = vpow.pop %v139
  %v141 = vmul.f32 %v123, 1.442695
  %v142 = vpow.pop %v141
  %v143 = vmul.f32 %v124, 1.442695
  %v144 = vpow.pop %v143
  %v145 = vmul.f32 %v125, 1.442695
  %v146 = vpow.pop %v145
  %v147 = vmul.f32 %v126, 1.442695
  %v148 = vpow.pop %v147
  %v149 = vmul.f32 %v127, 1.442695
  %v150 = vpow.pop %v149
  %v151 = vmul.f32 %v128, 1.442695
  %v152 = vpow.pop %v151
  %v153 = vmul.f32 %v129, 1.442695
  %v154 = vpow.pop %v153
  %v155 = vmul.f32 %v130, 1.442695
  %v156 = vpow.pop %v155
  %v157 = vmul.f32 %v131, 1.442695
  %v158 = vpow.pop %v157
  %v159 = vmul.f32 %v132, 1.442695
  %v160 = vpow.pop %v159
  %v161 = vmul.f32 %v133, 1.442695
  %v162 = vpow.pop %v161
  %v163 = vmul.f32 %v134, 1.442695
  %v164 = vpow.pop %v163
  %v165 = vmul.f32 %v135, 1.442695
  %v166 = vpow.pop %v165
  %v167 = vmul.f32 %v136, 1.442695
  %v168 = vpow.pop %v167
  %v169 = vadd.f32 %v138, 1.0
  %v170 = vadd.f32 %v140, 1.0
  %v171 = vadd.f32 %v142, 1.0
  %v172 = vadd.f32 %v144, 1.0
  %v173 = vadd.f32 %v146, 1.0
  %v174 = vadd.f32 %v148, 1.0
  %v175 = vadd.f32 %v150, 1.0
  %v176 = vadd.f32 %v152, 1.0
  %v177 = vadd.f32 %v154, 1.0
  %v178 = vadd.f32 %v156, 1.0
  %v179 = vadd.f32 %v158, 1.0
  %v180 = vadd.f32 %v160, 1.0
  %v181 = vadd.f32 %v162, 1.0
  %v182 = vadd.f32 %v164, 1.0
  %v183 = vadd.f32 %v166, 1.0
  %v184 = vadd.f32 %v168, 1.0
  %v185 = vrcp.pop %v169
  %v186 = vmul.f32 1.0, %v185
  %v187 = vrcp.pop %v170
  %v188 = vmul.f32 1.0, %v187
  %v189 = vrcp.pop %v171
  %v190 = vmul.f32 1.0, %v189
  %v191 = vrcp.pop %v172
  %v192 = vmul.f32 1.0, %v191
  %v193 = vrcp.pop %v173
  %v194 = vmul.f32 1.0, %v193
  %v195 = vrcp.pop %v174
  %v196 = vmul.f32 1.0, %v195
  %v197 = vrcp.pop %v175
  %v198 = vmul.f32 1.0, %v197
  %v199 = vrcp.pop %v176
  %v200 = vmul.f32 1.0, %v199
  %v201 = vrcp.pop %v177
  %v202 = vmul.f32 1.0, %v201
  %v203 = vrcp.pop %v178
  %v204 = vmul.f32 1.0, %v203
  %v205 = vrcp.pop %v179
  %v206 = vmul.f32 1.0, %v205
  %v207 = vrcp.pop %v180
  %v208 = vmul.f32 1.0, %v207
  %v209 = vrcp.pop %v181
  %v210 = vmul.f32 1.0, %v209
  %v211 = vrcp.pop %v182
  %v212 = vmul.f32 1.0, %v211
  %v213 = vrcp.pop %v183
  %v214 = vmul.f32 1.0, %v213
  %v215 = vrcp.pop %v184
  %v216 = vmul.f32 1.0, %v215
  %v217 = vld [vmem:[%s2] sm:$0xff]
  %v218 = vld [vmem:[%s2 + $0x8] sm:$0xff]
  %v219 = vld [vmem:[%s2 + $0x10] sm:$0xff]
  %v220 = vld [vmem:[%s2 + $0x18] sm:$0xff]
  %v221 = vld [vmem:[%s2 + $0x20] sm:$0xff]
  %v222 = vld [vmem:[%s2 + $0x28] sm:$0xff]
  %v223 = vld [vmem:[%s2 + $0x30] sm:$0xff]
  %v224 = vld [vmem:[%s2 + $0x38] sm:$0xff]
  %v225 = vld [vmem:[%s2 + $0x40] sm:$0xff]
  %v226 = vld [vmem:[%s2 + $0x48] sm:$0xff]
  %v227 = vld [vmem:[%s2 + $0x50] sm:$0xff]
  %v228 = vld [vmem:[%s2 + $0x58] sm:$0xff]
  %v229 = vld [vmem:[%s2 + $0x60] sm:$0xff]
  %v230 = vld [vmem:[%s2 + $0x68] sm:$0xff]
  %v231 = vld [vmem:[%s2 + $0x70] sm:$0xff]
  %v232 = vld [vmem:[%s2 + $0x78] sm:$0xff]
  %v233 = vmul.f32 %v217, %v186
  %v234 = vmul.f32 %v218, %v188
  %v235 = vmul.f32 %v219, %v190
  %v236 = vmul.f32 %v220, %v192
  %v237 = vmul.f32 %v221, %v194
  %v238 = vmul.f32 %v222, %v196
  %v239 = vmul.f32 %v223, %v198
  %v240 = vmul.f32 %v224, %v200
  %v241 = vmul.f32 %v225, %v202
  %v242 = vmul.f32 %v226, %v204
  %v243 = vmul.f32 %v227, %v206
  %v244 = vmul.f32 %v228, %v208
  %v245 = vmul.f32 %v229, %v210
  %v246 = vmul.f32 %v230, %v212
  %v247 = vmul.f32 %v231, %v214
  %v248 = vmul.f32 %v232, %v216
  %v249 = vld [vmem:[%s3] sm:$0xff]
  %v250 = vld [vmem:[%s3 + $0x8] sm:$0xff]
  %v251 = vld [vmem:[%s3 + $0x10] sm:$0xff]
  %v252 = vld [vmem:[%s3 + $0x18] sm:$0xff]
  %v253 = vld [vmem:[%s3 + $0x20] sm:$0xff]
  %v254 = vld [vmem:[%s3 + $0x28] sm:$0xff]
  %v255 = vld [vmem:[%s3 + $0x30] sm:$0xff]
  %v256 = vld [vmem:[%s3 + $0x38] sm:$0xff]
  %v257 = vld [vmem:[%s3 + $0x40] sm:$0xff]
  %v258 = vld [vmem:[%s3 + $0x48] sm:$0xff]
  %v259 = vld [vmem:[%s3 + $0x50] sm:$0xff]
  %v260 = vld [vmem:[%s3 + $0x58] sm:$0xff]
  %v261 = vld [vmem:[%s3 + $0x60] sm:$0xff]
  %v262 = vld [vmem:[%s3 + $0x68] sm:$0xff]
  %v263 = vld [vmem:[%s3 + $0x70] sm:$0xff]
  %v264 = vld [vmem:[%s3 + $0x78] sm:$0xff]
  %v265 = vadd.f32 %v233, %v249
  %v266 = vadd.f32 %v234, %v250
  %v267 = vadd.f32 %v235, %v251
  %v268 = vadd.f32 %v236, %v252
  %v269 = vadd.f32 %v237, %v253
  %v270 = vadd.f32 %v238, %v254
  %v271 = vadd.f32 %v239, %v255
  %v272 = vadd.f32 %v240, %v256
  %v273 = vadd.f32 %v241, %v257
  %v274 = vadd.f32 %v242, %v258
  %v275 = vadd.f32 %v243, %v259
  %v276 = vadd.f32 %v244, %v260
  %v277 = vadd.f32 %v245, %v261
  %v278 = vadd.f32 %v246, %v262
  %v279 = vadd.f32 %v247, %v263
  %v280 = vadd.f32 %v248, %v264
  %v281 = vmax.f32 %v265, 0.0
  %v282 = vmax.f32 %v266, 0.0
  %v283 = vmax.f32 %v267, 0.0
  %v284 = vmax.f32 %v268, 0.0
  %v285 = vmax.f32 %v269, 0.0
  %v286 = vmax.f32 %v270, 0.0
  %v287 = vmax.f32 %v271, 0.0
  %v288 = vmax.f32 %v272, 0.0
  %v289 = vmax.f32 %v273, 0.0
  %v290 = vmax.f32 %v274, 0.0
  %v291 = vmax.f32 %v275, 0.0
  %v292 = vmax.f32 %v276, 0.0
  %v293 = vmax.f32 %v277, 0.0
  %v294 = vmax.f32 %v278, 0.0
  %v295 = vmax.f32 %v279, 0.0
  %v296 = vmax.f32 %v280, 0.0
  %vm297 = vcmask 130048
  %298 = vst.msk [vmem:[%s4] sm:$0xff] %vm297, %v281
  %299 = vst.msk [vmem:[%s4 + $0x8] sm:$0xff] %vm297, %v282
  %300 = vst.msk [vmem:[%s4 + $0x10] sm:$0xff] %vm297, %v283
  %301 = vst.msk [vmem:[%s4 + $0x18] sm:$0xff] %vm297, %v284
  %302 = vst.msk [vmem:[%s4 + $0x20] sm:$0xff] %vm297, %v285
  %303 = vst.msk [vmem:[%s4 + $0x28] sm:$0xff] %vm297, %v286
  %304 = vst.msk [vmem:[%s4 + $0x30] sm:$0xff] %vm297, %v287
  %305 = vst.msk [vmem:[%s4 + $0x38] sm:$0xff] %vm297, %v288
  %306 = vst.msk [vmem:[%s4 + $0x40] sm:$0xff] %vm297, %v289
  %307 = vst.msk [vmem:[%s4 + $0x48] sm:$0xff] %vm297, %v290
  %308 = vst.msk [vmem:[%s4 + $0x50] sm:$0xff] %vm297, %v291
  %309 = vst.msk [vmem:[%s4 + $0x58] sm:$0xff] %vm297, %v292
  %310 = vst.msk [vmem:[%s4 + $0x60] sm:$0xff] %vm297, %v293
  %311 = vst.msk [vmem:[%s4 + $0x68] sm:$0xff] %vm297, %v294
  %312 = vst.msk [vmem:[%s4 + $0x70] sm:$0xff] %vm297, %v295
  %313 = vst.msk [vmem:[%s4 + $0x78] sm:$0xff] %vm297, %v296
  // Predicated region
  $region18: #{robust_encoder_forward.40} parent=0 // pred_check
    _
  $region19: #{robust_encoder_forward.40} parent=0 // pred_check_branch
    %315 = sbr.rel (0) target = $region21
  $region20: #{robust_encoder_forward.40} parent=0 // pred_region
    _
  $region21: #{robust_encoder_forward.40} parent=0 // pred_fallthru
    _
  // Predicated region
  $region22: #{robust_encoder_forward.40} parent=0 // pred_check
    _
  $region23: #{robust_encoder_forward.40} parent=0 // pred_check_branch
    %317 = sbr.rel (0) target = $region25
  $region24: #{robust_encoder_forward.40} parent=0 // pred_region
    _
  $region25: #{robust_encoder_forward.40} parent=0 // pred_fallthru
    _

// kernel: robust_encoder_forward.37
$region0: #{robust_encoder_forward.37}
  #allocation0 [shape = 'u32[]', space=smem, size = 0x4, offset = 0x4, fixed_abs, tag = 'smem constant byte address 0x4 - core index']
  #allocation1 [shape = 'u32[144,128]{1,0:T(1,128)}', space=vmem, size = 0x12000, scoped, tag = 'internal scratch']
  %s0 = inlined_call_operand.vmem [shape: bf16[128,8], index: 0, kind: input, shape index: {}]
  %s1 = inlined_call_operand.vmem [shape: bf16[8,16], index: 1, kind: input, shape index: {}]
  %s2 = inlined_call_operand.vmem [shape: f32[1,16], index: 2, kind: input, shape index: {}]
  %s3 = inlined_call_operand.vmem [shape: f32[128,16], index: 3, kind: output, shape index: {}]
  %s4 = sld [smem:[#allocation0]]
  $region22: #{robust_encoder_forward.37} parent=0
    _
  %s6 = ssub.s32 1, %s4
  %s7 = scalar_select 0, %s6, %s4
  // Predicated region
  $region2: #{robust_encoder_forward.37} parent=0 // pred_check
    _
  $region3: #{robust_encoder_forward.37} parent=0 // pred_check_branch
    %9 = sbr.rel (0) target = $region5
  $region4: #{robust_encoder_forward.37} parent=0 // pred_region
    _
  $region5: #{robust_encoder_forward.37} parent=0 // pred_fallthru
    _
  // Predicated region
  $region6: #{robust_encoder_forward.37} parent=0 // pred_check
    _
  $region7: #{robust_encoder_forward.37} parent=0 // pred_check_branch
    %11 = sbr.rel (0) target = $region9
  $region8: #{robust_encoder_forward.37} parent=0 // pred_region
    _
  $region9: #{robust_encoder_forward.37} parent=0 // pred_fallthru
    _
  // Predicated region
  $region10: #{robust_encoder_forward.37} parent=0 // pred_check
    _
  $region11: #{robust_encoder_forward.37} parent=0 // pred_check_branch
    %13 = sbr.rel (0) target = $region13
  $region12: #{robust_encoder_forward.37} parent=0 // pred_region
    _
  $region13: #{robust_encoder_forward.37} parent=0 // pred_fallthru
    _
  %v15 = vld [vmem:[%s0] sm:$0xf]
  %v16 = vld [vmem:[%s0 + $0x4] sm:$0xf]
  %v17 = vld [vmem:[%s0 + $0x8] sm:$0xf]
  %v18 = vld [vmem:[%s0 + $0xc] sm:$0xf]
  %v19 = vld [vmem:[%s0 + $0x10] sm:$0xf]
  %v20 = vld [vmem:[%s0 + $0x14] sm:$0xf]
  %v21 = vld [vmem:[%s0 + $0x18] sm:$0xf]
  %v22 = vld [vmem:[%s0 + $0x1c] sm:$0xf]
  %v23 = vld [vmem:[%s0 + $0x20] sm:$0xf]
  %v24 = vld [vmem:[%s0 + $0x24] sm:$0xf]
  %v25 = vld [vmem:[%s0 + $0x28] sm:$0xf]
  %v26 = vld [vmem:[%s0 + $0x2c] sm:$0xf]
  %v27 = vld [vmem:[%s0 + $0x30] sm:$0xf]
  %v28 = vld [vmem:[%s0 + $0x34] sm:$0xf]
  %v29 = vld [vmem:[%s0 + $0x38] sm:$0xf]
  %v30 = vld [vmem:[%s0 + $0x3c] sm:$0xf]
  %v31 = vld [vmem:[%s1] sm:$0xf]
  %v32 = vld [vmem:[%s2] sm:$0x1]
  %v34 = vlaneseq
  %v35 = vshrl.u32 %v34, 7
  %v36 = vsub.s32 0, %v35
  %v37 = vrot.slane %v32, %v36
  %v55 = vunpack.c.l.b16 %v15
  %v56 = vunpack.c.l.b16 %v16
  %v57 = vunpack.c.l.b16 %v17
  %v58 = vunpack.c.l.b16 %v18
  %v59 = vunpack.c.l.b16 %v19
  %v60 = vunpack.c.l.b16 %v20
  %v61 = vunpack.c.l.b16 %v21
  %v62 = vunpack.c.l.b16 %v22
  %v63 = vunpack.c.l.b16 %v23
  %v64 = vunpack.c.l.b16 %v24
  %v65 = vunpack.c.l.b16 %v25
  %v66 = vunpack.c.l.b16 %v26
  %v67 = vunpack.c.l.b16 %v27
  %v68 = vunpack.c.l.b16 %v28
  %v69 = vunpack.c.l.b16 %v29
  %v70 = vunpack.c.l.b16 %v30
  %v71 = vpack.c.b16 %v56, %v55
  %v72 = vpack.c.b16 %v58, %v57
  %v73 = vpack.c.b16 %v60, %v59
  %v74 = vpack.c.b16 %v62, %v61
  %v75 = vpack.c.b16 %v64, %v63
  %v76 = vpack.c.b16 %v66, %v65
  %v77 = vpack.c.b16 %v68, %v67
  %v78 = vpack.c.b16 %v70, %v69
  %vm79 = vcmask 64512
  %v81 = vsel %vm79, %v71, 0
  %v84 = vsel %vm79, %v72, 0
  %v87 = vsel %vm79, %v73, 0
  %v90 = vsel %vm79, %v74, 0
  %v93 = vsel %vm79, %v75, 0
  %v96 = vsel %vm79, %v76, 0
  %v99 = vsel %vm79, %v77, 0
  %v102 = vsel %vm79, %v78, 0
  %vm104 = vcmask 1043456
  %v106 = vsel %vm104, %v31, 0
  %108 = vmatprep.subr.bf16.mxu0 0
  %109 = vmatpush1.bf16.msra.mxu0 %v106
  %110 = vmatprep.subr.bf16.mxu0 0
  %111 = vmatpush1.bf16.msra.mxu0 0
  %112 = vmatprep.subr.bf16.mxu0 0
  %113 = vmatpush1.bf16.msra.mxu0 0
  %114 = vmatprep.subr.bf16.mxu0 0
  %115 = vmatpush1.bf16.msra.mxu0 0
  %116 = vmatprep.subr.bf16.mxu0 0
  %117 = vmatpush1.bf16.msra.mxu0 0
  %118 = vmatprep.subr.bf16.mxu0 0
  %119 = vmatpush1.bf16.msra.mxu0 0
  %120 = vmatprep.subr.bf16.mxu0 0
  %121 = vmatpush1.bf16.msra.mxu0 0
  %122 = vmatprep.subr.bf16.mxu0 0
  %123 = vmatpush1.bf16.msra.mxu0 0
  %124 = vmatprep.subr.bf16.mxu0 0
  %125 = vmatpush1.bf16.msra.mxu0 0
  %126 = vmatprep.subr.bf16.mxu0 0
  %127 = vmatpush1.bf16.msra.mxu0 0
  %128 = vmatprep.subr.bf16.mxu0 0
  %129 = vmatpush1.bf16.msra.mxu0 0
  %130 = vmatprep.subr.bf16.mxu0 0
  %131 = vmatpush1.bf16.msra.mxu0 0
  %132 = vmatprep.subr.bf16.mxu0 0
  %133 = vmatpush1.bf16.msra.mxu0 0
  %134 = vmatprep.subr.bf16.mxu0 0
  %135 = vmatpush1.bf16.msra.mxu0 0
  %136 = vmatprep.subr.bf16.mxu0 0
  %137 = vmatpush1.bf16.msra.mxu0 0
  %138 = vmatprep.subr.bf16.mxu0 0
  %139 = vmatpush1.bf16.msra.mxu0 0
  %140 = vmatprep.mubr.bf16.mxu0 0
  %141 = vmatmul.mubr.bf16.gmra.mrb[0].mxu0 %v81
  %v142 = vpop.f32.mrb[0].mxu0
  %v143 = vadd.f32 %v37, %v142
  %v144 = vpop.f32.mrb[0].mxu0
  %v145 = vpop.f32.mrb[0].mxu0
  %v146 = vadd.f32 %v37, %v145
  %v147 = vpop.f32.mrb[0].mxu0
  %148 = vmatprep.mubr.bf16.mxu0 0
  %149 = vmatmul.mubr.bf16.gmra.mrb[0].mxu0 %v84
  %v150 = vpop.f32.mrb[0].mxu0
  %v151 = vadd.f32 %v37, %v150
  %v152 = vpop.f32.mrb[0].mxu0
  %v153 = vpop.f32.mrb[0].mxu0
  %v154 = vadd.f32 %v37, %v153
  %v155 = vpop.f32.mrb[0].mxu0
  %156 = vmatprep.mubr.bf16.mxu0 0
  %157 = vmatmul.mubr.bf16.gmra.mrb[0].mxu0 %v87
  %v158 = vpop.f32.mrb[0].mxu0
  %v159 = vadd.f32 %v37, %v158
  %v160 = vpop.f32.mrb[0].mxu0
  %v161 = vpop.f32.mrb[0].mxu0
  %v162 = vadd.f32 %v37, %v161
  %v163 = vpop.f32.mrb[0].mxu0
  %164 = vmatprep.mubr.bf16.mxu0 0
  %165 = vmatmul.mubr.bf16.gmra.mrb[0].mxu0 %v90
  %v166 = vpop.f32.mrb[0].mxu0
  %v167 = vadd.f32 %v37, %v166
  %v168 = vpop.f32.mrb[0].mxu0
  %v169 = vpop.f32.mrb[0].mxu0
  %v170 = vadd.f32 %v37, %v169
  %v171 = vpop.f32.mrb[0].mxu0
  %172 = vmatprep.mubr.bf16.mxu0 0
  %173 = vmatmul.mubr.bf16.gmra.mrb[0].mxu0 %v93
  %v174 = vpop.f32.mrb[0].mxu0
  %v175 = vadd.f32 %v37, %v174
  %v176 = vpop.f32.mrb[0].mxu0
  %v177 = vpop.f32.mrb[0].mxu0
  %v178 = vadd.f32 %v37, %v177
  %v179 = vpop.f32.mrb[0].mxu0
  %180 = vmatprep.mubr.bf16.mxu0 0
  %181 = vmatmul.mubr.bf16.gmra.mrb[0].mxu0 %v96
  %v182 = vpop.f32.mrb[0].mxu0
  %v183 = vadd.f32 %v37, %v182
  %v184 = vpop.f32.mrb[0].mxu0
  %v185 = vpop.f32.mrb[0].mxu0
  %v186 = vadd.f32 %v37, %v185
  %v187 = vpop.f32.mrb[0].mxu0
  %188 = vmatprep.mubr.bf16.mxu0 0
  %189 = vmatmul.mubr.bf16.gmra.mrb[0].mxu0 %v99
  %v190 = vpop.f32.mrb[0].mxu0
  %v191 = vadd.f32 %v37, %v190
  %v192 = vpop.f32.mrb[0].mxu0
  %v193 = vpop.f32.mrb[0].mxu0
  %v194 = vadd.f32 %v37, %v193
  %v195 = vpop.f32.mrb[0].mxu0
  %196 = vmatprep.mubr.bf16.mxu0 0
  %197 = vmatmul.mubr.bf16.gmra.mrb[0].mxu0 %v102
  %v198 = vpop.f32.mrb[0].mxu0
  %v199 = vadd.f32 %v37, %v198
  %v200 = vpop.f32.mrb[0].mxu0
  %v201 = vpop.f32.mrb[0].mxu0
  %v202 = vadd.f32 %v37, %v201
  %v203 = vpop.f32.mrb[0].mxu0
  %204 = vdwg.mxu0
  %vm205 = vcmask 130048
  %206 = vst.msk [vmem:[%s3] sm:$0xff] %vm205, %v143
  %207 = vst.msk [vmem:[%s3 + $0x8] sm:$0xff] %vm205, %v146
  %208 = vst.msk [vmem:[%s3 + $0x10] sm:$0xff] %vm205, %v151
  %209 = vst.msk [vmem:[%s3 + $0x18] sm:$0xff] %vm205, %v154
  %210 = vst.msk [vmem:[%s3 + $0x20] sm:$0xff] %vm205, %v159
  %211 = vst.msk [vmem:[%s3 + $0x28] sm:$0xff] %vm205, %v162
  %212 = vst.msk [vmem:[%s3 + $0x30] sm:$0xff] %vm205, %v167
  %213 = vst.msk [vmem:[%s3 + $0x38] sm:$0xff] %vm205, %v170
  %214 = vst.msk [vmem:[%s3 + $0x40] sm:$0xff] %vm205, %v175
  %215 = vst.msk [vmem:[%s3 + $0x48] sm:$0xff] %vm205, %v178
  %216 = vst.msk [vmem:[%s3 + $0x50] sm:$0xff] %vm205, %v183
  %217 = vst.msk [vmem:[%s3 + $0x58] sm:$0xff] %vm205, %v186
  %218 = vst.msk [vmem:[%s3 + $0x60] sm:$0xff] %vm205, %v191
  %219 = vst.msk [vmem:[%s3 + $0x68] sm:$0xff] %vm205, %v194
  %220 = vst.msk [vmem:[%s3 + $0x70] sm:$0xff] %vm205, %v199
  %221 = vst.msk [vmem:[%s3 + $0x78] sm:$0xff] %vm205, %v202
  // Predicated region
  $region14: #{robust_encoder_forward.37} parent=0 // pred_check
    _
  $region15: #{robust_encoder_forward.37} parent=0 // pred_check_branch
    %223 = sbr.rel (0) target = $region17
  $region16: #{robust_encoder_forward.37} parent=0 // pred_region
    _
  $region17: #{robust_encoder_forward.37} parent=0 // pred_fallthru
    _
  // Predicated region
  $region18: #{robust_encoder_forward.37} parent=0 // pred_check
    _
  $region19: #{robust_encoder_forward.37} parent=0 // pred_check_branch
    %225 = sbr.rel (0) target = $region21
  $region20: #{robust_encoder_forward.37} parent=0 // pred_region
    _
  $region21: #{robust_encoder_forward.37} parent=0 // pred_fallthru
    _

// kernel: robust_encoder_forward.41
$region0: #{robust_encoder_forward.41}
  #allocation0 [shape = 'u32[]', space=smem, size = 0x4, offset = 0x4, fixed_abs, tag = 'smem constant byte address 0x4 - core index']
  #allocation1 [shape = 'u32[144,128]{1,0:T(1,128)}', space=vmem, size = 0x12000, scoped, tag = 'internal scratch']
  %s0 = inlined_call_operand.vmem [shape: bf16[128,144], index: 0, kind: input, shape index: {}]
  %s1 = inlined_call_operand.vmem [shape: bf16[144,16], index: 1, kind: input, shape index: {}]
  %s2 = inlined_call_operand.vmem [shape: f32[1,16], index: 2, kind: input, shape index: {}]
  %s3 = inlined_call_operand.vmem [shape: f32[128,16], index: 3, kind: output, shape index: {}]
  %s4 = sld [smem:[#allocation0]]
  $region22: #{robust_encoder_forward.41} parent=0
    _
  %s6 = ssub.s32 1, %s4
  %s7 = scalar_select 0, %s6, %s4
  // Predicated region
  $region2: #{robust_encoder_forward.41} parent=0 // pred_check
    _
  $region3: #{robust_encoder_forward.41} parent=0 // pred_check_branch
    %9 = sbr.rel (0) target = $region5
  $region4: #{robust_encoder_forward.41} parent=0 // pred_region
    _
  $region5: #{robust_encoder_forward.41} parent=0 // pred_fallthru
    _
  // Predicated region
  $region6: #{robust_encoder_forward.41} parent=0 // pred_check
    _
  $region7: #{robust_encoder_forward.41} parent=0 // pred_check_branch
    %11 = sbr.rel (0) target = $region9
  $region8: #{robust_encoder_forward.41} parent=0 // pred_region
    _
  $region9: #{robust_encoder_forward.41} parent=0 // pred_fallthru
    _
  // Predicated region
  $region10: #{robust_encoder_forward.41} parent=0 // pred_check
    _
  $region11: #{robust_encoder_forward.41} parent=0 // pred_check_branch
    %13 = sbr.rel (0) target = $region13
  $region12: #{robust_encoder_forward.41} parent=0 // pred_region
    _
  $region13: #{robust_encoder_forward.41} parent=0 // pred_fallthru
    _
  %v15 = vld [vmem:[%s0] sm:$0xff]
  %v16 = vld [vmem:[%s0 + $0x8] sm:$0xff]
  %v17 = vld [vmem:[%s0 + $0x10] sm:$0xff]
  %v18 = vld [vmem:[%s0 + $0x18] sm:$0xff]
  %v19 = vld [vmem:[%s0 + $0x20] sm:$0xff]
  %v20 = vld [vmem:[%s0 + $0x28] sm:$0xff]
  %v21 = vld [vmem:[%s0 + $0x30] sm:$0xff]
  %v22 = vld [vmem:[%s0 + $0x38] sm:$0xff]
  %v23 = vld [vmem:[%s0 + $0x40] sm:$0xff]
  %v24 = vld [vmem:[%s0 + $0x48] sm:$0xff]
  %v25 = vld [vmem:[%s0 + $0x50] sm:$0xff]
  %v26 = vld [vmem:[%s0 + $0x58] sm:$0xff]
  %v27 = vld [vmem:[%s0 + $0x60] sm:$0xff]
  %v28 = vld [vmem:[%s0 + $0x68] sm:$0xff]
  %v29 = vld [vmem:[%s0 + $0x70] sm:$0xff]
  %v30 = vld [vmem:[%s0 + $0x78] sm:$0xff]
  %v31 = vld [vmem:[%s1] sm:$0xf]
  %v32 = vld [vmem:[%s1 + $0x4] sm:$0xf]
  %v33 = vld [vmem:[%s1 + $0x8] sm:$0xf]
  %v34 = vld [vmem:[%s1 + $0xc] sm:$0xf]
  %v35 = vld [vmem:[%s1 + $0x10] sm:$0xf]
  %v36 = vld [vmem:[%s1 + $0x14] sm:$0xf]
  %v37 = vld [vmem:[%s1 + $0x18] sm:$0xf]
  %v38 = vld [vmem:[%s1 + $0x1c] sm:$0xf]
  %v39 = vld [vmem:[%s1 + $0x20] sm:$0xf]
  %v40 = vld [vmem:[%s1 + $0x24] sm:$0xf]
  %v41 = vld [vmem:[%s1 + $0x28] sm:$0xf]
  %v42 = vld [vmem:[%s1 + $0x2c] sm:$0xf]
  %v43 = vld [vmem:[%s1 + $0x30] sm:$0xf]
  %v44 = vld [vmem:[%s1 + $0x34] sm:$0xf]
  %v45 = vld [vmem:[%s1 + $0x38] sm:$0xf]
  %v46 = vld [vmem:[%s1 + $0x3c] sm:$0xf]
  %v47 = vld [vmem:[%s1 + $0x40] sm:$0xf]
  %v48 = vld [vmem:[%s1 + $0x44] sm:$0xf]
  %v49 = vld [vmem:[%s2] sm:$0x1]
  %v51 = vlaneseq
  %v52 = vshrl.u32 %v51, 7
  %v53 = vsub.s32 0, %v52
  %v54 = vrot.slane %v49, %v53
  %v72 = vunpack.c.l.b16 %v15
  %v73 = vunpack.c.h.b16 %v15
  %v74 = vunpack.c.l.b16 %v16
  %v75 = vunpack.c.h.b16 %v16
  %v76 = vunpack.c.l.b16 %v17
  %v77 = vunpack.c.h.b16 %v17
  %v78 = vunpack.c.l.b16 %v18
  %v79 = vunpack.c.h.b16 %v18
  %v80 = vunpack.c.l.b16 %v19
  %v81 = vunpack.c.h.b16 %v19
  %v82 = vunpack.c.l.b16 %v20
  %v83 = vunpack.c.h.b16 %v20
  %v84 = vunpack.c.l.b16 %v21
  %v85 = vunpack.c.h.b16 %v21
  %v86 = vunpack.c.l.b16 %v22
  %v87 = vunpack.c.h.b16 %v22
  %v88 = vunpack.c.l.b16 %v23
  %v89 = vunpack.c.h.b16 %v23
  %v90 = vunpack.c.l.b16 %v24
  %v91 = vunpack.c.h.b16 %v24
  %v92 = vunpack.c.l.b16 %v25
  %v93 = vunpack.c.h.b16 %v25
  %v94 = vunpack.c.l.b16 %v26
  %v95 = vunpack.c.h.b16 %v26
  %v96 = vunpack.c.l.b16 %v27
  %v97 = vunpack.c.h.b16 %v27
  %v98 = vunpack.c.l.b16 %v28
  %v99 = vunpack.c.h.b16 %v28
  %v100 = vunpack.c.l.b16 %v29
  %v101 = vunpack.c.h.b16 %v29
  %v102 = vunpack.c.l.b16 %v30
  %v103 = vunpack.c.h.b16 %v30
  %v104 = vpack.c.b16 %v74, %v72
  %v105 = vpack.c.b16 %v75, %v73
  %v106 = vpack.c.b16 %v78, %v76
  %v107 = vpack.c.b16 %v79, %v77
  %v108 = vpack.c.b16 %v82, %v80
  %v109 = vpack.c.b16 %v83, %v81
  %v110 = vpack.c.b16 %v86, %v84
  %v111 = vpack.c.b16 %v87, %v85
  %v112 = vpack.c.b16 %v90, %v88
  %v113 = vpack.c.b16 %v91, %v89
  %v114 = vpack.c.b16 %v94, %v92
  %v115 = vpack.c.b16 %v95, %v93
  %v116 = vpack.c.b16 %v98, %v96
  %v117 = vpack.c.b16 %v99, %v97
  %v118 = vpack.c.b16 %v102, %v100
  %v119 = vpack.c.b16 %v103, %v101
  %v146 = vunpack.c.l.b16 %v31
  %v147 = vunpack.c.l.b16 %v32
  %v148 = vunpack.c.l.b16 %v33
  %v149 = vunpack.c.l.b16 %v34
  %v150 = vunpack.c.l.b16 %v35
  %v151 = vunpack.c.l.b16 %v36
  %v152 = vunpack.c.l.b16 %v37
  %v153 = vunpack.c.l.b16 %v38
  %v154 = vunpack.c.l.b16 %v39
  %v155 = vunpack.c.l.b16 %v40
  %v156 = vunpack.c.l.b16 %v41
  %v157 = vunpack.c.l.b16 %v42
  %v158 = vunpack.c.l.b16 %v43
  %v159 = vunpack.c.l.b16 %v44
  %v160 = vunpack.c.l.b16 %v45
  %v161 = vunpack.c.l.b16 %v46
  %v162 = vunpack.c.l.b16 %v47
  %v163 = vunpack.c.l.b16 %v48
  %v164 = vpack.c.b16 %v147, %v146
  %v165 = vpack.c.b16 %v149, %v148
  %v166 = vpack.c.b16 %v151, %v150
  %v167 = vpack.c.b16 %v153, %v152
  %v168 = vpack.c.b16 %v155, %v154
  %v169 = vpack.c.b16 %v157, %v156
  %v170 = vpack.c.b16 %v159, %v158
  %v171 = vpack.c.b16 %v161, %v160
  %v172 = vpack.c.b16 %v163, %v162
  %vm182 = vcmask 130048
  %v184 = vsel %vm182, %v105, 0
  %v187 = vsel %vm182, %v107, 0
  %v190 = vsel %vm182, %v109, 0
  %v193 = vsel %vm182, %v111, 0
  %v196 = vsel %vm182, %v113, 0
  %v199 = vsel %vm182, %v115, 0
  %v202 = vsel %vm182, %v117, 0
  %v205 = vsel %vm182, %v119, 0
  %207 = vmatprep.subr.bf16.mxu0 0
  %208 = vmatpush1.bf16.msra.mxu0 %v164
  %209 = vmatprep.subr.bf16.mxu0 0
  %210 = vmatpush1.bf16.msra.mxu0 %v165
  %211 = vmatprep.subr.bf16.mxu0 0
  %212 = vmatpush1.bf16.msra.mxu0 %v166
  %213 = vmatprep.subr.bf16.mxu0 0
  %214 = vmatpush1.bf16.msra.mxu0 %v167
  %215 = vmatprep.subr.bf16.mxu0 0
  %216 = vmatpush1.bf16.msra.mxu0 %v168
  %217 = vmatprep.subr.bf16.mxu0 0
  %218 = vmatpush1.bf16.msra.mxu0 %v169
  %219 = vmatprep.subr.bf16.mxu0 0
  %220 = vmatpush1.bf16.msra.mxu0 %v170
  %221 = vmatprep.subr.bf16.mxu0 0
  %222 = vmatpush1.bf16.msra.mxu0 %v171
  %223 = vmatprep.subr.bf16.mxu0 0
  %224 = vmatpush1.bf16.msra.mxu0 %v172
  %225 = vmatprep.subr.bf16.mxu0 0
  %226 = vmatpush1.bf16.msra.mxu0 0
  %227 = vmatprep.subr.bf16.mxu0 0
  %228 = vmatpush1.bf16.msra.mxu0 0
  %229 = vmatprep.subr.bf16.mxu0 0
  %230 = vmatpush1.bf16.msra.mxu0 0
  %231 = vmatprep.subr.bf16.mxu0 0
  %232 = vmatpush1.bf16.msra.mxu0 0
  %233 = vmatprep.subr.bf16.mxu0 0
  %234 = vmatpush1.bf16.msra.mxu0 0
  %235 = vmatprep.subr.bf16.mxu0 0
  %236 = vmatpush1.bf16.msra.mxu0 0
  %237 = vmatprep.subr.bf16.mxu0 0
  %238 = vmatpush1.bf16.msra.mxu0 0
  %239 = vmatprep.mubr.bf16.mxu0 %v184
  %240 = vmatmul.mubr.bf16.gmra.mrb[0].mxu0 %v104
  %v241 = vpop.f32.mrb[0].mxu0
  %v242 = vadd.f32 %v54, %v241
  %v243 = vpop.f32.mrb[0].mxu0
  %v244 = vpop.f32.mrb[0].mxu0
  %v245 = vadd.f32 %v54, %v244
  %v246 = vpop.f32.mrb[0].mxu0
  %247 = vmatprep.mubr.bf16.mxu0 %v187
  %248 = vmatmul.mubr.bf16.gmra.mrb[0].mxu0 %v106
  %v249 = vpop.f32.mrb[0].mxu0
  %v250 = vadd.f32 %v54, %v249
  %v251 = vpop.f32.mrb[0].mxu0
  %v252 = vpop.f32.mrb[0].mxu0
  %v253 = vadd.f32 %v54, %v252
  %v254 = vpop.f32.mrb[0].mxu0
  %255 = vmatprep.mubr.bf16.mxu0 %v190
  %256 = vmatmul.mubr.bf16.gmra.mrb[0].mxu0 %v108
  %v257 = vpop.f32.mrb[0].mxu0
  %v258 = vadd.f32 %v54, %v257
  %v259 = vpop.f32.mrb[0].mxu0
  %v260 = vpop.f32.mrb[0].mxu0
  %v261 = vadd.f32 %v54, %v260
  %v262 = vpop.f32.mrb[0].mxu0
  %263 = vmatprep.mubr.bf16.mxu0 %v193
  %264 = vmatmul.mubr.bf16.gmra.mrb[0].mxu0 %v110
  %v265 = vpop.f32.mrb[0].mxu0
  %v266 = vadd.f32 %v54, %v265
  %v267 = vpop.f32.mrb[0].mxu0
  %v268 = vpop.f32.mrb[0].mxu0
  %v269 = vadd.f32 %v54, %v268
  %v270 = vpop.f32.mrb[0].mxu0
  %271 = vmatprep.mubr.bf16.mxu0 %v196
  %272 = vmatmul.mubr.bf16.gmra.mrb[0].mxu0 %v112
  %v273 = vpop.f32.mrb[0].mxu0
  %v274 = vadd.f32 %v54, %v273
  %v275 = vpop.f32.mrb[0].mxu0
  %v276 = vpop.f32.mrb[0].mxu0
  %v277 = vadd.f32 %v54, %v276
  %v278 = vpop.f32.mrb[0].mxu0
  %279 = vmatprep.mubr.bf16.mxu0 %v199
  %280 = vmatmul.mubr.bf16.gmra.mrb[0].mxu0 %v114
  %v281 = vpop.f32.mrb[0].mxu0
  %v282 = vadd.f32 %v54, %v281
  %v283 = vpop.f32.mrb[0].mxu0
  %v284 = vpop.f32.mrb[0].mxu0
  %v285 = vadd.f32 %v54, %v284
  %v286 = vpop.f32.mrb[0].mxu0
  %287 = vmatprep.mubr.bf16.mxu0 %v202
  %288 = vmatmul.mubr.bf16.gmra.mrb[0].mxu0 %v116
  %v289 = vpop.f32.mrb[0].mxu0
  %v290 = vadd.f32 %v54, %v289
  %v291 = vpop.f32.mrb[0].mxu0
  %v292 = vpop.f32.mrb[0].mxu0
  %v293 = vadd.f32 %v54, %v292
  %v294 = vpop.f32.mrb[0].mxu0
  %295 = vmatprep.mubr.bf16.mxu0 %v205
  %296 = vmatmul.mubr.bf16.gmra.mrb[0].mxu0 %v118
  %v297 = vpop.f32.mrb[0].mxu0
  %v298 = vadd.f32 %v54, %v297
  %v299 = vpop.f32.mrb[0].mxu0
  %v300 = vpop.f32.mrb[0].mxu0
  %v301 = vadd.f32 %v54, %v300
  %v302 = vpop.f32.mrb[0].mxu0
  %303 = vdwg.mxu0
  %v304 = vmax.f32 %v242, 0.0
  %v305 = vmax.f32 %v245, 0.0
  %v306 = vmax.f32 %v250, 0.0
  %v307 = vmax.f32 %v253, 0.0
  %v308 = vmax.f32 %v258, 0.0
  %v309 = vmax.f32 %v261, 0.0
  %v310 = vmax.f32 %v266, 0.0
  %v311 = vmax.f32 %v269, 0.0
  %v312 = vmax.f32 %v274, 0.0
  %v313 = vmax.f32 %v277, 0.0
  %v314 = vmax.f32 %v282, 0.0
  %v315 = vmax.f32 %v285, 0.0
  %v316 = vmax.f32 %v290, 0.0
  %v317 = vmax.f32 %v293, 0.0
  %v318 = vmax.f32 %v298, 0.0
  %v319 = vmax.f32 %v301, 0.0
  %320 = vst.msk [vmem:[%s3] sm:$0xff] %vm182, %v304
  %321 = vst.msk [vmem:[%s3 + $0x8] sm:$0xff] %vm182, %v305
  %322 = vst.msk [vmem:[%s3 + $0x10] sm:$0xff] %vm182, %v306
  %323 = vst.msk [vmem:[%s3 + $0x18] sm:$0xff] %vm182, %v307
  %324 = vst.msk [vmem:[%s3 + $0x20] sm:$0xff] %vm182, %v308
  %325 = vst.msk [vmem:[%s3 + $0x28] sm:$0xff] %vm182, %v309
  %326 = vst.msk [vmem:[%s3 + $0x30] sm:$0xff] %vm182, %v310
  %327 = vst.msk [vmem:[%s3 + $0x38] sm:$0xff] %vm182, %v311
  %328 = vst.msk [vmem:[%s3 + $0x40] sm:$0xff] %vm182, %v312
  %329 = vst.msk [vmem:[%s3 + $0x48] sm:$0xff] %vm182, %v313
  %330 = vst.msk [vmem:[%s3 + $0x50] sm:$0xff] %vm182, %v314
  %331 = vst.msk [vmem:[%s3 + $0x58] sm:$0xff] %vm182, %v315
  %332 = vst.msk [vmem:[%s3 + $0x60] sm:$0xff] %vm182, %v316
  %333 = vst.msk [vmem:[%s3 + $0x68] sm:$0xff] %vm182, %v317
  %334 = vst.msk [vmem:[%s3 + $0x70] sm:$0xff] %vm182, %v318
  %335 = vst.msk [vmem:[%s3 + $0x78] sm:$0xff] %vm182, %v319
  // Predicated region
  $region14: #{robust_encoder_forward.41} parent=0 // pred_check
    _
  $region15: #{robust_encoder_forward.41} parent=0 // pred_check_branch
    %337 = sbr.rel (0) target = $region17
  $region16: #{robust_encoder_forward.41} parent=0 // pred_region
    _
  $region17: #{robust_encoder_forward.41} parent=0 // pred_fallthru
    _
  // Predicated region
  $region18: #{robust_encoder_forward.41} parent=0 // pred_check
    _
  $region19: #{robust_encoder_forward.41} parent=0 // pred_check_branch
    %339 = sbr.rel (0) target = $region21
  $region20: #{robust_encoder_forward.41} parent=0 // pred_region
    _
  $region21: #{robust_encoder_forward.41} parent=0 // pred_fallthru
    _

// kernel: robust_encoder_forward.46
$region0: #{robust_encoder_forward.46}
  #allocation0 [shape = 'u32[]', space=smem, size = 0x4, offset = 0x4, fixed_abs, tag = 'smem constant byte address 0x4 - core index']
  #allocation1 [shape = 'u32[144,128]{1,0:T(1,128)}', space=vmem, size = 0x12000, scoped, tag = 'internal scratch']
  %s0 = inlined_call_operand.vmem [shape: bf16[32,144], index: 0, kind: input, shape index: {}]
  %s1 = inlined_call_operand.vmem [shape: bf16[144,32], index: 1, kind: input, shape index: {}]
  %s2 = inlined_call_operand.vmem [shape: f32[1,32], index: 2, kind: input, shape index: {}]
  %s3 = inlined_call_operand.vmem [shape: f32[32,32], index: 3, kind: output, shape index: {}]
  %s4 = sld [smem:[#allocation0]]
  $region22: #{robust_encoder_forward.46} parent=0
    _
  %s6 = ssub.s32 1, %s4
  %s7 = scalar_select 0, %s6, %s4
  // Predicated region
  $region2: #{robust_encoder_forward.46} parent=0 // pred_check
    _
  $region3: #{robust_encoder_forward.46} parent=0 // pred_check_branch
    %9 = sbr.rel (0) target = $region5
  $region4: #{robust_encoder_forward.46} parent=0 // pred_region
    _
  $region5: #{robust_encoder_forward.46} parent=0 // pred_fallthru
    _
  // Predicated region
  $region6: #{robust_encoder_forward.46} parent=0 // pred_check
    _
  $region7: #{robust_encoder_forward.46} parent=0 // pred_check_branch
    %11 = sbr.rel (0) target = $region9
  $region8: #{robust_encoder_forward.46} parent=0 // pred_region
    _
  $region9: #{robust_encoder_forward.46} parent=0 // pred_fallthru
    _
  // Predicated region
  $region10: #{robust_encoder_forward.46} parent=0 // pred_check
    _
  $region11: #{robust_encoder_forward.46} parent=0 // pred_check_branch
    %13 = sbr.rel (0) target = $region13
  $region12: #{robust_encoder_forward.46} parent=0 // pred_region
    _
  $region13: #{robust_encoder_forward.46} parent=0 // pred_fallthru
    _
  %v15 = vld [vmem:[%s0] sm:$0xff]
  %v16 = vld [vmem:[%s0 + $0x8] sm:$0xff]
  %v17 = vld [vmem:[%s0 + $0x10] sm:$0xff]
  %v18 = vld [vmem:[%s0 + $0x18] sm:$0xff]
  %v19 = vld [vmem:[%s1] sm:$0xf]
  %v20 = vld [vmem:[%s1 + $0x4] sm:$0xf]
  %v21 = vld [vmem:[%s1 + $0x8] sm:$0xf]
  %v22 = vld [vmem:[%s1 + $0xc] sm:$0xf]
  %v23 = vld [vmem:[%s1 + $0x10] sm:$0xf]
  %v24 = vld [vmem:[%s1 + $0x14] sm:$0xf]
  %v25 = vld [vmem:[%s1 + $0x18] sm:$0xf]
  %v26 = vld [vmem:[%s1 + $0x1c] sm:$0xf]
  %v27 = vld [vmem:[%s1 + $0x20] sm:$0xf]
  %v28 = vld [vmem:[%s1 + $0x24] sm:$0xf]
  %v29 = vld [vmem:[%s1 + $0x28] sm:$0xf]
  %v30 = vld [vmem:[%s1 + $0x2c] sm:$0xf]
  %v31 = vld [vmem:[%s1 + $0x30] sm:$0xf]
  %v32 = vld [vmem:[%s1 + $0x34] sm:$0xf]
  %v33 = vld [vmem:[%s1 + $0x38] sm:$0xf]
  %v34 = vld [vmem:[%s1 + $0x3c] sm:$0xf]
  %v35 = vld [vmem:[%s1 + $0x40] sm:$0xf]
  %v36 = vld [vmem:[%s1 + $0x44] sm:$0xf]
  %v37 = vld [vmem:[%s2] sm:$0x1]
  %v39 = vlaneseq
  %v40 = vshrl.u32 %v39, 7
  %v41 = vsub.s32 0, %v40
  %v42 = vrot.slane %v37, %v41
  %v48 = vunpack.c.l.b16 %v15
  %v49 = vunpack.c.h.b16 %v15
  %v50 = vunpack.c.l.b16 %v16
  %v51 = vunpack.c.h.b16 %v16
  %v52 = vunpack.c.l.b16 %v17
  %v53 = vunpack.c.h.b16 %v17
  %v54 = vunpack.c.l.b16 %v18
  %v55 = vunpack.c.h.b16 %v18
  %v56 = vpack.c.b16 %v50, %v48
  %v57 = vpack.c.b16 %v51, %v49
  %v58 = vpack.c.b16 %v54, %v52
  %v59 = vpack.c.b16 %v55, %v53
  %v80 = vunpack.c.l.b16 %v19
  %v81 = vunpack.c.l.b16 %v20
  %v82 = vunpack.c.l.b16 %v21
  %v83 = vunpack.c.l.b16 %v22
  %v84 = vunpack.c.l.b16 %v23
  %v85 = vunpack.c.l.b16 %v24
  %v86 = vunpack.c.l.b16 %v25
  %v87 = vunpack.c.l.b16 %v26
  %v88 = vunpack.c.l.b16 %v27
  %v89 = vunpack.c.l.b16 %v28
  %v90 = vunpack.c.l.b16 %v29
  %v91 = vunpack.c.l.b16 %v30
  %v92 = vunpack.c.l.b16 %v31
  %v93 = vunpack.c.l.b16 %v32
  %v94 = vunpack.c.l.b16 %v33
  %v95 = vunpack.c.l.b16 %v34
  %v96 = vunpack.c.l.b16 %v35
  %v97 = vunpack.c.l.b16 %v36
  %v98 = vpack.c.b16 %v81, %v80
  %v99 = vpack.c.b16 %v83, %v82
  %v100 = vpack.c.b16 %v85, %v84
  %v101 = vpack.c.b16 %v87, %v86
  %v102 = vpack.c.b16 %v89, %v88
  %v103 = vpack.c.b16 %v91, %v90
  %v104 = vpack.c.b16 %v93, %v92
  %v105 = vpack.c.b16 %v95, %v94
  %v106 = vpack.c.b16 %v97, %v96
  %vm116 = vcmask 130048
  %v118 = vsel %vm116, %v57, 0
  %v121 = vsel %vm116, %v59, 0
  %123 = vmatprep.subr.bf16.mxu0 0
  %124 = vmatpush1.bf16.msra.mxu0 %v98
  %125 = vmatprep.subr.bf16.mxu0 0
  %126 = vmatpush1.bf16.msra.mxu0 %v99
  %127 = vmatprep.subr.bf16.mxu0 0
  %128 = vmatpush1.bf16.msra.mxu0 %v100
  %129 = vmatprep.subr.bf16.mxu0 0
  %130 = vmatpush1.bf16.msra.mxu0 %v101
  %131 = vmatprep.subr.bf16.mxu0 0
  %132 = vmatpush1.bf16.msra.mxu0 %v102
  %133 = vmatprep.subr.bf16.mxu0 0
  %134 = vmatpush1.bf16.msra.mxu0 %v103
  %135 = vmatprep.subr.bf16.mxu0 0
  %136 = vmatpush1.bf16.msra.mxu0 %v104
  %137 = vmatprep.subr.bf16.mxu0 0
  %138 = vmatpush1.bf16.msra.mxu0 %v105
  %139 = vmatprep.subr.bf16.mxu0 0
  %140 = vmatpush1.bf16.msra.mxu0 %v106
  %141 = vmatprep.subr.bf16.mxu0 0
  %142 = vmatpush1.bf16.msra.mxu0 0
  %143 = vmatprep.subr.bf16.mxu0 0
  %144 = vmatpush1.bf16.msra.mxu0 0
  %145 = vmatprep.subr.bf16.mxu0 0
  %146 = vmatpush1.bf16.msra.mxu0 0
  %147 = vmatprep.subr.bf16.mxu0 0
  %148 = vmatpush1.bf16.msra.mxu0 0
  %149 = vmatprep.subr.bf16.mxu0 0
  %150 = vmatpush1.bf16.msra.mxu0 0
  %151 = vmatprep.subr.bf16.mxu0 0
  %152 = vmatpush1.bf16.msra.mxu0 0
  %153 = vmatprep.subr.bf16.mxu0 0
  %154 = vmatpush1.bf16.msra.mxu0 0
  %155 = vmatprep.mubr.bf16.mxu0 %v118
  %156 = vmatmul.mubr.bf16.gmra.mrb[0].mxu0 %v56
  %v157 = vpop.f32.mrb[0].mxu0
  %v158 = vadd.f32 %v42, %v157
  %v159 = vpop.f32.mrb[0].mxu0
  %v160 = vpop.f32.mrb[0].mxu0
  %v161 = vadd.f32 %v42, %v160
  %v162 = vpop.f32.mrb[0].mxu0
  %163 = vmatprep.mubr.bf16.mxu0 %v121
  %164 = vmatmul.mubr.bf16.gmra.mrb[0].mxu0 %v58
  %v165 = vpop.f32.mrb[0].mxu0
  %v166 = vadd.f32 %v42, %v165
  %v167 = vpop.f32.mrb[0].mxu0
  %v168 = vpop.f32.mrb[0].mxu0
  %v169 = vadd.f32 %v42, %v168
  %v170 = vpop.f32.mrb[0].mxu0
  %171 = vdwg.mxu0
  %v172 = vmax.f32 %v158, 0.0
  %v173 = vmax.f32 %v161, 0.0
  %v174 = vmax.f32 %v166, 0.0
  %v175 = vmax.f32 %v169, 0.0
  %vm176 = vcmask 261120
  %177 = vst.msk [vmem:[%s3] sm:$0xff] %vm176, %v172
  %178 = vst.msk [vmem:[%s3 + $0x8] sm:$0xff] %vm176, %v173
  %179 = vst.msk [vmem:[%s3 + $0x10] sm:$0xff] %vm176, %v174
  %180 = vst.msk [vmem:[%s3 + $0x18] sm:$0xff] %vm176, %v175
  // Predicated region
  $region14: #{robust_encoder_forward.46} parent=0 // pred_check
    _
  $region15: #{robust_encoder_forward.46} parent=0 // pred_check_branch
    %182 = sbr.rel (0) target = $region17
  $region16: #{robust_encoder_forward.46} parent=0 // pred_region
    _
  $region17: #{robust_encoder_forward.46} parent=0 // pred_fallthru
    _
  // Predicated region
  $region18: #{robust_encoder_forward.46} parent=0 // pred_check
    _
  $region19: #{robust_encoder_forward.46} parent=0 // pred_check_branch
    %184 = sbr.rel (0) target = $region21
  $region20: #{robust_encoder_forward.46} parent=0 // pred_region
    _
  $region21: #{robust_encoder_forward.46} parent=0 // pred_fallthru
    _

// kernel: robust_encoder_forward.47
$region0: #{robust_encoder_forward.47}
  #allocation0 [shape = 'u32[]', space=smem, size = 0x4, offset = 0x4, fixed_abs, tag = 'smem constant byte address 0x4 - core index']
  #allocation1 [shape = 'u32[144,128]{1,0:T(1,128)}', space=vmem, size = 0x12000, scoped, tag = 'internal scratch']
  %s0 = inlined_call_operand.vmem [shape: bf16[32,288], index: 0, kind: input, shape index: {}]
  %s1 = inlined_call_operand.vmem [shape: bf16[288,32], index: 1, kind: input, shape index: {}]
  %s2 = inlined_call_operand.vmem [shape: f32[1,32], index: 2, kind: input, shape index: {}]
  %s3 = inlined_call_operand.vmem [shape: f32[32,32], index: 3, kind: output, shape index: {}]
  %s4 = sld [smem:[#allocation0]]
  $region22: #{robust_encoder_forward.47} parent=0
    _
  %s6 = ssub.s32 1, %s4
  %s7 = scalar_select 0, %s6, %s4
  // Predicated region
  $region2: #{robust_encoder_forward.47} parent=0 // pred_check
    _
  $region3: #{robust_encoder_forward.47} parent=0 // pred_check_branch
    %9 = sbr.rel (0) target = $region5
  $region4: #{robust_encoder_forward.47} parent=0 // pred_region
    _
  $region5: #{robust_encoder_forward.47} parent=0 // pred_fallthru
    _
  // Predicated region
  $region6: #{robust_encoder_forward.47} parent=0 // pred_check
    _
  $region7: #{robust_encoder_forward.47} parent=0 // pred_check_branch
    %11 = sbr.rel (0) target = $region9
  $region8: #{robust_encoder_forward.47} parent=0 // pred_region
    _
  $region9: #{robust_encoder_forward.47} parent=0 // pred_fallthru
    _
  // Predicated region
  $region10: #{robust_encoder_forward.47} parent=0 // pred_check
    _
  $region11: #{robust_encoder_forward.47} parent=0 // pred_check_branch
    %13 = sbr.rel (0) target = $region13
  $region12: #{robust_encoder_forward.47} parent=0 // pred_region
    _
  $region13: #{robust_encoder_forward.47} parent=0 // pred_fallthru
    _
  %v15 = vld [vmem:[%s0] sm:$0xff]
  %v16 = vld [vmem:[%s0 + $0x8] sm:$0xf]
  %v17 = vld [vmem:[%s0 + $0xc] sm:$0xff]
  %v18 = vld [vmem:[%s0 + $0x14] sm:$0xf]
  %v19 = vld [vmem:[%s0 + $0x18] sm:$0xff]
  %v20 = vld [vmem:[%s0 + $0x20] sm:$0xf]
  %v21 = vld [vmem:[%s0 + $0x24] sm:$0xff]
  %v22 = vld [vmem:[%s0 + $0x2c] sm:$0xf]
  %v23 = vld [vmem:[%s1] sm:$0xf]
  %v24 = vld [vmem:[%s1 + $0x4] sm:$0xf]
  %v25 = vld [vmem:[%s1 + $0x8] sm:$0xf]
  %v26 = vld [vmem:[%s1 + $0xc] sm:$0xf]
  %v27 = vld [vmem:[%s1 + $0x10] sm:$0xf]
  %v28 = vld [vmem:[%s1 + $0x14] sm:$0xf]
  %v29 = vld [vmem:[%s1 + $0x18] sm:$0xf]
  %v30 = vld [vmem:[%s1 + $0x1c] sm:$0xf]
  %v31 = vld [vmem:[%s1 + $0x20] sm:$0xf]
  %v32 = vld [vmem:[%s1 + $0x24] sm:$0xf]
  %v33 = vld [vmem:[%s1 + $0x28] sm:$0xf]
  %v34 = vld [vmem:[%s1 + $0x2c] sm:$0xf]
  %v35 = vld [vmem:[%s1 + $0x30] sm:$0xf]
  %v36 = vld [vmem:[%s1 + $0x34] sm:$0xf]
  %v37 = vld [vmem:[%s1 + $0x38] sm:$0xf]
  %v38 = vld [vmem:[%s1 + $0x3c] sm:$0xf]
  %v39 = vld [vmem:[%s1 + $0x40] sm:$0xf]
  %v40 = vld [vmem:[%s1 + $0x44] sm:$0xf]
  %v41 = vld [vmem:[%s1 + $0x48] sm:$0xf]
  %v42 = vld [vmem:[%s1 + $0x4c] sm:$0xf]
  %v43 = vld [vmem:[%s1 + $0x50] sm:$0xf]
  %v44 = vld [vmem:[%s1 + $0x54] sm:$0xf]
  %v45 = vld [vmem:[%s1 + $0x58] sm:$0xf]
  %v46 = vld [vmem:[%s1 + $0x5c] sm:$0xf]
  %v47 = vld [vmem:[%s1 + $0x60] sm:$0xf]
  %v48 = vld [vmem:[%s1 + $0x64] sm:$0xf]
  %v49 = vld [vmem:[%s1 + $0x68] sm:$0xf]
  %v50 = vld [vmem:[%s1 + $0x6c] sm:$0xf]
  %v51 = vld [vmem:[%s1 + $0x70] sm:$0xf]
  %v52 = vld [vmem:[%s1 + $0x74] sm:$0xf]
  %v53 = vld [vmem:[%s1 + $0x78] sm:$0xf]
  %v54 = vld [vmem:[%s1 + $0x7c] sm:$0xf]
  %v55 = vld [vmem:[%s1 + $0x80] sm:$0xf]
  %v56 = vld [vmem:[%s1 + $0x84] sm:$0xf]
  %v57 = vld [vmem:[%s1 + $0x88] sm:$0xf]
  %v58 = vld [vmem:[%s1 + $0x8c] sm:$0xf]
  %v59 = vld [vmem:[%s2] sm:$0x1]
  %v61 = vlaneseq
  %v62 = vshrl.u32 %v61, 7
  %v63 = vsub.s32 0, %v62
  %v64 = vrot.slane %v59, %v63
  %v74 = vunpack.c.l.b16 %v15
  %v75 = vunpack.c.h.b16 %v15
  %v76 = vunpack.c.l.b16 %v16
  %v77 = vunpack.c.l.b16 %v17
  %v78 = vunpack.c.h.b16 %v17
  %v79 = vunpack.c.l.b16 %v18
  %v80 = vunpack.c.l.b16 %v19
  %v81 = vunpack.c.h.b16 %v19
  %v82 = vunpack.c.l.b16 %v20
  %v83 = vunpack.c.l.b16 %v21
  %v84 = vunpack.c.h.b16 %v21
  %v85 = vunpack.c.l.b16 %v22
  %v86 = vpack.c.b16 %v77, %v74
  %v87 = vpack.c.b16 %v78, %v75
  %v88 = vpack.c.b16 %v79, %v76
  %v89 = vpack.c.b16 %v83, %v80
  %v90 = vpack.c.b16 %v84, %v81
  %v91 = vpack.c.b16 %v85, %v82
  %v132 = vunpack.c.l.b16 %v23
  %v133 = vunpack.c.l.b16 %v24
  %v134 = vunpack.c.l.b16 %v25
  %v135 = vunpack.c.l.b16 %v26
  %v136 = vunpack.c.l.b16 %v27
  %v137 = vunpack.c.l.b16 %v28
  %v138 = vunpack.c.l.b16 %v29
  %v139 = vunpack.c.l.b16 %v30
  %v140 = vunpack.c.l.b16 %v31
  %v141 = vunpack.c.l.b16 %v32
  %v142 = vunpack.c.l.b16 %v33
  %v143 = vunpack.c.l.b16 %v34
  %v144 = vunpack.c.l.b16 %v35
  %v145 = vunpack.c.l.b16 %v36
  %v146 = vunpack.c.l.b16 %v37
  %v147 = vunpack.c.l.b16 %v38
  %v148 = vunpack.c.l.b16 %v39
  %v149 = vunpack.c.l.b16 %v40
  %v150 = vunpack.c.l.b16 %v41
  %v151 = vunpack.c.l.b16 %v42
  %v152 = vunpack.c.l.b16 %v43
  %v153 = vunpack.c.l.b16 %v44
  %v154 = vunpack.c.l.b16 %v45
  %v155 = vunpack.c.l.b16 %v46
  %v156 = vunpack.c.l.b16 %v47
  %v157 = vunpack.c.l.b16 %v48
  %v158 = vunpack.c.l.b16 %v49
  %v159 = vunpack.c.l.b16 %v50
  %v160 = vunpack.c.l.b16 %v51
  %v161 = vunpack.c.l.b16 %v52
  %v162 = vunpack.c.l.b16 %v53
  %v163 = vunpack.c.l.b16 %v54
  %v164 = vunpack.c.l.b16 %v55
  %v165 = vunpack.c.l.b16 %v56
  %v166 = vunpack.c.l.b16 %v57
  %v167 = vunpack.c.l.b16 %v58
  %v168 = vpack.c.b16 %v133, %v132
  %v169 = vpack.c.b16 %v135, %v134
  %v170 = vpack.c.b16 %v137, %v136
  %v171 = vpack.c.b16 %v139, %v138
  %v172 = vpack.c.b16 %v141, %v140
  %v173 = vpack.c.b16 %v143, %v142
  %v174 = vpack.c.b16 %v145, %v144
  %v175 = vpack.c.b16 %v147, %v146
  %v176 = vpack.c.b16 %v149, %v148
  %v177 = vpack.c.b16 %v151, %v150
  %v178 = vpack.c.b16 %v153, %v152
  %v179 = vpack.c.b16 %v155, %v154
  %v180 = vpack.c.b16 %v157, %v156
  %v181 = vpack.c.b16 %v159, %v158
  %v182 = vpack.c.b16 %v161, %v160
  %v183 = vpack.c.b16 %v163, %v162
  %v184 = vpack.c.b16 %v165, %v164
  %v185 = vpack.c.b16 %v167, %v166
  %vm204 = vcmask 261120
  %v206 = vsel %vm204, %v88, 0
  %v209 = vsel %vm204, %v91, 0
  %211 = vmatprep.subr.bf16.mxu0 0
  %212 = vmatpush1.bf16.msra.mxu0 %v168
  %213 = vmatprep.subr.bf16.mxu0 0
  %214 = vmatpush1.bf16.msra.mxu0 %v169
  %215 = vmatprep.subr.bf16.mxu0 0
  %216 = vmatpush1.bf16.msra.mxu0 %v170
  %217 = vmatprep.subr.bf16.mxu0 0
  %218 = vmatpush1.bf16.msra.mxu0 %v171
  %219 = vmatprep.subr.bf16.mxu0 0
  %220 = vmatpush1.bf16.msra.mxu0 %v172
  %221 = vmatprep.subr.bf16.mxu0 0
  %222 = vmatpush1.bf16.msra.mxu0 %v173
  %223 = vmatprep.subr.bf16.mxu0 0
  %224 = vmatpush1.bf16.msra.mxu0 %v174
  %225 = vmatprep.subr.bf16.mxu0 0
  %226 = vmatpush1.bf16.msra.mxu0 %v175
  %227 = vmatprep.subr.bf16.mxu0 0
  %228 = vmatpush1.bf16.msra.mxu0 %v176
  %229 = vmatprep.subr.bf16.mxu0 0
  %230 = vmatpush1.bf16.msra.mxu0 %v177
  %231 = vmatprep.subr.bf16.mxu0 0
  %232 = vmatpush1.bf16.msra.mxu0 %v178
  %233 = vmatprep.subr.bf16.mxu0 0
  %234 = vmatpush1.bf16.msra.mxu0 %v179
  %235 = vmatprep.subr.bf16.mxu0 0
  %236 = vmatpush1.bf16.msra.mxu0 %v180
  %237 = vmatprep.subr.bf16.mxu0 0
  %238 = vmatpush1.bf16.msra.mxu0 %v181
  %239 = vmatprep.subr.bf16.mxu0 0
  %240 = vmatpush1.bf16.msra.mxu0 %v182
  %241 = vmatprep.subr.bf16.mxu0 0
  %242 = vmatpush1.bf16.msra.mxu0 %v183
  %243 = vmatprep.mubr.bf16.mxu0 %v87
  %244 = vmatmul.mubr.bf16.gmra.mrb[0].mxu0 %v86
  %v245 = vpop.f32.mrb[0].mxu0
  %v246 = vadd.f32 %v64, %v245
  %v247 = vpop.f32.mrb[0].mxu0
  %v248 = vpop.f32.mrb[0].mxu0
  %v249 = vadd.f32 %v64, %v248
  %v250 = vpop.f32.mrb[0].mxu0
  %251 = vmatprep.mubr.bf16.mxu0 %v90
  %252 = vmatmul.mubr.bf16.gmra.mrb[0].mxu0 %v89
  %v253 = vpop.f32.mrb[0].mxu0
  %v254 = vadd.f32 %v64, %v253
  %v255 = vpop.f32.mrb[0].mxu0
  %v256 = vpop.f32.mrb[0].mxu0
  %v257 = vadd.f32 %v64, %v256
  %v258 = vpop.f32.mrb[0].mxu0
  %259 = vdwg.mxu0
  %260 = vmatprep.subr.bf16.mxu0 0
  %261 = vmatpush1.bf16.msra.mxu0 %v184
  %262 = vmatprep.subr.bf16.mxu0 0
  %263 = vmatpush1.bf16.msra.mxu0 %v185
  %264 = vmatprep.subr.bf16.mxu0 0
  %265 = vmatpush1.bf16.msra.mxu0 0
  %266 = vmatprep.subr.bf16.mxu0 0
  %267 = vmatpush1.bf16.msra.mxu0 0
  %268 = vmatprep.subr.bf16.mxu0 0
  %269 = vmatpush1.bf16.msra.mxu0 0
  %270 = vmatprep.subr.bf16.mxu0 0
  %271 = vmatpush1.bf16.msra.mxu0 0
  %272 = vmatprep.subr.bf16.mxu0 0
  %273 = vmatpush1.bf16.msra.mxu0 0
  %274 = vmatprep.subr.bf16.mxu0 0
  %275 = vmatpush1.bf16.msra.mxu0 0
  %276 = vmatprep.subr.bf16.mxu0 0
  %277 = vmatpush1.bf16.msra.mxu0 0
  %278 = vmatprep.subr.bf16.mxu0 0
  %279 = vmatpush1.bf16.msra.mxu0 0
  %280 = vmatprep.subr.bf16.mxu0 0
  %281 = vmatpush1.bf16.msra.mxu0 0
  %282 = vmatprep.subr.bf16.mxu0 0
  %283 = vmatpush1.bf16.msra.mxu0 0
  %284 = vmatprep.subr.bf16.mxu0 0
  %285 = vmatpush1.bf16.msra.mxu0 0
  %286 = vmatprep.subr.bf16.mxu0 0
  %287 = vmatpush1.bf16.msra.mxu0 0
  %288 = vmatprep.subr.bf16.mxu0 0
  %289 = vmatpush1.bf16.msra.mxu0 0
  %290 = vmatprep.subr.bf16.mxu0 0
  %291 = vmatpush1.bf16.msra.mxu0 0
  %292 = vmatprep.mubr.bf16.mxu0 0
  %293 = vmatmul.mubr.bf16.gmra.mrb[0].mxu0 %v206
  %v294 = vpop.f32.mrb[0].mxu0
  %v295 = vadd.f32 %v246, %v294
  %v296 = vpop.f32.mrb[0].mxu0
  %v297 = vpop.f32.mrb[0].mxu0
  %v298 = vadd.f32 %v249, %v297
  %v299 = vpop.f32.mrb[0].mxu0
  %300 = vmatprep.mubr.bf16.mxu0 0
  %301 = vmatmul.mubr.bf16.gmra.mrb[0].mxu0 %v209
  %v302 = vpop.f32.mrb[0].mxu0
  %v303 = vadd.f32 %v254, %v302
  %v304 = vpop.f32.mrb[0].mxu0
  %v305 = vpop.f32.mrb[0].mxu0
  %v306 = vadd.f32 %v257, %v305
  %v307 = vpop.f32.mrb[0].mxu0
  %308 = vdwg.mxu0
  %309 = vst.msk [vmem:[%s3] sm:$0xff] %vm204, %v295
  %310 = vst.msk [vmem:[%s3 + $0x8] sm:$0xff] %vm204, %v298
  %311 = vst.msk [vmem:[%s3 + $0x10] sm:$0xff] %vm204, %v303
  %312 = vst.msk [vmem:[%s3 + $0x18] sm:$0xff] %vm204, %v306
  // Predicated region
  $region14: #{robust_encoder_forward.47} parent=0 // pred_check
    _
  $region15: #{robust_encoder_forward.47} parent=0 // pred_check_branch
    %314 = sbr.rel (0) target = $region17
  $region16: #{robust_encoder_forward.47} parent=0 // pred_region
    _
  $region17: #{robust_encoder_forward.47} parent=0 // pred_fallthru
    _
  // Predicated region
  $region18: #{robust_encoder_forward.47} parent=0 // pred_check
    _
  $region19: #{robust_encoder_forward.47} parent=0 // pred_check_branch
    %316 = sbr.rel (0) target = $region21
  $region20: #{robust_encoder_forward.47} parent=0 // pred_region
    _
  $region21: #{robust_encoder_forward.47} parent=0 // pred_fallthru
    _

// kernel: robust_encoder_forward.48
$region0: #{robust_encoder_forward.48}
  #allocation0 [shape = 'u32[]', space=smem, size = 0x4, offset = 0x4, fixed_abs, tag = 'smem constant byte address 0x4 - core index']
  #allocation1 [shape = 'u32[144,128]{1,0:T(1,128)}', space=vmem, size = 0x12000, scoped, tag = 'internal scratch']
  %s0 = inlined_call_operand.vmem [shape: bf16[32,98], index: 0, kind: input, shape index: {}]
  %s1 = inlined_call_operand.vmem [shape: f32[1,98], index: 1, kind: input, shape index: {}]
  %s2 = inlined_call_operand.vmem [shape: f32[32,32], index: 2, kind: input, shape index: {}]
  %s3 = inlined_call_operand.vmem [shape: f32[32,32], index: 3, kind: input, shape index: {}]
  %s4 = inlined_call_operand.vmem [shape: f32[32,32], index: 4, kind: output, shape index: {}]
  %s5 = sld [smem:[#allocation0]]
  $region26: #{robust_encoder_forward.48} parent=0
    _
  %s7 = ssub.s32 1, %s5
  %s8 = scalar_select 0, %s7, %s5
  // Predicated region
  $region2: #{robust_encoder_forward.48} parent=0 // pred_check
    _
  $region3: #{robust_encoder_forward.48} parent=0 // pred_check_branch
    %10 = sbr.rel (0) target = $region5
  $region4: #{robust_encoder_forward.48} parent=0 // pred_region
    _
  $region5: #{robust_encoder_forward.48} parent=0 // pred_fallthru
    _
  // Predicated region
  $region6: #{robust_encoder_forward.48} parent=0 // pred_check
    _
  $region7: #{robust_encoder_forward.48} parent=0 // pred_check_branch
    %12 = sbr.rel (0) target = $region9
  $region8: #{robust_encoder_forward.48} parent=0 // pred_region
    _
  $region9: #{robust_encoder_forward.48} parent=0 // pred_fallthru
    _
  // Predicated region
  $region10: #{robust_encoder_forward.48} parent=0 // pred_check
    _
  $region11: #{robust_encoder_forward.48} parent=0 // pred_check_branch
    %14 = sbr.rel (0) target = $region13
  $region12: #{robust_encoder_forward.48} parent=0 // pred_region
    _
  $region13: #{robust_encoder_forward.48} parent=0 // pred_fallthru
    _
  // Predicated region
  $region14: #{robust_encoder_forward.48} parent=0 // pred_check
    _
  $region15: #{robust_encoder_forward.48} parent=0 // pred_check_branch
    %16 = sbr.rel (0) target = $region17
  $region16: #{robust_encoder_forward.48} parent=0 // pred_region
    _
  $region17: #{robust_encoder_forward.48} parent=0 // pred_fallthru
    _
  %v17 = vld [vmem:[%s0] sm:$0xf]
  %v18 = vld [vmem:[%s0 + $0x4] sm:$0xf]
  %v19 = vld [vmem:[%s0 + $0x8] sm:$0xf]
  %v20 = vld [vmem:[%s0 + $0xc] sm:$0xf]
  %v21 = vunpack.c.l.bf16 %v17
  %v22 = vunpack.c.l.bf16 %v18
  %v23 = vunpack.c.l.bf16 %v19
  %v24 = vunpack.c.l.bf16 %v20
  %v25 = vld [vmem:[%s1] sm:$0x1]
  %v27 = vlaneseq
  %v28 = vshrl.u32 %v27, 7
  %v29 = vsub.s32 0, %v28
  %v30 = vrot.slane %v25, %v29
  %v32 = vmul.f32 %v21, %v30
  %v33 = vmul.f32 %v22, %v30
  %v34 = vmul.f32 %v23, %v30
  %v35 = vmul.f32 %v24, %v30
  %vm36 = vcmask 801792
  %v37 = vsel %vm36, %v32, 0.0
  %38 = vadd.xlane.f32.xlu0 %v37
  %v39 = vpop.xlane.xlu0 %38
  %v40 = vsel %vm36, %v33, 0.0
  %41 = vadd.xlane.f32.xlu0 %v40
  %v42 = vpop.xlane.xlu0 %41
  %v43 = vsel %vm36, %v34, 0.0
  %44 = vadd.xlane.f32.xlu0 %v43
  %v45 = vpop.xlane.xlu0 %44
  %v46 = vsel %vm36, %v35, 0.0
  %47 = vadd.xlane.f32.xlu0 %v46
  %v48 = vpop.xlane.xlu0 %47
  %v49 = vxor.u32 %v39, 2147483648
  %v50 = vxor.u32 %v42, 2147483648
  %v51 = vxor.u32 %v45, 2147483648
  %v52 = vxor.u32 %v48, 2147483648
  %v53 = vmul.f32 %v49, 1.442695
  %v54 = vpow.pop %v53
  %v55 = vmul.f32 %v50, 1.442695
  %v56 = vpow.pop %v55
  %v57 = vmul.f32 %v51, 1.442695
  %v58 = vpow.pop %v57
  %v59 = vmul.f32 %v52, 1.442695
  %v60 = vpow.pop %v59
  %v61 = vadd.f32 %v54, 1.0
  %v62 = vadd.f32 %v56, 1.0
  %v63 = vadd.f32 %v58, 1.0
  %v64 = vadd.f32 %v60, 1.0
  %v65 = vrcp.pop %v61
  %v66 = vmul.f32 1.0, %v65
  %v67 = vrcp.pop %v62
  %v68 = vmul.f32 1.0, %v67
  %v69 = vrcp.pop %v63
  %v70 = vmul.f32 1.0, %v69
  %v71 = vrcp.pop %v64
  %v72 = vmul.f32 1.0, %v71
  %v73 = vld [vmem:[%s2] sm:$0xff]
  %v74 = vld [vmem:[%s2 + $0x8] sm:$0xff]
  %v75 = vld [vmem:[%s2 + $0x10] sm:$0xff]
  %v76 = vld [vmem:[%s2 + $0x18] sm:$0xff]
  %v77 = vmul.f32 %v73, %v66
  %v78 = vmul.f32 %v74, %v68
  %v79 = vmul.f32 %v75, %v70
  %v80 = vmul.f32 %v76, %v72
  %v81 = vld [vmem:[%s3] sm:$0xff]
  %v82 = vld [vmem:[%s3 + $0x8] sm:$0xff]
  %v83 = vld [vmem:[%s3 + $0x10] sm:$0xff]
  %v84 = vld [vmem:[%s3 + $0x18] sm:$0xff]
  %v85 = vadd.f32 %v77, %v81
  %v86 = vadd.f32 %v78, %v82
  %v87 = vadd.f32 %v79, %v83
  %v88 = vadd.f32 %v80, %v84
  %v89 = vmax.f32 %v85, 0.0
  %v90 = vmax.f32 %v86, 0.0
  %v91 = vmax.f32 %v87, 0.0
  %v92 = vmax.f32 %v88, 0.0
  %vm93 = vcmask 261120
  %94 = vst.msk [vmem:[%s4] sm:$0xff] %vm93, %v89
  %95 = vst.msk [vmem:[%s4 + $0x8] sm:$0xff] %vm93, %v90
  %96 = vst.msk [vmem:[%s4 + $0x10] sm:$0xff] %vm93, %v91
  %97 = vst.msk [vmem:[%s4 + $0x18] sm:$0xff] %vm93, %v92
  // Predicated region
  $region18: #{robust_encoder_forward.48} parent=0 // pred_check
    _
  $region19: #{robust_encoder_forward.48} parent=0 // pred_check_branch
    %99 = sbr.rel (0) target = $region21
  $region20: #{robust_encoder_forward.48} parent=0 // pred_region
    _
  $region21: #{robust_encoder_forward.48} parent=0 // pred_fallthru
    _
  // Predicated region
  $region22: #{robust_encoder_forward.48} parent=0 // pred_check
    _
  $region23: #{robust_encoder_forward.48} parent=0 // pred_check_branch
    %101 = sbr.rel (0) target = $region25
  $region24: #{robust_encoder_forward.48} parent=0 // pred_region
    _
  $region25: #{robust_encoder_forward.48} parent=0 // pred_fallthru
    _

// kernel: robust_encoder_forward.45
$region0: #{robust_encoder_forward.45}
  #allocation0 [shape = 'u32[]', space=smem, size = 0x4, offset = 0x4, fixed_abs, tag = 'smem constant byte address 0x4 - core index']
  #allocation1 [shape = 'u32[144,128]{1,0:T(1,128)}', space=vmem, size = 0x12000, scoped, tag = 'internal scratch']
  %s0 = inlined_call_operand.vmem [shape: bf16[32,16], index: 0, kind: input, shape index: {}]
  %s1 = inlined_call_operand.vmem [shape: bf16[16,32], index: 1, kind: input, shape index: {}]
  %s2 = inlined_call_operand.vmem [shape: f32[1,32], index: 2, kind: input, shape index: {}]
  %s3 = inlined_call_operand.vmem [shape: f32[32,32], index: 3, kind: output, shape index: {}]
  %s4 = sld [smem:[#allocation0]]
  $region22: #{robust_encoder_forward.45} parent=0
    _
  %s6 = ssub.s32 1, %s4
  %s7 = scalar_select 0, %s6, %s4
  // Predicated region
  $region2: #{robust_encoder_forward.45} parent=0 // pred_check
    _
  $region3: #{robust_encoder_forward.45} parent=0 // pred_check_branch
    %9 = sbr.rel (0) target = $region5
  $region4: #{robust_encoder_forward.45} parent=0 // pred_region
    _
  $region5: #{robust_encoder_forward.45} parent=0 // pred_fallthru
    _
  // Predicated region
  $region6: #{robust_encoder_forward.45} parent=0 // pred_check
    _
  $region7: #{robust_encoder_forward.45} parent=0 // pred_check_branch
    %11 = sbr.rel (0) target = $region9
  $region8: #{robust_encoder_forward.45} parent=0 // pred_region
    _
  $region9: #{robust_encoder_forward.45} parent=0 // pred_fallthru
    _
  // Predicated region
  $region10: #{robust_encoder_forward.45} parent=0 // pred_check
    _
  $region11: #{robust_encoder_forward.45} parent=0 // pred_check_branch
    %13 = sbr.rel (0) target = $region13
  $region12: #{robust_encoder_forward.45} parent=0 // pred_region
    _
  $region13: #{robust_encoder_forward.45} parent=0 // pred_fallthru
    _
  %v15 = vld [vmem:[%s0] sm:$0xf]
  %v16 = vld [vmem:[%s0 + $0x4] sm:$0xf]
  %v17 = vld [vmem:[%s0 + $0x8] sm:$0xf]
  %v18 = vld [vmem:[%s0 + $0xc] sm:$0xf]
  %v19 = vld [vmem:[%s1] sm:$0xf]
  %v20 = vld [vmem:[%s1 + $0x4] sm:$0xf]
  %v21 = vld [vmem:[%s2] sm:$0x1]
  %v23 = vlaneseq
  %v24 = vshrl.u32 %v23, 7
  %v25 = vsub.s32 0, %v24
  %v26 = vrot.slane %v21, %v25
  %v32 = vunpack.c.l.b16 %v15
  %v33 = vunpack.c.l.b16 %v16
  %v34 = vunpack.c.l.b16 %v17
  %v35 = vunpack.c.l.b16 %v18
  %v36 = vpack.c.b16 %v33, %v32
  %v37 = vpack.c.b16 %v35, %v34
  %v40 = vunpack.c.l.b16 %v19
  %v41 = vunpack.c.l.b16 %v20
  %v42 = vpack.c.b16 %v41, %v40
  %vm44 = vcmask 130048
  %v46 = vsel %vm44, %v36, 0
  %v49 = vsel %vm44, %v37, 0
  %51 = vmatprep.subr.bf16.mxu0 0
  %52 = vmatpush1.bf16.msra.mxu0 %v42
  %53 = vmatprep.subr.bf16.mxu0 0
  %54 = vmatpush1.bf16.msra.mxu0 0
  %55 = vmatprep.subr.bf16.mxu0 0
  %56 = vmatpush1.bf16.msra.mxu0 0
  %57 = vmatprep.subr.bf16.mxu0 0
  %58 = vmatpush1.bf16.msra.mxu0 0
  %59 = vmatprep.subr.bf16.mxu0 0
  %60 = vmatpush1.bf16.msra.mxu0 0
  %61 = vmatprep.subr.bf16.mxu0 0
  %62 = vmatpush1.bf16.msra.mxu0 0
  %63 = vmatprep.subr.bf16.mxu0 0
  %64 = vmatpush1.bf16.msra.mxu0 0
  %65 = vmatprep.subr.bf16.mxu0 0
  %66 = vmatpush1.bf16.msra.mxu0 0
  %67 = vmatprep.subr.bf16.mxu0 0
  %68 = vmatpush1.bf16.msra.mxu0 0
  %69 = vmatprep.subr.bf16.mxu0 0
  %70 = vmatpush1.bf16.msra.mxu0 0
  %71 = vmatprep.subr.bf16.mxu0 0
  %72 = vmatpush1.bf16.msra.mxu0 0
  %73 = vmatprep.subr.bf16.mxu0 0
  %74 = vmatpush1.bf16.msra.mxu0 0
  %75 = vmatprep.subr.bf16.mxu0 0
  %76 = vmatpush1.bf16.msra.mxu0 0
  %77 = vmatprep.subr.bf16.mxu0 0
  %78 = vmatpush1.bf16.msra.mxu0 0
  %79 = vmatprep.subr.bf16.mxu0 0
  %80 = vmatpush1.bf16.msra.mxu0 0
  %81 = vmatprep.subr.bf16.mxu0 0
  %82 = vmatpush1.bf16.msra.mxu0 0
  %83 = vmatprep.mubr.bf16.mxu0 0
  %84 = vmatmul.mubr.bf16.gmra.mrb[0].mxu0 %v46
  %v85 = vpop.f32.mrb[0].mxu0
  %v86 = vadd.f32 %v26, %v85
  %v87 = vpop.f32.mrb[0].mxu0
  %v88 = vpop.f32.mrb[0].mxu0
  %v89 = vadd.f32 %v26, %v88
  %v90 = vpop.f32.mrb[0].mxu0
  %91 = vmatprep.mubr.bf16.mxu0 0
  %92 = vmatmul.mubr.bf16.gmra.mrb[0].mxu0 %v49
  %v93 = vpop.f32.mrb[0].mxu0
  %v94 = vadd.f32 %v26, %v93
  %v95 = vpop.f32.mrb[0].mxu0
  %v96 = vpop.f32.mrb[0].mxu0
  %v97 = vadd.f32 %v26, %v96
  %v98 = vpop.f32.mrb[0].mxu0
  %99 = vdwg.mxu0
  %vm100 = vcmask 261120
  %101 = vst.msk [vmem:[%s3] sm:$0xff] %vm100, %v86
  %102 = vst.msk [vmem:[%s3 + $0x8] sm:$0xff] %vm100, %v89
  %103 = vst.msk [vmem:[%s3 + $0x10] sm:$0xff] %vm100, %v94
  %104 = vst.msk [vmem:[%s3 + $0x18] sm:$0xff] %vm100, %v97
  // Predicated region
  $region14: #{robust_encoder_forward.45} parent=0 // pred_check
    _
  $region15: #{robust_encoder_forward.45} parent=0 // pred_check_branch
    %106 = sbr.rel (0) target = $region17
  $region16: #{robust_encoder_forward.45} parent=0 // pred_region
    _
  $region17: #{robust_encoder_forward.45} parent=0 // pred_fallthru
    _
  // Predicated region
  $region18: #{robust_encoder_forward.45} parent=0 // pred_check
    _
  $region19: #{robust_encoder_forward.45} parent=0 // pred_check_branch
    %108 = sbr.rel (0) target = $region21
  $region20: #{robust_encoder_forward.45} parent=0 // pred_region
    _
  $region21: #{robust_encoder_forward.45} parent=0 // pred_fallthru
    _

// kernel: robust_encoder_forward.49
$region0: #{robust_encoder_forward.49}
  #allocation0 [shape = 'u32[]', space=smem, size = 0x4, offset = 0x4, fixed_abs, tag = 'smem constant byte address 0x4 - core index']
  #allocation1 [shape = 'u32[144,128]{1,0:T(1,128)}', space=vmem, size = 0x12000, scoped, tag = 'internal scratch']
  %s0 = inlined_call_operand.vmem [shape: bf16[32,288], index: 0, kind: input, shape index: {}]
  %s1 = inlined_call_operand.vmem [shape: bf16[288,32], index: 1, kind: input, shape index: {}]
  %s2 = inlined_call_operand.vmem [shape: f32[1,32], index: 2, kind: input, shape index: {}]
  %s3 = inlined_call_operand.vmem [shape: f32[32,32], index: 3, kind: output, shape index: {}]
  %s4 = sld [smem:[#allocation0]]
  $region22: #{robust_encoder_forward.49} parent=0
    _
  %s6 = ssub.s32 1, %s4
  %s7 = scalar_select 0, %s6, %s4
  // Predicated region
  $region2: #{robust_encoder_forward.49} parent=0 // pred_check
    _
  $region3: #{robust_encoder_forward.49} parent=0 // pred_check_branch
    %9 = sbr.rel (0) target = $region5
  $region4: #{robust_encoder_forward.49} parent=0 // pred_region
    _
  $region5: #{robust_encoder_forward.49} parent=0 // pred_fallthru
    _
  // Predicated region
  $region6: #{robust_encoder_forward.49} parent=0 // pred_check
    _
  $region7: #{robust_encoder_forward.49} parent=0 // pred_check_branch
    %11 = sbr.rel (0) target = $region9
  $region8: #{robust_encoder_forward.49} parent=0 // pred_region
    _
  $region9: #{robust_encoder_forward.49} parent=0 // pred_fallthru
    _
  // Predicated region
  $region10: #{robust_encoder_forward.49} parent=0 // pred_check
    _
  $region11: #{robust_encoder_forward.49} parent=0 // pred_check_branch
    %13 = sbr.rel (0) target = $region13
  $region12: #{robust_encoder_forward.49} parent=0 // pred_region
    _
  $region13: #{robust_encoder_forward.49} parent=0 // pred_fallthru
    _
  %v15 = vld [vmem:[%s0] sm:$0xff]
  %v16 = vld [vmem:[%s0 + $0x8] sm:$0xf]
  %v17 = vld [vmem:[%s0 + $0xc] sm:$0xff]
  %v18 = vld [vmem:[%s0 + $0x14] sm:$0xf]
  %v19 = vld [vmem:[%s0 + $0x18] sm:$0xff]
  %v20 = vld [vmem:[%s0 + $0x20] sm:$0xf]
  %v21 = vld [vmem:[%s0 + $0x24] sm:$0xff]
  %v22 = vld [vmem:[%s0 + $0x2c] sm:$0xf]
  %v23 = vld [vmem:[%s1] sm:$0xf]
  %v24 = vld [vmem:[%s1 + $0x4] sm:$0xf]
  %v25 = vld [vmem:[%s1 + $0x8] sm:$0xf]
  %v26 = vld [vmem:[%s1 + $0xc] sm:$0xf]
  %v27 = vld [vmem:[%s1 + $0x10] sm:$0xf]
  %v28 = vld [vmem:[%s1 + $0x14] sm:$0xf]
  %v29 = vld [vmem:[%s1 + $0x18] sm:$0xf]
  %v30 = vld [vmem:[%s1 + $0x1c] sm:$0xf]
  %v31 = vld [vmem:[%s1 + $0x20] sm:$0xf]
  %v32 = vld [vmem:[%s1 + $0x24] sm:$0xf]
  %v33 = vld [vmem:[%s1 + $0x28] sm:$0xf]
  %v34 = vld [vmem:[%s1 + $0x2c] sm:$0xf]
  %v35 = vld [vmem:[%s1 + $0x30] sm:$0xf]
  %v36 = vld [vmem:[%s1 + $0x34] sm:$0xf]
  %v37 = vld [vmem:[%s1 + $0x38] sm:$0xf]
  %v38 = vld [vmem:[%s1 + $0x3c] sm:$0xf]
  %v39 = vld [vmem:[%s1 + $0x40] sm:$0xf]
  %v40 = vld [vmem:[%s1 + $0x44] sm:$0xf]
  %v41 = vld [vmem:[%s1 + $0x48] sm:$0xf]
  %v42 = vld [vmem:[%s1 + $0x4c] sm:$0xf]
  %v43 = vld [vmem:[%s1 + $0x50] sm:$0xf]
  %v44 = vld [vmem:[%s1 + $0x54] sm:$0xf]
  %v45 = vld [vmem:[%s1 + $0x58] sm:$0xf]
  %v46 = vld [vmem:[%s1 + $0x5c] sm:$0xf]
  %v47 = vld [vmem:[%s1 + $0x60] sm:$0xf]
  %v48 = vld [vmem:[%s1 + $0x64] sm:$0xf]
  %v49 = vld [vmem:[%s1 + $0x68] sm:$0xf]
  %v50 = vld [vmem:[%s1 + $0x6c] sm:$0xf]
  %v51 = vld [vmem:[%s1 + $0x70] sm:$0xf]
  %v52 = vld [vmem:[%s1 + $0x74] sm:$0xf]
  %v53 = vld [vmem:[%s1 + $0x78] sm:$0xf]
  %v54 = vld [vmem:[%s1 + $0x7c] sm:$0xf]
  %v55 = vld [vmem:[%s1 + $0x80] sm:$0xf]
  %v56 = vld [vmem:[%s1 + $0x84] sm:$0xf]
  %v57 = vld [vmem:[%s1 + $0x88] sm:$0xf]
  %v58 = vld [vmem:[%s1 + $0x8c] sm:$0xf]
  %v59 = vld [vmem:[%s2] sm:$0x1]
  %v61 = vlaneseq
  %v62 = vshrl.u32 %v61, 7
  %v63 = vsub.s32 0, %v62
  %v64 = vrot.slane %v59, %v63
  %v74 = vunpack.c.l.b16 %v15
  %v75 = vunpack.c.h.b16 %v15
  %v76 = vunpack.c.l.b16 %v16
  %v77 = vunpack.c.l.b16 %v17
  %v78 = vunpack.c.h.b16 %v17
  %v79 = vunpack.c.l.b16 %v18
  %v80 = vunpack.c.l.b16 %v19
  %v81 = vunpack.c.h.b16 %v19
  %v82 = vunpack.c.l.b16 %v20
  %v83 = vunpack.c.l.b16 %v21
  %v84 = vunpack.c.h.b16 %v21
  %v85 = vunpack.c.l.b16 %v22
  %v86 = vpack.c.b16 %v77, %v74
  %v87 = vpack.c.b16 %v78, %v75
  %v88 = vpack.c.b16 %v79, %v76
  %v89 = vpack.c.b16 %v83, %v80
  %v90 = vpack.c.b16 %v84, %v81
  %v91 = vpack.c.b16 %v85, %v82
  %v132 = vunpack.c.l.b16 %v23
  %v133 = vunpack.c.l.b16 %v24
  %v134 = vunpack.c.l.b16 %v25
  %v135 = vunpack.c.l.b16 %v26
  %v136 = vunpack.c.l.b16 %v27
  %v137 = vunpack.c.l.b16 %v28
  %v138 = vunpack.c.l.b16 %v29
  %v139 = vunpack.c.l.b16 %v30
  %v140 = vunpack.c.l.b16 %v31
  %v141 = vunpack.c.l.b16 %v32
  %v142 = vunpack.c.l.b16 %v33
  %v143 = vunpack.c.l.b16 %v34
  %v144 = vunpack.c.l.b16 %v35
  %v145 = vunpack.c.l.b16 %v36
  %v146 = vunpack.c.l.b16 %v37
  %v147 = vunpack.c.l.b16 %v38
  %v148 = vunpack.c.l.b16 %v39
  %v149 = vunpack.c.l.b16 %v40
  %v150 = vunpack.c.l.b16 %v41
  %v151 = vunpack.c.l.b16 %v42
  %v152 = vunpack.c.l.b16 %v43
  %v153 = vunpack.c.l.b16 %v44
  %v154 = vunpack.c.l.b16 %v45
  %v155 = vunpack.c.l.b16 %v46
  %v156 = vunpack.c.l.b16 %v47
  %v157 = vunpack.c.l.b16 %v48
  %v158 = vunpack.c.l.b16 %v49
  %v159 = vunpack.c.l.b16 %v50
  %v160 = vunpack.c.l.b16 %v51
  %v161 = vunpack.c.l.b16 %v52
  %v162 = vunpack.c.l.b16 %v53
  %v163 = vunpack.c.l.b16 %v54
  %v164 = vunpack.c.l.b16 %v55
  %v165 = vunpack.c.l.b16 %v56
  %v166 = vunpack.c.l.b16 %v57
  %v167 = vunpack.c.l.b16 %v58
  %v168 = vpack.c.b16 %v133, %v132
  %v169 = vpack.c.b16 %v135, %v134
  %v170 = vpack.c.b16 %v137, %v136
  %v171 = vpack.c.b16 %v139, %v138
  %v172 = vpack.c.b16 %v141, %v140
  %v173 = vpack.c.b16 %v143, %v142
  %v174 = vpack.c.b16 %v145, %v144
  %v175 = vpack.c.b16 %v147, %v146
  %v176 = vpack.c.b16 %v149, %v148
  %v177 = vpack.c.b16 %v151, %v150
  %v178 = vpack.c.b16 %v153, %v152
  %v179 = vpack.c.b16 %v155, %v154
  %v180 = vpack.c.b16 %v157, %v156
  %v181 = vpack.c.b16 %v159, %v158
  %v182 = vpack.c.b16 %v161, %v160
  %v183 = vpack.c.b16 %v163, %v162
  %v184 = vpack.c.b16 %v165, %v164
  %v185 = vpack.c.b16 %v167, %v166
  %vm204 = vcmask 261120
  %v206 = vsel %vm204, %v88, 0
  %v209 = vsel %vm204, %v91, 0
  %211 = vmatprep.subr.bf16.mxu0 0
  %212 = vmatpush1.bf16.msra.mxu0 %v168
  %213 = vmatprep.subr.bf16.mxu0 0
  %214 = vmatpush1.bf16.msra.mxu0 %v169
  %215 = vmatprep.subr.bf16.mxu0 0
  %216 = vmatpush1.bf16.msra.mxu0 %v170
  %217 = vmatprep.subr.bf16.mxu0 0
  %218 = vmatpush1.bf16.msra.mxu0 %v171
  %219 = vmatprep.subr.bf16.mxu0 0
  %220 = vmatpush1.bf16.msra.mxu0 %v172
  %221 = vmatprep.subr.bf16.mxu0 0
  %222 = vmatpush1.bf16.msra.mxu0 %v173
  %223 = vmatprep.subr.bf16.mxu0 0
  %224 = vmatpush1.bf16.msra.mxu0 %v174
  %225 = vmatprep.subr.bf16.mxu0 0
  %226 = vmatpush1.bf16.msra.mxu0 %v175
  %227 = vmatprep.subr.bf16.mxu0 0
  %228 = vmatpush1.bf16.msra.mxu0 %v176
  %229 = vmatprep.subr.bf16.mxu0 0
  %230 = vmatpush1.bf16.msra.mxu0 %v177
  %231 = vmatprep.subr.bf16.mxu0 0
  %232 = vmatpush1.bf16.msra.mxu0 %v178
  %233 = vmatprep.subr.bf16.mxu0 0
  %234 = vmatpush1.bf16.msra.mxu0 %v179
  %235 = vmatprep.subr.bf16.mxu0 0
  %236 = vmatpush1.bf16.msra.mxu0 %v180
  %237 = vmatprep.subr.bf16.mxu0 0
  %238 = vmatpush1.bf16.msra.mxu0 %v181
  %239 = vmatprep.subr.bf16.mxu0 0
  %240 = vmatpush1.bf16.msra.mxu0 %v182
  %241 = vmatprep.subr.bf16.mxu0 0
  %242 = vmatpush1.bf16.msra.mxu0 %v183
  %243 = vmatprep.mubr.bf16.mxu0 %v87
  %244 = vmatmul.mubr.bf16.gmra.mrb[0].mxu0 %v86
  %v245 = vpop.f32.mrb[0].mxu0
  %v246 = vadd.f32 %v64, %v245
  %v247 = vpop.f32.mrb[0].mxu0
  %v248 = vpop.f32.mrb[0].mxu0
  %v249 = vadd.f32 %v64, %v248
  %v250 = vpop.f32.mrb[0].mxu0
  %251 = vmatprep.mubr.bf16.mxu0 %v90
  %252 = vmatmul.mubr.bf16.gmra.mrb[0].mxu0 %v89
  %v253 = vpop.f32.mrb[0].mxu0
  %v254 = vadd.f32 %v64, %v253
  %v255 = vpop.f32.mrb[0].mxu0
  %v256 = vpop.f32.mrb[0].mxu0
  %v257 = vadd.f32 %v64, %v256
  %v258 = vpop.f32.mrb[0].mxu0
  %259 = vdwg.mxu0
  %260 = vmatprep.subr.bf16.mxu0 0
  %261 = vmatpush1.bf16.msra.mxu0 %v184
  %262 = vmatprep.subr.bf16.mxu0 0
  %263 = vmatpush1.bf16.msra.mxu0 %v185
  %264 = vmatprep.subr.bf16.mxu0 0
  %265 = vmatpush1.bf16.msra.mxu0 0
  %266 = vmatprep.subr.bf16.mxu0 0
  %267 = vmatpush1.bf16.msra.mxu0 0
  %268 = vmatprep.subr.bf16.mxu0 0
  %269 = vmatpush1.bf16.msra.mxu0 0
  %270 = vmatprep.subr.bf16.mxu0 0
  %271 = vmatpush1.bf16.msra.mxu0 0
  %272 = vmatprep.subr.bf16.mxu0 0
  %273 = vmatpush1.bf16.msra.mxu0 0
  %274 = vmatprep.subr.bf16.mxu0 0
  %275 = vmatpush1.bf16.msra.mxu0 0
  %276 = vmatprep.subr.bf16.mxu0 0
  %277 = vmatpush1.bf16.msra.mxu0 0
  %278 = vmatprep.subr.bf16.mxu0 0
  %279 = vmatpush1.bf16.msra.mxu0 0
  %280 = vmatprep.subr.bf16.mxu0 0
  %281 = vmatpush1.bf16.msra.mxu0 0
  %282 = vmatprep.subr.bf16.mxu0 0
  %283 = vmatpush1.bf16.msra.mxu0 0
  %284 = vmatprep.subr.bf16.mxu0 0
  %285 = vmatpush1.bf16.msra.mxu0 0
  %286 = vmatprep.subr.bf16.mxu0 0
  %287 = vmatpush1.bf16.msra.mxu0 0
  %288 = vmatprep.subr.bf16.mxu0 0
  %289 = vmatpush1.bf16.msra.mxu0 0
  %290 = vmatprep.subr.bf16.mxu0 0
  %291 = vmatpush1.bf16.msra.mxu0 0
  %292 = vmatprep.mubr.bf16.mxu0 0
  %293 = vmatmul.mubr.bf16.gmra.mrb[0].mxu0 %v206
  %v294 = vpop.f32.mrb[0].mxu0
  %v295 = vadd.f32 %v246, %v294
  %v296 = vpop.f32.mrb[0].mxu0
  %v297 = vpop.f32.mrb[0].mxu0
  %v298 = vadd.f32 %v249, %v297
  %v299 = vpop.f32.mrb[0].mxu0
  %300 = vmatprep.mubr.bf16.mxu0 0
  %301 = vmatmul.mubr.bf16.gmra.mrb[0].mxu0 %v209
  %v302 = vpop.f32.mrb[0].mxu0
  %v303 = vadd.f32 %v254, %v302
  %v304 = vpop.f32.mrb[0].mxu0
  %v305 = vpop.f32.mrb[0].mxu0
  %v306 = vadd.f32 %v257, %v305
  %v307 = vpop.f32.mrb[0].mxu0
  %308 = vdwg.mxu0
  %v309 = vmax.f32 %v295, 0.0
  %v310 = vmax.f32 %v298, 0.0
  %v311 = vmax.f32 %v303, 0.0
  %v312 = vmax.f32 %v306, 0.0
  %313 = vst.msk [vmem:[%s3] sm:$0xff] %vm204, %v309
  %314 = vst.msk [vmem:[%s3 + $0x8] sm:$0xff] %vm204, %v310
  %315 = vst.msk [vmem:[%s3 + $0x10] sm:$0xff] %vm204, %v311
  %316 = vst.msk [vmem:[%s3 + $0x18] sm:$0xff] %vm204, %v312
  // Predicated region
  $region14: #{robust_encoder_forward.49} parent=0 // pred_check
    _
  $region15: #{robust_encoder_forward.49} parent=0 // pred_check_branch
    %318 = sbr.rel (0) target = $region17
  $region16: #{robust_encoder_forward.49} parent=0 // pred_region
    _
  $region17: #{robust_encoder_forward.49} parent=0 // pred_fallthru
    _
  // Predicated region
  $region18: #{robust_encoder_forward.49} parent=0 // pred_check
    _
  $region19: #{robust_encoder_forward.49} parent=0 // pred_check_branch
    %320 = sbr.rel (0) target = $region21
  $region20: #{robust_encoder_forward.49} parent=0 // pred_region
    _
  $region21: #{robust_encoder_forward.49} parent=0 // pred_fallthru
    _

// kernel: robust_encoder_forward.54
$region0: #{robust_encoder_forward.54}
  #allocation0 [shape = 'u32[]', space=smem, size = 0x4, offset = 0x4, fixed_abs, tag = 'smem constant byte address 0x4 - core index']
  #allocation1 [shape = 'u32[144,128]{1,0:T(1,128)}', space=vmem, size = 0x12000, scoped, tag = 'internal scratch']
  %s0 = inlined_call_operand.vmem [shape: bf16[8,288], index: 0, kind: input, shape index: {}]
  %s1 = inlined_call_operand.vmem [shape: bf16[288,32], index: 1, kind: input, shape index: {}]
  %s2 = inlined_call_operand.vmem [shape: f32[1,32], index: 2, kind: input, shape index: {}]
  %s3 = inlined_call_operand.vmem [shape: f32[8,32], index: 3, kind: output, shape index: {}]
  %s4 = sld [smem:[#allocation0]]
  $region22: #{robust_encoder_forward.54} parent=0
    _
  %s6 = ssub.s32 1, %s4
  %s7 = scalar_select 0, %s6, %s4
  // Predicated region
  $region2: #{robust_encoder_forward.54} parent=0 // pred_check
    _
  $region3: #{robust_encoder_forward.54} parent=0 // pred_check_branch
    %9 = sbr.rel (0) target = $region5
  $region4: #{robust_encoder_forward.54} parent=0 // pred_region
    _
  $region5: #{robust_encoder_forward.54} parent=0 // pred_fallthru
    _
  // Predicated region
  $region6: #{robust_encoder_forward.54} parent=0 // pred_check
    _
  $region7: #{robust_encoder_forward.54} parent=0 // pred_check_branch
    %11 = sbr.rel (0) target = $region9
  $region8: #{robust_encoder_forward.54} parent=0 // pred_region
    _
  $region9: #{robust_encoder_forward.54} parent=0 // pred_fallthru
    _
  // Predicated region
  $region10: #{robust_encoder_forward.54} parent=0 // pred_check
    _
  $region11: #{robust_encoder_forward.54} parent=0 // pred_check_branch
    %13 = sbr.rel (0) target = $region13
  $region12: #{robust_encoder_forward.54} parent=0 // pred_region
    _
  $region13: #{robust_encoder_forward.54} parent=0 // pred_fallthru
    _
  %v15 = vld [vmem:[%s0] sm:$0xff]
  %v16 = vld [vmem:[%s0 + $0x8] sm:$0xf]
  %v17 = vld [vmem:[%s1] sm:$0xf]
  %v18 = vld [vmem:[%s1 + $0x4] sm:$0xf]
  %v19 = vld [vmem:[%s1 + $0x8] sm:$0xf]
  %v20 = vld [vmem:[%s1 + $0xc] sm:$0xf]
  %v21 = vld [vmem:[%s1 + $0x10] sm:$0xf]
  %v22 = vld [vmem:[%s1 + $0x14] sm:$0xf]
  %v23 = vld [vmem:[%s1 + $0x18] sm:$0xf]
  %v24 = vld [vmem:[%s1 + $0x1c] sm:$0xf]
  %v25 = vld [vmem:[%s1 + $0x20] sm:$0xf]
  %v26 = vld [vmem:[%s1 + $0x24] sm:$0xf]
  %v27 = vld [vmem:[%s1 + $0x28] sm:$0xf]
  %v28 = vld [vmem:[%s1 + $0x2c] sm:$0xf]
  %v29 = vld [vmem:[%s1 + $0x30] sm:$0xf]
  %v30 = vld [vmem:[%s1 + $0x34] sm:$0xf]
  %v31 = vld [vmem:[%s1 + $0x38] sm:$0xf]
  %v32 = vld [vmem:[%s1 + $0x3c] sm:$0xf]
  %v33 = vld [vmem:[%s1 + $0x40] sm:$0xf]
  %v34 = vld [vmem:[%s1 + $0x44] sm:$0xf]
  %v35 = vld [vmem:[%s1 + $0x48] sm:$0xf]
  %v36 = vld [vmem:[%s1 + $0x4c] sm:$0xf]
  %v37 = vld [vmem:[%s1 + $0x50] sm:$0xf]
  %v38 = vld [vmem:[%s1 + $0x54] sm:$0xf]
  %v39 = vld [vmem:[%s1 + $0x58] sm:$0xf]
  %v40 = vld [vmem:[%s1 + $0x5c] sm:$0xf]
  %v41 = vld [vmem:[%s1 + $0x60] sm:$0xf]
  %v42 = vld [vmem:[%s1 + $0x64] sm:$0xf]
  %v43 = vld [vmem:[%s1 + $0x68] sm:$0xf]
  %v44 = vld [vmem:[%s1 + $0x6c] sm:$0xf]
  %v45 = vld [vmem:[%s1 + $0x70] sm:$0xf]
  %v46 = vld [vmem:[%s1 + $0x74] sm:$0xf]
  %v47 = vld [vmem:[%s1 + $0x78] sm:$0xf]
  %v48 = vld [vmem:[%s1 + $0x7c] sm:$0xf]
  %v49 = vld [vmem:[%s1 + $0x80] sm:$0xf]
  %v50 = vld [vmem:[%s1 + $0x84] sm:$0xf]
  %v51 = vld [vmem:[%s1 + $0x88] sm:$0xf]
  %v52 = vld [vmem:[%s1 + $0x8c] sm:$0xf]
  %v53 = vld [vmem:[%s2] sm:$0x1]
  %v55 = vlaneseq
  %v56 = vshrl.u32 %v55, 7
  %v57 = vsub.s32 0, %v56
  %v58 = vrot.slane %v53, %v57
  %v62 = vunpack.c.l.b16 %v15
  %v63 = vunpack.c.h.b16 %v15
  %v64 = vunpack.c.l.b16 %v16
  %v65 = vpack.c.b16 %v62, %v62
  %v66 = vpack.c.b16 %v63, %v63
  %v67 = vpack.c.b16 %v64, %v64
  %v106 = vunpack.c.l.b16 %v17
  %v107 = vunpack.c.l.b16 %v18
  %v108 = vunpack.c.l.b16 %v19
  %v109 = vunpack.c.l.b16 %v20
  %v110 = vunpack.c.l.b16 %v21
  %v111 = vunpack.c.l.b16 %v22
  %v112 = vunpack.c.l.b16 %v23
  %v113 = vunpack.c.l.b16 %v24
  %v114 = vunpack.c.l.b16 %v25
  %v115 = vunpack.c.l.b16 %v26
  %v116 = vunpack.c.l.b16 %v27
  %v117 = vunpack.c.l.b16 %v28
  %v118 = vunpack.c.l.b16 %v29
  %v119 = vunpack.c.l.b16 %v30
  %v120 = vunpack.c.l.b16 %v31
  %v121 = vunpack.c.l.b16 %v32
  %v122 = vunpack.c.l.b16 %v33
  %v123 = vunpack.c.l.b16 %v34
  %v124 = vunpack.c.l.b16 %v35
  %v125 = vunpack.c.l.b16 %v36
  %v126 = vunpack.c.l.b16 %v37
  %v127 = vunpack.c.l.b16 %v38
  %v128 = vunpack.c.l.b16 %v39
  %v129 = vunpack.c.l.b16 %v40
  %v130 = vunpack.c.l.b16 %v41
  %v131 = vunpack.c.l.b16 %v42
  %v132 = vunpack.c.l.b16 %v43
  %v133 = vunpack.c.l.b16 %v44
  %v134 = vunpack.c.l.b16 %v45
  %v135 = vunpack.c.l.b16 %v46
  %v136 = vunpack.c.l.b16 %v47
  %v137 = vunpack.c.l.b16 %v48
  %v138 = vunpack.c.l.b16 %v49
  %v139 = vunpack.c.l.b16 %v50
  %v140 = vunpack.c.l.b16 %v51
  %v141 = vunpack.c.l.b16 %v52
  %v142 = vpack.c.b16 %v107, %v106
  %v143 = vpack.c.b16 %v109, %v108
  %v144 = vpack.c.b16 %v111, %v110
  %v145 = vpack.c.b16 %v113, %v112
  %v146 = vpack.c.b16 %v115, %v114
  %v147 = vpack.c.b16 %v117, %v116
  %v148 = vpack.c.b16 %v119, %v118
  %v149 = vpack.c.b16 %v121, %v120
  %v150 = vpack.c.b16 %v123, %v122
  %v151 = vpack.c.b16 %v125, %v124
  %v152 = vpack.c.b16 %v127, %v126
  %v153 = vpack.c.b16 %v129, %v128
  %v154 = vpack.c.b16 %v131, %v130
  %v155 = vpack.c.b16 %v133, %v132
  %v156 = vpack.c.b16 %v135, %v134
  %v157 = vpack.c.b16 %v137, %v136
  %v158 = vpack.c.b16 %v139, %v138
  %v159 = vpack.c.b16 %v141, %v140
  %vm178 = vcmask 261120
  %v180 = vsel %vm178, %v67, 0
  %182 = vmatprep.subr.bf16.mxu0 0
  %183 = vmatpush1.bf16.msra.mxu0 %v142
  %184 = vmatprep.subr.bf16.mxu0 0
  %185 = vmatpush1.bf16.msra.mxu0 %v143
  %186 = vmatprep.subr.bf16.mxu0 0
  %187 = vmatpush1.bf16.msra.mxu0 %v144
  %188 = vmatprep.subr.bf16.mxu0 0
  %189 = vmatpush1.bf16.msra.mxu0 %v145
  %190 = vmatprep.subr.bf16.mxu0 0
  %191 = vmatpush1.bf16.msra.mxu0 %v146
  %192 = vmatprep.subr.bf16.mxu0 0
  %193 = vmatpush1.bf16.msra.mxu0 %v147
  %194 = vmatprep.subr.bf16.mxu0 0
  %195 = vmatpush1.bf16.msra.mxu0 %v148
  %196 = vmatprep.subr.bf16.mxu0 0
  %197 = vmatpush1.bf16.msra.mxu0 %v149
  %198 = vmatprep.subr.bf16.mxu0 0
  %199 = vmatpush1.bf16.msra.mxu0 %v150
  %200 = vmatprep.subr.bf16.mxu0 0
  %201 = vmatpush1.bf16.msra.mxu0 %v151
  %202 = vmatprep.subr.bf16.mxu0 0
  %203 = vmatpush1.bf16.msra.mxu0 %v152
  %204 = vmatprep.subr.bf16.mxu0 0
  %205 = vmatpush1.bf16.msra.mxu0 %v153
  %206 = vmatprep.subr.bf16.mxu0 0
  %207 = vmatpush1.bf16.msra.mxu0 %v154
  %208 = vmatprep.subr.bf16.mxu0 0
  %209 = vmatpush1.bf16.msra.mxu0 %v155
  %210 = vmatprep.subr.bf16.mxu0 0
  %211 = vmatpush1.bf16.msra.mxu0 %v156
  %212 = vmatprep.subr.bf16.mxu0 0
  %213 = vmatpush1.bf16.msra.mxu0 %v157
  %214 = vmatprep.mubr.bf16.mxu0 %v66
  %215 = vmatmul.mubr.bf16.gmra.mrb[0].mxu0 %v65
  %v216 = vpop.f32.mrb[0].mxu0
  %v217 = vadd.f32 %v58, %v216
  %v218 = vpop.f32.mrb[0].mxu0
  %v219 = vpop.f32.mrb[0].mxu0
  %v220 = vpop.f32.mrb[0].mxu0
  %221 = vdwg.mxu0
  %222 = vmatprep.subr.bf16.mxu0 0
  %223 = vmatpush1.bf16.msra.mxu0 %v158
  %224 = vmatprep.subr.bf16.mxu0 0
  %225 = vmatpush1.bf16.msra.mxu0 %v159
  %226 = vmatprep.subr.bf16.mxu0 0
  %227 = vmatpush1.bf16.msra.mxu0 0
  %228 = vmatprep.subr.bf16.mxu0 0
  %229 = vmatpush1.bf16.msra.mxu0 0
  %230 = vmatprep.subr.bf16.mxu0 0
  %231 = vmatpush1.bf16.msra.mxu0 0
  %232 = vmatprep.subr.bf16.mxu0 0
  %233 = vmatpush1.bf16.msra.mxu0 0
  %234 = vmatprep.subr.bf16.mxu0 0
  %235 = vmatpush1.bf16.msra.mxu0 0
  %236 = vmatprep.subr.bf16.mxu0 0
  %237 = vmatpush1.bf16.msra.mxu0 0
  %238 = vmatprep.subr.bf16.mxu0 0
  %239 = vmatpush1.bf16.msra.mxu0 0
  %240 = vmatprep.subr.bf16.mxu0 0
  %241 = vmatpush1.bf16.msra.mxu0 0
  %242 = vmatprep.subr.bf16.mxu0 0
  %243 = vmatpush1.bf16.msra.mxu0 0
  %244 = vmatprep.subr.bf16.mxu0 0
  %245 = vmatpush1.bf16.msra.mxu0 0
  %246 = vmatprep.subr.bf16.mxu0 0
  %247 = vmatpush1.bf16.msra.mxu0 0
  %248 = vmatprep.subr.bf16.mxu0 0
  %249 = vmatpush1.bf16.msra.mxu0 0
  %250 = vmatprep.subr.bf16.mxu0 0
  %251 = vmatpush1.bf16.msra.mxu0 0
  %252 = vmatprep.subr.bf16.mxu0 0
  %253 = vmatpush1.bf16.msra.mxu0 0
  %254 = vmatprep.mubr.bf16.mxu0 0
  %255 = vmatmul.mubr.bf16.gmra.mrb[0].mxu0 %v180
  %v256 = vpop.f32.mrb[0].mxu0
  %v257 = vadd.f32 %v217, %v256
  %v258 = vpop.f32.mrb[0].mxu0
  %v259 = vpop.f32.mrb[0].mxu0
  %v260 = vpop.f32.mrb[0].mxu0
  %261 = vdwg.mxu0
  %v262 = vmax.f32 %v257, 0.0
  %263 = vst.msk [vmem:[%s3] sm:$0xff] %vm178, %v262
  // Predicated region
  $region14: #{robust_encoder_forward.54} parent=0 // pred_check
    _
  $region15: #{robust_encoder_forward.54} parent=0 // pred_check_branch
    %265 = sbr.rel (0) target = $region17
  $region16: #{robust_encoder_forward.54} parent=0 // pred_region
    _
  $region17: #{robust_encoder_forward.54} parent=0 // pred_fallthru
    _
  // Predicated region
  $region18: #{robust_encoder_forward.54} parent=0 // pred_check
    _
  $region19: #{robust_encoder_forward.54} parent=0 // pred_check_branch
    %267 = sbr.rel (0) target = $region21
  $region20: #{robust_encoder_forward.54} parent=0 // pred_region
    _
  $region21: #{robust_encoder_forward.54} parent=0 // pred_fallthru
    _

// kernel: robust_encoder_forward.55
$region0: #{robust_encoder_forward.55}
  #allocation0 [shape = 'u32[]', space=smem, size = 0x4, offset = 0x4, fixed_abs, tag = 'smem constant byte address 0x4 - core index']
  #allocation1 [shape = 'u32[144,128]{1,0:T(1,128)}', space=vmem, size = 0x12000, scoped, tag = 'internal scratch']
  %s0 = inlined_call_operand.vmem [shape: bf16[8,288], index: 0, kind: input, shape index: {}]
  %s1 = inlined_call_operand.vmem [shape: bf16[288,32], index: 1, kind: input, shape index: {}]
  %s2 = inlined_call_operand.vmem [shape: f32[1,32], index: 2, kind: input, shape index: {}]
  %s3 = inlined_call_operand.vmem [shape: f32[8,32], index: 3, kind: output, shape index: {}]
  %s4 = sld [smem:[#allocation0]]
  $region22: #{robust_encoder_forward.55} parent=0
    _
  %s6 = ssub.s32 1, %s4
  %s7 = scalar_select 0, %s6, %s4
  // Predicated region
  $region2: #{robust_encoder_forward.55} parent=0 // pred_check
    _
  $region3: #{robust_encoder_forward.55} parent=0 // pred_check_branch
    %9 = sbr.rel (0) target = $region5
  $region4: #{robust_encoder_forward.55} parent=0 // pred_region
    _
  $region5: #{robust_encoder_forward.55} parent=0 // pred_fallthru
    _
  // Predicated region
  $region6: #{robust_encoder_forward.55} parent=0 // pred_check
    _
  $region7: #{robust_encoder_forward.55} parent=0 // pred_check_branch
    %11 = sbr.rel (0) target = $region9
  $region8: #{robust_encoder_forward.55} parent=0 // pred_region
    _
  $region9: #{robust_encoder_forward.55} parent=0 // pred_fallthru
    _
  // Predicated region
  $region10: #{robust_encoder_forward.55} parent=0 // pred_check
    _
  $region11: #{robust_encoder_forward.55} parent=0 // pred_check_branch
    %13 = sbr.rel (0) target = $region13
  $region12: #{robust_encoder_forward.55} parent=0 // pred_region
    _
  $region13: #{robust_encoder_forward.55} parent=0 // pred_fallthru
    _
  %v15 = vld [vmem:[%s0] sm:$0xff]
  %v16 = vld [vmem:[%s0 + $0x8] sm:$0xf]
  %v17 = vld [vmem:[%s1] sm:$0xf]
  %v18 = vld [vmem:[%s1 + $0x4] sm:$0xf]
  %v19 = vld [vmem:[%s1 + $0x8] sm:$0xf]
  %v20 = vld [vmem:[%s1 + $0xc] sm:$0xf]
  %v21 = vld [vmem:[%s1 + $0x10] sm:$0xf]
  %v22 = vld [vmem:[%s1 + $0x14] sm:$0xf]
  %v23 = vld [vmem:[%s1 + $0x18] sm:$0xf]
  %v24 = vld [vmem:[%s1 + $0x1c] sm:$0xf]
  %v25 = vld [vmem:[%s1 + $0x20] sm:$0xf]
  %v26 = vld [vmem:[%s1 + $0x24] sm:$0xf]
  %v27 = vld [vmem:[%s1 + $0x28] sm:$0xf]
  %v28 = vld [vmem:[%s1 + $0x2c] sm:$0xf]
  %v29 = vld [vmem:[%s1 + $0x30] sm:$0xf]
  %v30 = vld [vmem:[%s1 + $0x34] sm:$0xf]
  %v31 = vld [vmem:[%s1 + $0x38] sm:$0xf]
  %v32 = vld [vmem:[%s1 + $0x3c] sm:$0xf]
  %v33 = vld [vmem:[%s1 + $0x40] sm:$0xf]
  %v34 = vld [vmem:[%s1 + $0x44] sm:$0xf]
  %v35 = vld [vmem:[%s1 + $0x48] sm:$0xf]
  %v36 = vld [vmem:[%s1 + $0x4c] sm:$0xf]
  %v37 = vld [vmem:[%s1 + $0x50] sm:$0xf]
  %v38 = vld [vmem:[%s1 + $0x54] sm:$0xf]
  %v39 = vld [vmem:[%s1 + $0x58] sm:$0xf]
  %v40 = vld [vmem:[%s1 + $0x5c] sm:$0xf]
  %v41 = vld [vmem:[%s1 + $0x60] sm:$0xf]
  %v42 = vld [vmem:[%s1 + $0x64] sm:$0xf]
  %v43 = vld [vmem:[%s1 + $0x68] sm:$0xf]
  %v44 = vld [vmem:[%s1 + $0x6c] sm:$0xf]
  %v45 = vld [vmem:[%s1 + $0x70] sm:$0xf]
  %v46 = vld [vmem:[%s1 + $0x74] sm:$0xf]
  %v47 = vld [vmem:[%s1 + $0x78] sm:$0xf]
  %v48 = vld [vmem:[%s1 + $0x7c] sm:$0xf]
  %v49 = vld [vmem:[%s1 + $0x80] sm:$0xf]
  %v50 = vld [vmem:[%s1 + $0x84] sm:$0xf]
  %v51 = vld [vmem:[%s1 + $0x88] sm:$0xf]
  %v52 = vld [vmem:[%s1 + $0x8c] sm:$0xf]
  %v53 = vld [vmem:[%s2] sm:$0x1]
  %v55 = vlaneseq
  %v56 = vshrl.u32 %v55, 7
  %v57 = vsub.s32 0, %v56
  %v58 = vrot.slane %v53, %v57
  %v62 = vunpack.c.l.b16 %v15
  %v63 = vunpack.c.h.b16 %v15
  %v64 = vunpack.c.l.b16 %v16
  %v65 = vpack.c.b16 %v62, %v62
  %v66 = vpack.c.b16 %v63, %v63
  %v67 = vpack.c.b16 %v64, %v64
  %v106 = vunpack.c.l.b16 %v17
  %v107 = vunpack.c.l.b16 %v18
  %v108 = vunpack.c.l.b16 %v19
  %v109 = vunpack.c.l.b16 %v20
  %v110 = vunpack.c.l.b16 %v21
  %v111 = vunpack.c.l.b16 %v22
  %v112 = vunpack.c.l.b16 %v23
  %v113 = vunpack.c.l.b16 %v24
  %v114 = vunpack.c.l.b16 %v25
  %v115 = vunpack.c.l.b16 %v26
  %v116 = vunpack.c.l.b16 %v27
  %v117 = vunpack.c.l.b16 %v28
  %v118 = vunpack.c.l.b16 %v29
  %v119 = vunpack.c.l.b16 %v30
  %v120 = vunpack.c.l.b16 %v31
  %v121 = vunpack.c.l.b16 %v32
  %v122 = vunpack.c.l.b16 %v33
  %v123 = vunpack.c.l.b16 %v34
  %v124 = vunpack.c.l.b16 %v35
  %v125 = vunpack.c.l.b16 %v36
  %v126 = vunpack.c.l.b16 %v37
  %v127 = vunpack.c.l.b16 %v38
  %v128 = vunpack.c.l.b16 %v39
  %v129 = vunpack.c.l.b16 %v40
  %v130 = vunpack.c.l.b16 %v41
  %v131 = vunpack.c.l.b16 %v42
  %v132 = vunpack.c.l.b16 %v43
  %v133 = vunpack.c.l.b16 %v44
  %v134 = vunpack.c.l.b16 %v45
  %v135 = vunpack.c.l.b16 %v46
  %v136 = vunpack.c.l.b16 %v47
  %v137 = vunpack.c.l.b16 %v48
  %v138 = vunpack.c.l.b16 %v49
  %v139 = vunpack.c.l.b16 %v50
  %v140 = vunpack.c.l.b16 %v51
  %v141 = vunpack.c.l.b16 %v52
  %v142 = vpack.c.b16 %v107, %v106
  %v143 = vpack.c.b16 %v109, %v108
  %v144 = vpack.c.b16 %v111, %v110
  %v145 = vpack.c.b16 %v113, %v112
  %v146 = vpack.c.b16 %v115, %v114
  %v147 = vpack.c.b16 %v117, %v116
  %v148 = vpack.c.b16 %v119, %v118
  %v149 = vpack.c.b16 %v121, %v120
  %v150 = vpack.c.b16 %v123, %v122
  %v151 = vpack.c.b16 %v125, %v124
  %v152 = vpack.c.b16 %v127, %v126
  %v153 = vpack.c.b16 %v129, %v128
  %v154 = vpack.c.b16 %v131, %v130
  %v155 = vpack.c.b16 %v133, %v132
  %v156 = vpack.c.b16 %v135, %v134
  %v157 = vpack.c.b16 %v137, %v136
  %v158 = vpack.c.b16 %v139, %v138
  %v159 = vpack.c.b16 %v141, %v140
  %vm178 = vcmask 261120
  %v180 = vsel %vm178, %v67, 0
  %182 = vmatprep.subr.bf16.mxu0 0
  %183 = vmatpush1.bf16.msra.mxu0 %v142
  %184 = vmatprep.subr.bf16.mxu0 0
  %185 = vmatpush1.bf16.msra.mxu0 %v143
  %186 = vmatprep.subr.bf16.mxu0 0
  %187 = vmatpush1.bf16.msra.mxu0 %v144
  %188 = vmatprep.subr.bf16.mxu0 0
  %189 = vmatpush1.bf16.msra.mxu0 %v145
  %190 = vmatprep.subr.bf16.mxu0 0
  %191 = vmatpush1.bf16.msra.mxu0 %v146
  %192 = vmatprep.subr.bf16.mxu0 0
  %193 = vmatpush1.bf16.msra.mxu0 %v147
  %194 = vmatprep.subr.bf16.mxu0 0
  %195 = vmatpush1.bf16.msra.mxu0 %v148
  %196 = vmatprep.subr.bf16.mxu0 0
  %197 = vmatpush1.bf16.msra.mxu0 %v149
  %198 = vmatprep.subr.bf16.mxu0 0
  %199 = vmatpush1.bf16.msra.mxu0 %v150
  %200 = vmatprep.subr.bf16.mxu0 0
  %201 = vmatpush1.bf16.msra.mxu0 %v151
  %202 = vmatprep.subr.bf16.mxu0 0
  %203 = vmatpush1.bf16.msra.mxu0 %v152
  %204 = vmatprep.subr.bf16.mxu0 0
  %205 = vmatpush1.bf16.msra.mxu0 %v153
  %206 = vmatprep.subr.bf16.mxu0 0
  %207 = vmatpush1.bf16.msra.mxu0 %v154
  %208 = vmatprep.subr.bf16.mxu0 0
  %209 = vmatpush1.bf16.msra.mxu0 %v155
  %210 = vmatprep.subr.bf16.mxu0 0
  %211 = vmatpush1.bf16.msra.mxu0 %v156
  %212 = vmatprep.subr.bf16.mxu0 0
  %213 = vmatpush1.bf16.msra.mxu0 %v157
  %214 = vmatprep.mubr.bf16.mxu0 %v66
  %215 = vmatmul.mubr.bf16.gmra.mrb[0].mxu0 %v65
  %v216 = vpop.f32.mrb[0].mxu0
  %v217 = vadd.f32 %v58, %v216
  %v218 = vpop.f32.mrb[0].mxu0
  %v219 = vpop.f32.mrb[0].mxu0
  %v220 = vpop.f32.mrb[0].mxu0
  %221 = vdwg.mxu0
  %222 = vmatprep.subr.bf16.mxu0 0
  %223 = vmatpush1.bf16.msra.mxu0 %v158
  %224 = vmatprep.subr.bf16.mxu0 0
  %225 = vmatpush1.bf16.msra.mxu0 %v159
  %226 = vmatprep.subr.bf16.mxu0 0
  %227 = vmatpush1.bf16.msra.mxu0 0
  %228 = vmatprep.subr.bf16.mxu0 0
  %229 = vmatpush1.bf16.msra.mxu0 0
  %230 = vmatprep.subr.bf16.mxu0 0
  %231 = vmatpush1.bf16.msra.mxu0 0
  %232 = vmatprep.subr.bf16.mxu0 0
  %233 = vmatpush1.bf16.msra.mxu0 0
  %234 = vmatprep.subr.bf16.mxu0 0
  %235 = vmatpush1.bf16.msra.mxu0 0
  %236 = vmatprep.subr.bf16.mxu0 0
  %237 = vmatpush1.bf16.msra.mxu0 0
  %238 = vmatprep.subr.bf16.mxu0 0
  %239 = vmatpush1.bf16.msra.mxu0 0
  %240 = vmatprep.subr.bf16.mxu0 0
  %241 = vmatpush1.bf16.msra.mxu0 0
  %242 = vmatprep.subr.bf16.mxu0 0
  %243 = vmatpush1.bf16.msra.mxu0 0
  %244 = vmatprep.subr.bf16.mxu0 0
  %245 = vmatpush1.bf16.msra.mxu0 0
  %246 = vmatprep.subr.bf16.mxu0 0
  %247 = vmatpush1.bf16.msra.mxu0 0
  %248 = vmatprep.subr.bf16.mxu0 0
  %249 = vmatpush1.bf16.msra.mxu0 0
  %250 = vmatprep.subr.bf16.mxu0 0
  %251 = vmatpush1.bf16.msra.mxu0 0
  %252 = vmatprep.subr.bf16.mxu0 0
  %253 = vmatpush1.bf16.msra.mxu0 0
  %254 = vmatprep.mubr.bf16.mxu0 0
  %255 = vmatmul.mubr.bf16.gmra.mrb[0].mxu0 %v180
  %v256 = vpop.f32.mrb[0].mxu0
  %v257 = vadd.f32 %v217, %v256
  %v258 = vpop.f32.mrb[0].mxu0
  %v259 = vpop.f32.mrb[0].mxu0
  %v260 = vpop.f32.mrb[0].mxu0
  %261 = vdwg.mxu0
  %262 = vst.msk [vmem:[%s3] sm:$0xff] %vm178, %v257
  // Predicated region
  $region14: #{robust_encoder_forward.55} parent=0 // pred_check
    _
  $region15: #{robust_encoder_forward.55} parent=0 // pred_check_branch
    %264 = sbr.rel (0) target = $region17
  $region16: #{robust_encoder_forward.55} parent=0 // pred_region
    _
  $region17: #{robust_encoder_forward.55} parent=0 // pred_fallthru
    _
  // Predicated region
  $region18: #{robust_encoder_forward.55} parent=0 // pred_check
    _
  $region19: #{robust_encoder_forward.55} parent=0 // pred_check_branch
    %266 = sbr.rel (0) target = $region21
  $region20: #{robust_encoder_forward.55} parent=0 // pred_region
    _
  $region21: #{robust_encoder_forward.55} parent=0 // pred_fallthru
    _

// kernel: robust_encoder_forward.67
$region0: #{robust_encoder_forward.67}
  #allocation0 [shape = 'u32[]', space=smem, size = 0x4, offset = 0x4, fixed_abs, tag = 'smem constant byte address 0x4 - core index']
  #allocation1 [shape = 'u32[144,128]{1,0:T(1,128)}', space=vmem, size = 0x12000, scoped, tag = 'internal scratch']
  %s0 = inlined_call_operand.vmem [shape: bf16[8,98], index: 0, kind: input, shape index: {}]
  %s1 = inlined_call_operand.vmem [shape: f32[1,98], index: 1, kind: input, shape index: {}]
  %s2 = inlined_call_operand.vmem [shape: f32[8,32], index: 2, kind: input, shape index: {}]
  %s3 = inlined_call_operand.vmem [shape: f32[8,32], index: 3, kind: output, shape index: {}]
  %s4 = sld [smem:[#allocation0]]
  $region22: #{robust_encoder_forward.67} parent=0
    _
  %s6 = ssub.s32 1, %s4
  %s7 = scalar_select 0, %s6, %s4
  // Predicated region
  $region2: #{robust_encoder_forward.67} parent=0 // pred_check
    _
  $region3: #{robust_encoder_forward.67} parent=0 // pred_check_branch
    %9 = sbr.rel (0) target = $region5
  $region4: #{robust_encoder_forward.67} parent=0 // pred_region
    _
  $region5: #{robust_encoder_forward.67} parent=0 // pred_fallthru
    _
  // Predicated region
  $region6: #{robust_encoder_forward.67} parent=0 // pred_check
    _
  $region7: #{robust_encoder_forward.67} parent=0 // pred_check_branch
    %11 = sbr.rel (0) target = $region9
  $region8: #{robust_encoder_forward.67} parent=0 // pred_region
    _
  $region9: #{robust_encoder_forward.67} parent=0 // pred_fallthru
    _
  // Predicated region
  $region10: #{robust_encoder_forward.67} parent=0 // pred_check
    _
  $region11: #{robust_encoder_forward.67} parent=0 // pred_check_branch
    %13 = sbr.rel (0) target = $region13
  $region12: #{robust_encoder_forward.67} parent=0 // pred_region
    _
  $region13: #{robust_encoder_forward.67} parent=0 // pred_fallthru
    _
  %v14 = vld [vmem:[%s0] sm:$0xf]
  %v15 = vunpack.c.l.bf16 %v14
  %v16 = vld [vmem:[%s1] sm:$0x1]
  %v18 = vlaneseq
  %v19 = vshrl.u32 %v18, 7
  %v20 = vsub.s32 0, %v19
  %v21 = vrot.slane %v16, %v20
  %v23 = vmul.f32 %v15, %v21
  %vm24 = vcmask 801792
  %v25 = vsel %vm24, %v23, 0.0
  %26 = vadd.xlane.f32.xlu0 %v25
  %v27 = vpop.xlane.xlu0 %26
  %v28 = vxor.u32 %v27, 2147483648
  %v29 = vmul.f32 %v28, 1.442695
  %v30 = vpow.pop %v29
  %v31 = vadd.f32 %v30, 1.0
  %v32 = vrcp.pop %v31
  %v33 = vmul.f32 1.0, %v32
  %v34 = vld [vmem:[%s2] sm:$0xff]
  %v35 = vmul.f32 %v34, %v33
  %vm36 = vcmask 261120
  %37 = vst.msk [vmem:[%s3] sm:$0xff] %vm36, %v35
  // Predicated region
  $region14: #{robust_encoder_forward.67} parent=0 // pred_check
    _
  $region15: #{robust_encoder_forward.67} parent=0 // pred_check_branch
    %39 = sbr.rel (0) target = $region17
  $region16: #{robust_encoder_forward.67} parent=0 // pred_region
    _
  $region17: #{robust_encoder_forward.67} parent=0 // pred_fallthru
    _
  // Predicated region
  $region18: #{robust_encoder_forward.67} parent=0 // pred_check
    _
  $region19: #{robust_encoder_forward.67} parent=0 // pred_check_branch
    %41 = sbr.rel (0) target = $region21
  $region20: #{robust_encoder_forward.67} parent=0 // pred_region
    _
  $region21: #{robust_encoder_forward.67} parent=0 // pred_fallthru
    _

// kernel: robust_encoder_forward.53
$region0: #{robust_encoder_forward.53}
  #allocation0 [shape = 'u32[]', space=smem, size = 0x4, offset = 0x4, fixed_abs, tag = 'smem constant byte address 0x4 - core index']
  #allocation1 [shape = 'u32[144,128]{1,0:T(1,128)}', space=vmem, size = 0x12000, scoped, tag = 'internal scratch']
  %s0 = inlined_call_operand.vmem [shape: bf16[8,32], index: 0, kind: input, shape index: {}]
  %s1 = inlined_call_operand.vmem [shape: bf16[32,32], index: 1, kind: input, shape index: {}]
  %s2 = inlined_call_operand.vmem [shape: f32[1,32], index: 2, kind: input, shape index: {}]
  %s3 = inlined_call_operand.vmem [shape: f32[8,32], index: 3, kind: output, shape index: {}]
  %s4 = sld [smem:[#allocation0]]
  $region22: #{robust_encoder_forward.53} parent=0
    _
  %s6 = ssub.s32 1, %s4
  %s7 = scalar_select 0, %s6, %s4
  // Predicated region
  $region2: #{robust_encoder_forward.53} parent=0 // pred_check
    _
  $region3: #{robust_encoder_forward.53} parent=0 // pred_check_branch
    %9 = sbr.rel (0) target = $region5
  $region4: #{robust_encoder_forward.53} parent=0 // pred_region
    _
  $region5: #{robust_encoder_forward.53} parent=0 // pred_fallthru
    _
  // Predicated region
  $region6: #{robust_encoder_forward.53} parent=0 // pred_check
    _
  $region7: #{robust_encoder_forward.53} parent=0 // pred_check_branch
    %11 = sbr.rel (0) target = $region9
  $region8: #{robust_encoder_forward.53} parent=0 // pred_region
    _
  $region9: #{robust_encoder_forward.53} parent=0 // pred_fallthru
    _
  // Predicated region
  $region10: #{robust_encoder_forward.53} parent=0 // pred_check
    _
  $region11: #{robust_encoder_forward.53} parent=0 // pred_check_branch
    %13 = sbr.rel (0) target = $region13
  $region12: #{robust_encoder_forward.53} parent=0 // pred_region
    _
  $region13: #{robust_encoder_forward.53} parent=0 // pred_fallthru
    _
  %v15 = vld [vmem:[%s0] sm:$0xf]
  %v16 = vld [vmem:[%s1] sm:$0xf]
  %v17 = vld [vmem:[%s1 + $0x4] sm:$0xf]
  %v18 = vld [vmem:[%s1 + $0x8] sm:$0xf]
  %v19 = vld [vmem:[%s1 + $0xc] sm:$0xf]
  %v20 = vld [vmem:[%s2] sm:$0x1]
  %v22 = vlaneseq
  %v23 = vshrl.u32 %v22, 7
  %v24 = vsub.s32 0, %v23
  %v25 = vrot.slane %v20, %v24
  %v31 = vunpack.c.l.b16 %v16
  %v32 = vunpack.c.l.b16 %v17
  %v33 = vunpack.c.l.b16 %v18
  %v34 = vunpack.c.l.b16 %v19
  %v35 = vpack.c.b16 %v32, %v31
  %v36 = vpack.c.b16 %v34, %v33
  %vm39 = vcmask 261120
  %v41 = vsel %vm39, %v15, 0
  %43 = vmatprep.subr.bf16.mxu0 0
  %44 = vmatpush1.bf16.msra.mxu0 %v35
  %45 = vmatprep.subr.bf16.mxu0 0
  %46 = vmatpush1.bf16.msra.mxu0 %v36
  %47 = vmatprep.subr.bf16.mxu0 0
  %48 = vmatpush1.bf16.msra.mxu0 0
  %49 = vmatprep.subr.bf16.mxu0 0
  %50 = vmatpush1.bf16.msra.mxu0 0
  %51 = vmatprep.subr.bf16.mxu0 0
  %52 = vmatpush1.bf16.msra.mxu0 0
  %53 = vmatprep.subr.bf16.mxu0 0
  %54 = vmatpush1.bf16.msra.mxu0 0
  %55 = vmatprep.subr.bf16.mxu0 0
  %56 = vmatpush1.bf16.msra.mxu0 0
  %57 = vmatprep.subr.bf16.mxu0 0
  %58 = vmatpush1.bf16.msra.mxu0 0
  %59 = vmatprep.subr.bf16.mxu0 0
  %60 = vmatpush1.bf16.msra.mxu0 0
  %61 = vmatprep.subr.bf16.mxu0 0
  %62 = vmatpush1.bf16.msra.mxu0 0
  %63 = vmatprep.subr.bf16.mxu0 0
  %64 = vmatpush1.bf16.msra.mxu0 0
  %65 = vmatprep.subr.bf16.mxu0 0
  %66 = vmatpush1.bf16.msra.mxu0 0
  %67 = vmatprep.subr.bf16.mxu0 0
  %68 = vmatpush1.bf16.msra.mxu0 0
  %69 = vmatprep.subr.bf16.mxu0 0
  %70 = vmatpush1.bf16.msra.mxu0 0
  %71 = vmatprep.subr.bf16.mxu0 0
  %72 = vmatpush1.bf16.msra.mxu0 0
  %73 = vmatprep.subr.bf16.mxu0 0
  %74 = vmatpush1.bf16.msra.mxu0 0
  %75 = vmatprep.mubr.bf16.mxu0 0
  %76 = vmatmul.mubr.bf16.gmra.mrb[0].mxu0 %v41
  %v77 = vpop.f32.mrb[0].mxu0
  %v78 = vadd.f32 %v25, %v77
  %v79 = vpop.f32.mrb[0].mxu0
  %v80 = vpop.f32.mrb[0].mxu0
  %v81 = vpop.f32.mrb[0].mxu0
  %82 = vdwg.mxu0
  %83 = vst.msk [vmem:[%s3] sm:$0xff] %vm39, %v78
  // Predicated region
  $region14: #{robust_encoder_forward.53} parent=0 // pred_check
    _
  $region15: #{robust_encoder_forward.53} parent=0 // pred_check_branch
    %85 = sbr.rel (0) target = $region17
  $region16: #{robust_encoder_forward.53} parent=0 // pred_region
    _
  $region17: #{robust_encoder_forward.53} parent=0 // pred_fallthru
    _
  // Predicated region
  $region18: #{robust_encoder_forward.53} parent=0 // pred_check
    _
  $region19: #{robust_encoder_forward.53} parent=0 // pred_check_branch
    %87 = sbr.rel (0) target = $region21
  $region20: #{robust_encoder_forward.53} parent=0 // pred_region
    _
  $region21: #{robust_encoder_forward.53} parent=0 // pred_fallthru
    _

// kernel: robust_encoder_forward.56
$region0: #{robust_encoder_forward.56}
  #allocation0 [shape = 'u32[]', space=smem, size = 0x4, offset = 0x4, fixed_abs, tag = 'smem constant byte address 0x4 - core index']
  #allocation1 [shape = 'u32[144,128]{1,0:T(1,128)}', space=vmem, size = 0x12000, scoped, tag = 'internal scratch']
  %s0 = inlined_call_operand.vmem [shape: bf16[8,98], index: 0, kind: input, shape index: {}]
  %s1 = inlined_call_operand.vmem [shape: f32[1,98], index: 1, kind: input, shape index: {}]
  %s2 = inlined_call_operand.vmem [shape: f32[8,32], index: 2, kind: input, shape index: {}]
  %s3 = inlined_call_operand.vmem [shape: f32[8,32], index: 3, kind: input, shape index: {}]
  %s4 = inlined_call_operand.vmem [shape: f32[8,32], index: 4, kind: output, shape index: {}]
  %s5 = sld [smem:[#allocation0]]
  $region26: #{robust_encoder_forward.56} parent=0
    _
  %s7 = ssub.s32 1, %s5
  %s8 = scalar_select 0, %s7, %s5
  // Predicated region
  $region2: #{robust_encoder_forward.56} parent=0 // pred_check
    _
  $region3: #{robust_encoder_forward.56} parent=0 // pred_check_branch
    %10 = sbr.rel (0) target = $region5
  $region4: #{robust_encoder_forward.56} parent=0 // pred_region
    _
  $region5: #{robust_encoder_forward.56} parent=0 // pred_fallthru
    _
  // Predicated region
  $region6: #{robust_encoder_forward.56} parent=0 // pred_check
    _
  $region7: #{robust_encoder_forward.56} parent=0 // pred_check_branch
    %12 = sbr.rel (0) target = $region9
  $region8: #{robust_encoder_forward.56} parent=0 // pred_region
    _
  $region9: #{robust_encoder_forward.56} parent=0 // pred_fallthru
    _
  // Predicated region
  $region10: #{robust_encoder_forward.56} parent=0 // pred_check
    _
  $region11: #{robust_encoder_forward.56} parent=0 // pred_check_branch
    %14 = sbr.rel (0) target = $region13
  $region12: #{robust_encoder_forward.56} parent=0 // pred_region
    _
  $region13: #{robust_encoder_forward.56} parent=0 // pred_fallthru
    _
  // Predicated region
  $region14: #{robust_encoder_forward.56} parent=0 // pred_check
    _
  $region15: #{robust_encoder_forward.56} parent=0 // pred_check_branch
    %16 = sbr.rel (0) target = $region17
  $region16: #{robust_encoder_forward.56} parent=0 // pred_region
    _
  $region17: #{robust_encoder_forward.56} parent=0 // pred_fallthru
    _
  %v17 = vld [vmem:[%s0] sm:$0xf]
  %v18 = vunpack.c.l.bf16 %v17
  %v19 = vld [vmem:[%s1] sm:$0x1]
  %v21 = vlaneseq
  %v22 = vshrl.u32 %v21, 7
  %v23 = vsub.s32 0, %v22
  %v24 = vrot.slane %v19, %v23
  %v26 = vmul.f32 %v18, %v24
  %vm27 = vcmask 801792
  %v28 = vsel %vm27, %v26, 0.0
  %29 = vadd.xlane.f32.xlu0 %v28
  %v30 = vpop.xlane.xlu0 %29
  %v31 = vxor.u32 %v30, 2147483648
  %v32 = vmul.f32 %v31, 1.442695
  %v33 = vpow.pop %v32
  %v34 = vadd.f32 %v33, 1.0
  %v35 = vrcp.pop %v34
  %v36 = vmul.f32 1.0, %v35
  %v37 = vld [vmem:[%s2] sm:$0xff]
  %v38 = vmul.f32 %v37, %v36
  %v39 = vld [vmem:[%s3] sm:$0xff]
  %v40 = vadd.f32 %v38, %v39
  %v41 = vmax.f32 %v40, 0.0
  %vm42 = vcmask 261120
  %43 = vst.msk [vmem:[%s4] sm:$0xff] %vm42, %v41
  // Predicated region
  $region18: #{robust_encoder_forward.56} parent=0 // pred_check
    _
  $region19: #{robust_encoder_forward.56} parent=0 // pred_check_branch
    %45 = sbr.rel (0) target = $region21
  $region20: #{robust_encoder_forward.56} parent=0 // pred_region
    _
  $region21: #{robust_encoder_forward.56} parent=0 // pred_fallthru
    _
  // Predicated region
  $region22: #{robust_encoder_forward.56} parent=0 // pred_check
    _
  $region23: #{robust_encoder_forward.56} parent=0 // pred_check_branch
    %47 = sbr.rel (0) target = $region25
  $region24: #{robust_encoder_forward.56} parent=0 // pred_region
    _
  $region25: #{robust_encoder_forward.56} parent=0 // pred_fallthru
    _

// kernel: robust_encoder_forward.68
$region0: #{robust_encoder_forward.68}
  #allocation0 [shape = 'u32[]', space=smem, size = 0x4, offset = 0x4, fixed_abs, tag = 'smem constant byte address 0x4 - core index']
  #allocation1 [shape = 'u32[144,128]{1,0:T(1,128)}', space=vmem, size = 0x12000, scoped, tag = 'internal scratch']
  %s0 = inlined_call_operand.vmem [shape: bf16[8,288], index: 0, kind: input, shape index: {}]
  %s1 = inlined_call_operand.vmem [shape: bf16[288,64], index: 1, kind: input, shape index: {}]
  %s2 = inlined_call_operand.vmem [shape: f32[1,64], index: 2, kind: input, shape index: {}]
  %s3 = inlined_call_operand.vmem [shape: f32[8,64], index: 3, kind: output, shape index: {}]
  %s4 = sld [smem:[#allocation0]]
  $region22: #{robust_encoder_forward.68} parent=0
    _
  %s6 = ssub.s32 1, %s4
  %s7 = scalar_select 0, %s6, %s4
  // Predicated region
  $region2: #{robust_encoder_forward.68} parent=0 // pred_check
    _
  $region3: #{robust_encoder_forward.68} parent=0 // pred_check_branch
    %9 = sbr.rel (0) target = $region5
  $region4: #{robust_encoder_forward.68} parent=0 // pred_region
    _
  $region5: #{robust_encoder_forward.68} parent=0 // pred_fallthru
    _
  // Predicated region
  $region6: #{robust_encoder_forward.68} parent=0 // pred_check
    _
  $region7: #{robust_encoder_forward.68} parent=0 // pred_check_branch
    %11 = sbr.rel (0) target = $region9
  $region8: #{robust_encoder_forward.68} parent=0 // pred_region
    _
  $region9: #{robust_encoder_forward.68} parent=0 // pred_fallthru
    _
  // Predicated region
  $region10: #{robust_encoder_forward.68} parent=0 // pred_check
    _
  $region11: #{robust_encoder_forward.68} parent=0 // pred_check_branch
    %13 = sbr.rel (0) target = $region13
  $region12: #{robust_encoder_forward.68} parent=0 // pred_region
    _
  $region13: #{robust_encoder_forward.68} parent=0 // pred_fallthru
    _
  %v15 = vld [vmem:[%s0] sm:$0xff]
  %v16 = vld [vmem:[%s0 + $0x8] sm:$0xf]
  %v17 = vld [vmem:[%s1] sm:$0xf]
  %v18 = vld [vmem:[%s1 + $0x4] sm:$0xf]
  %v19 = vld [vmem:[%s1 + $0x8] sm:$0xf]
  %v20 = vld [vmem:[%s1 + $0xc] sm:$0xf]
  %v21 = vld [vmem:[%s1 + $0x10] sm:$0xf]
  %v22 = vld [vmem:[%s1 + $0x14] sm:$0xf]
  %v23 = vld [vmem:[%s1 + $0x18] sm:$0xf]
  %v24 = vld [vmem:[%s1 + $0x1c] sm:$0xf]
  %v25 = vld [vmem:[%s1 + $0x20] sm:$0xf]
  %v26 = vld [vmem:[%s1 + $0x24] sm:$0xf]
  %v27 = vld [vmem:[%s1 + $0x28] sm:$0xf]
  %v28 = vld [vmem:[%s1 + $0x2c] sm:$0xf]
  %v29 = vld [vmem:[%s1 + $0x30] sm:$0xf]
  %v30 = vld [vmem:[%s1 + $0x34] sm:$0xf]
  %v31 = vld [vmem:[%s1 + $0x38] sm:$0xf]
  %v32 = vld [vmem:[%s1 + $0x3c] sm:$0xf]
  %v33 = vld [vmem:[%s1 + $0x40] sm:$0xf]
  %v34 = vld [vmem:[%s1 + $0x44] sm:$0xf]
  %v35 = vld [vmem:[%s1 + $0x48] sm:$0xf]
  %v36 = vld [vmem:[%s1 + $0x4c] sm:$0xf]
  %v37 = vld [vmem:[%s1 + $0x50] sm:$0xf]
  %v38 = vld [vmem:[%s1 + $0x54] sm:$0xf]
  %v39 = vld [vmem:[%s1 + $0x58] sm:$0xf]
  %v40 = vld [vmem:[%s1 + $0x5c] sm:$0xf]
  %v41 = vld [vmem:[%s1 + $0x60] sm:$0xf]
  %v42 = vld [vmem:[%s1 + $0x64] sm:$0xf]
  %v43 = vld [vmem:[%s1 + $0x68] sm:$0xf]
  %v44 = vld [vmem:[%s1 + $0x6c] sm:$0xf]
  %v45 = vld [vmem:[%s1 + $0x70] sm:$0xf]
  %v46 = vld [vmem:[%s1 + $0x74] sm:$0xf]
  %v47 = vld [vmem:[%s1 + $0x78] sm:$0xf]
  %v48 = vld [vmem:[%s1 + $0x7c] sm:$0xf]
  %v49 = vld [vmem:[%s1 + $0x80] sm:$0xf]
  %v50 = vld [vmem:[%s1 + $0x84] sm:$0xf]
  %v51 = vld [vmem:[%s1 + $0x88] sm:$0xf]
  %v52 = vld [vmem:[%s1 + $0x8c] sm:$0xf]
  %v53 = vld [vmem:[%s2] sm:$0x1]
  %v55 = vlaneseq
  %v56 = vshrl.u32 %v55, 7
  %v57 = vsub.s32 0, %v56
  %v58 = vrot.slane %v53, %v57
  %v62 = vunpack.c.l.b16 %v15
  %v63 = vunpack.c.h.b16 %v15
  %v64 = vunpack.c.l.b16 %v16
  %v65 = vpack.c.b16 %v62, %v62
  %v66 = vpack.c.b16 %v63, %v63
  %v67 = vpack.c.b16 %v64, %v64
  %v106 = vunpack.c.l.b16 %v17
  %v107 = vunpack.c.l.b16 %v18
  %v108 = vunpack.c.l.b16 %v19
  %v109 = vunpack.c.l.b16 %v20
  %v110 = vunpack.c.l.b16 %v21
  %v111 = vunpack.c.l.b16 %v22
  %v112 = vunpack.c.l.b16 %v23
  %v113 = vunpack.c.l.b16 %v24
  %v114 = vunpack.c.l.b16 %v25
  %v115 = vunpack.c.l.b16 %v26
  %v116 = vunpack.c.l.b16 %v27
  %v117 = vunpack.c.l.b16 %v28
  %v118 = vunpack.c.l.b16 %v29
  %v119 = vunpack.c.l.b16 %v30
  %v120 = vunpack.c.l.b16 %v31
  %v121 = vunpack.c.l.b16 %v32
  %v122 = vunpack.c.l.b16 %v33
  %v123 = vunpack.c.l.b16 %v34
  %v124 = vunpack.c.l.b16 %v35
  %v125 = vunpack.c.l.b16 %v36
  %v126 = vunpack.c.l.b16 %v37
  %v127 = vunpack.c.l.b16 %v38
  %v128 = vunpack.c.l.b16 %v39
  %v129 = vunpack.c.l.b16 %v40
  %v130 = vunpack.c.l.b16 %v41
  %v131 = vunpack.c.l.b16 %v42
  %v132 = vunpack.c.l.b16 %v43
  %v133 = vunpack.c.l.b16 %v44
  %v134 = vunpack.c.l.b16 %v45
  %v135 = vunpack.c.l.b16 %v46
  %v136 = vunpack.c.l.b16 %v47
  %v137 = vunpack.c.l.b16 %v48
  %v138 = vunpack.c.l.b16 %v49
  %v139 = vunpack.c.l.b16 %v50
  %v140 = vunpack.c.l.b16 %v51
  %v141 = vunpack.c.l.b16 %v52
  %v142 = vpack.c.b16 %v107, %v106
  %v143 = vpack.c.b16 %v109, %v108
  %v144 = vpack.c.b16 %v111, %v110
  %v145 = vpack.c.b16 %v113, %v112
  %v146 = vpack.c.b16 %v115, %v114
  %v147 = vpack.c.b16 %v117, %v116
  %v148 = vpack.c.b16 %v119, %v118
  %v149 = vpack.c.b16 %v121, %v120
  %v150 = vpack.c.b16 %v123, %v122
  %v151 = vpack.c.b16 %v125, %v124
  %v152 = vpack.c.b16 %v127, %v126
  %v153 = vpack.c.b16 %v129, %v128
  %v154 = vpack.c.b16 %v131, %v130
  %v155 = vpack.c.b16 %v133, %v132
  %v156 = vpack.c.b16 %v135, %v134
  %v157 = vpack.c.b16 %v137, %v136
  %v158 = vpack.c.b16 %v139, %v138
  %v159 = vpack.c.b16 %v141, %v140
  %vm178 = vcmask 261120
  %v180 = vsel %vm178, %v67, 0
  %182 = vmatprep.subr.bf16.mxu0 0
  %183 = vmatpush1.bf16.msra.mxu0 %v142
  %184 = vmatprep.subr.bf16.mxu0 0
  %185 = vmatpush1.bf16.msra.mxu0 %v143
  %186 = vmatprep.subr.bf16.mxu0 0
  %187 = vmatpush1.bf16.msra.mxu0 %v144
  %188 = vmatprep.subr.bf16.mxu0 0
  %189 = vmatpush1.bf16.msra.mxu0 %v145
  %190 = vmatprep.subr.bf16.mxu0 0
  %191 = vmatpush1.bf16.msra.mxu0 %v146
  %192 = vmatprep.subr.bf16.mxu0 0
  %193 = vmatpush1.bf16.msra.mxu0 %v147
  %194 = vmatprep.subr.bf16.mxu0 0
  %195 = vmatpush1.bf16.msra.mxu0 %v148
  %196 = vmatprep.subr.bf16.mxu0 0
  %197 = vmatpush1.bf16.msra.mxu0 %v149
  %198 = vmatprep.subr.bf16.mxu0 0
  %199 = vmatpush1.bf16.msra.mxu0 %v150
  %200 = vmatprep.subr.bf16.mxu0 0
  %201 = vmatpush1.bf16.msra.mxu0 %v151
  %202 = vmatprep.subr.bf16.mxu0 0
  %203 = vmatpush1.bf16.msra.mxu0 %v152
  %204 = vmatprep.subr.bf16.mxu0 0
  %205 = vmatpush1.bf16.msra.mxu0 %v153
  %206 = vmatprep.subr.bf16.mxu0 0
  %207 = vmatpush1.bf16.msra.mxu0 %v154
  %208 = vmatprep.subr.bf16.mxu0 0
  %209 = vmatpush1.bf16.msra.mxu0 %v155
  %210 = vmatprep.subr.bf16.mxu0 0
  %211 = vmatpush1.bf16.msra.mxu0 %v156
  %212 = vmatprep.subr.bf16.mxu0 0
  %213 = vmatpush1.bf16.msra.mxu0 %v157
  %214 = vmatprep.mubr.bf16.mxu0 %v66
  %215 = vmatmul.mubr.bf16.gmra.mrb[0].mxu0 %v65
  %v216 = vpop.f32.mrb[0].mxu0
  %v217 = vadd.f32 %v58, %v216
  %v218 = vpop.f32.mrb[0].mxu0
  %v219 = vpop.f32.mrb[0].mxu0
  %v220 = vpop.f32.mrb[0].mxu0
  %221 = vdwg.mxu0
  %222 = vmatprep.subr.bf16.mxu0 0
  %223 = vmatpush1.bf16.msra.mxu0 %v158
  %224 = vmatprep.subr.bf16.mxu0 0
  %225 = vmatpush1.bf16.msra.mxu0 %v159
  %226 = vmatprep.subr.bf16.mxu0 0
  %227 = vmatpush1.bf16.msra.mxu0 0
  %228 = vmatprep.subr.bf16.mxu0 0
  %229 = vmatpush1.bf16.msra.mxu0 0
  %230 = vmatprep.subr.bf16.mxu0 0
  %231 = vmatpush1.bf16.msra.mxu0 0
  %232 = vmatprep.subr.bf16.mxu0 0
  %233 = vmatpush1.bf16.msra.mxu0 0
  %234 = vmatprep.subr.bf16.mxu0 0
  %235 = vmatpush1.bf16.msra.mxu0 0
  %236 = vmatprep.subr.bf16.mxu0 0
  %237 = vmatpush1.bf16.msra.mxu0 0
  %238 = vmatprep.subr.bf16.mxu0 0
  %239 = vmatpush1.bf16.msra.mxu0 0
  %240 = vmatprep.subr.bf16.mxu0 0
  %241 = vmatpush1.bf16.msra.mxu0 0
  %242 = vmatprep.subr.bf16.mxu0 0
  %243 = vmatpush1.bf16.msra.mxu0 0
  %244 = vmatprep.subr.bf16.mxu0 0
  %245 = vmatpush1.bf16.msra.mxu0 0
  %246 = vmatprep.subr.bf16.mxu0 0
  %247 = vmatpush1.bf16.msra.mxu0 0
  %248 = vmatprep.subr.bf16.mxu0 0
  %249 = vmatpush1.bf16.msra.mxu0 0
  %250 = vmatprep.subr.bf16.mxu0 0
  %251 = vmatpush1.bf16.msra.mxu0 0
  %252 = vmatprep.subr.bf16.mxu0 0
  %253 = vmatpush1.bf16.msra.mxu0 0
  %254 = vmatprep.mubr.bf16.mxu0 0
  %255 = vmatmul.mubr.bf16.gmra.mrb[0].mxu0 %v180
  %v256 = vpop.f32.mrb[0].mxu0
  %v257 = vadd.f32 %v217, %v256
  %v258 = vpop.f32.mrb[0].mxu0
  %v259 = vpop.f32.mrb[0].mxu0
  %v260 = vpop.f32.mrb[0].mxu0
  %261 = vdwg.mxu0
  %v262 = vmax.f32 %v257, 0.0
  %vm263 = vcmask 523264
  %264 = vst.msk [vmem:[%s3] sm:$0xff] %vm263, %v262
  // Predicated region
  $region14: #{robust_encoder_forward.68} parent=0 // pred_check
    _
  $region15: #{robust_encoder_forward.68} parent=0 // pred_check_branch
    %266 = sbr.rel (0) target = $region17
  $region16: #{robust_encoder_forward.68} parent=0 // pred_region
    _
  $region17: #{robust_encoder_forward.68} parent=0 // pred_fallthru
    _
  // Predicated region
  $region18: #{robust_encoder_forward.68} parent=0 // pred_check
    _
  $region19: #{robust_encoder_forward.68} parent=0 // pred_check_branch
    %268 = sbr.rel (0) target = $region21
  $region20: #{robust_encoder_forward.68} parent=0 // pred_region
    _
  $region21: #{robust_encoder_forward.68} parent=0 // pred_fallthru
    _

// kernel: robust_encoder_forward.71
$region0: #{robust_encoder_forward.71}
  #allocation0 [shape = 'u32[]', space=smem, size = 0x4, offset = 0x4, fixed_abs, tag = 'smem constant byte address 0x4 - core index']
  #allocation1 [shape = 'u32[144,128]{1,0:T(1,128)}', space=vmem, size = 0x12000, scoped, tag = 'internal scratch']
  %s0 = inlined_call_operand.vmem [shape: bf16[512,36], index: 0, kind: input, shape index: {}]
  %s1 = inlined_call_operand.vmem [shape: bf16[36,4], index: 1, kind: input, shape index: {}]
  %s2 = inlined_call_operand.vmem [shape: f32[1,4], index: 2, kind: input, shape index: {}]
  %s3 = inlined_call_operand.vmem [shape: f32[512,4], index: 3, kind: input, shape index: {}]
  %s4 = inlined_call_operand.vmem [shape: f32[512,4], index: 4, kind: output, shape index: {}]
  %s5 = sld [smem:[#allocation0]]
  $region49: #{robust_encoder_forward.71} parent=0
    _
  %s7 = ssub.s32 1, %s5
  %s8 = scalar_select 0, %s7, %s5
  loop: start=0, step=1, limit=6
  $region2: #{robust_encoder_forward.71} parent=0 // loop_pre_header
    _
  $region3: #{robust_encoder_forward.71} parent=0 // loop_header
    %s10 = sphi 0, %s14
    %p11 = scmp.ge.s32.totalorder %s10, 6
    %s20 = sphi 0, %s22
    %s23 = sphi 0, %s20
    %s24 = sphi 0, %s23
    %s40 = sphi 0, %s24
    %s44 = sphi 0, %s44
    %s46 = sphi 0, %s44
    %s47 = sphi 0, %s46
    %s61 = sphi 0, %s47
    %s65 = sphi 0, %s65
    %s67 = sphi 0, %s65
    %s68 = sphi 0, %s67
    %s82 = sphi 0, %s68
    %s88 = sphi 0, %s90
    %s91 = sphi 0, %s88
    %s92 = sphi 0, %s91
    %s108 = sphi 0, %s92
    %s114 = sphi 0, %s116
    %s117 = sphi 0, %s114
    %s118 = sphi 0, %s117
    %s134 = sphi 0, %s118
  $region4: #{robust_encoder_forward.71} parent=0 // loop_header_branch
    %13 = sbr.rel (%p11) target = $region8
  $region5: #{robust_encoder_forward.71} parent=0 // loop_body
    %s15 = ssub.s32 %s10, 1
    %s16 = ssub.s32 %s10, 2
    %s17 = sadd.s32 %s10, 1
    %s18 = ssub.s32 %s10, %s17
    %p19 = scmp.eq.s32.totalorder %s18, 0
    %s21 = sadd.s32 %s20, 1
    %s22 = scalar_select %p19, %s20, %s21
    %p25 = pneg %p19
    %p26 = scmp.eq.s32.totalorder %s10, 3
    %p27 = por %p25, %p26
    %p28 = scmp.ne.s32.totalorder %s20, %s23
    %p29 = scmp.eq.s32.totalorder %s10, 0
    %p30 = por %p28, %p29
    %p31 = scmp.ne.s32.totalorder %s20, %s23
    %p32 = scmp.eq.s32.totalorder %s15, 3
    %p33 = por %p31, %p32
    %p34 = scmp.ne.s32.totalorder %s23, %s24
    %p35 = scmp.eq.s32.totalorder %s15, 0
    %p36 = por %p34, %p35
    %p37 = scmp.ne.s32.totalorder %s23, %s24
    %p38 = scmp.eq.s32.totalorder %s16, 3
    %p39 = por %p37, %p38
    %p41 = scmp.ne.s32.totalorder %s24, %s40
    %p42 = scmp.eq.s32.totalorder %s16, 0
    %p43 = por %p41, %p42
    %s45 = sadd.s32 %s44, 1
    %p48 = scmp.eq.s32.totalorder %s10, 3
    %p49 = scmp.ne.s32.totalorder %s44, %s46
    %p50 = scmp.eq.s32.totalorder %s10, 0
    %p51 = por %p49, %p50
    %p52 = scmp.ne.s32.totalorder %s44, %s46
    %p53 = scmp.eq.s32.totalorder %s15, 3
    %p54 = por %p52, %p53
    %p55 = scmp.ne.s32.totalorder %s46, %s47
    %p56 = scmp.eq.s32.totalorder %s15, 0
    %p57 = por %p55, %p56
    %p58 = scmp.ne.s32.totalorder %s46, %s47
    %p59 = scmp.eq.s32.totalorder %s16, 3
    %p60 = por %p58, %p59
    %p62 = scmp.ne.s32.totalorder %s47, %s61
    %p63 = scmp.eq.s32.totalorder %s16, 0
    %p64 = por %p62, %p63
    %s66 = sadd.s32 %s65, 1
    %p69 = scmp.eq.s32.totalorder %s10, 3
    %p70 = scmp.ne.s32.totalorder %s65, %s67
    %p71 = scmp.eq.s32.totalorder %s10, 0
    %p72 = por %p70, %p71
    %p73 = scmp.ne.s32.totalorder %s65, %s67
    %p74 = scmp.eq.s32.totalorder %s15, 3
    %p75 = por %p73, %p74
    %p76 = scmp.ne.s32.totalorder %s67, %s68
    %p77 = scmp.eq.s32.totalorder %s15, 0
    %p78 = por %p76, %p77
    %p79 = scmp.ne.s32.totalorder %s67, %s68
    %p80 = scmp.eq.s32.totalorder %s16, 3
    %p81 = por %p79, %p80
    %p83 = scmp.ne.s32.totalorder %s68, %s82
    %p84 = scmp.eq.s32.totalorder %s16, 0
    %p85 = por %p83, %p84
    %s86 = ssub.s32 %s10, %s17
    %p87 = scmp.eq.s32.totalorder %s86, 0
    %s89 = sadd.s32 %s88, 1
    %s90 = scalar_select %p87, %s88, %s89
    %p93 = pneg %p87
    %p94 = scmp.eq.s32.totalorder %s10, 3
    %p95 = por %p93, %p94
    %p96 = scmp.ne.s32.totalorder %s88, %s91
    %p97 = scmp.eq.s32.totalorder %s10, 0
    %p98 = por %p96, %p97
    %p99 = scmp.ne.s32.totalorder %s88, %s91
    %p100 = scmp.eq.s32.totalorder %s15, 3
    %p101 = por %p99, %p100
    %p102 = scmp.ne.s32.totalorder %s91, %s92
    %p103 = scmp.eq.s32.totalorder %s15, 0
    %p104 = por %p102, %p103
    %p105 = scmp.ne.s32.totalorder %s91, %s92
    %p106 = scmp.eq.s32.totalorder %s16, 3
    %p107 = por %p105, %p106
    %p109 = scmp.ne.s32.totalorder %s92, %s108
    %p110 = scmp.eq.s32.totalorder %s16, 0
    %p111 = por %p109, %p110
    %s112 = ssub.s32 %s10, %s17
    %p113 = scmp.eq.s32.totalorder %s112, 0
    %s115 = sadd.s32 %s114, 1
    %s116 = scalar_select %p113, %s114, %s115
    %p119 = pneg %p113
    %p120 = scmp.eq.s32.totalorder %s10, 3
    %p121 = por %p119, %p120
    %p122 = scmp.ne.s32.totalorder %s114, %s117
    %p123 = scmp.eq.s32.totalorder %s10, 0
    %p124 = por %p122, %p123
    %p125 = scmp.ne.s32.totalorder %s114, %s117
    %p126 = scmp.eq.s32.totalorder %s15, 3
    %p127 = por %p125, %p126
    %p128 = scmp.ne.s32.totalorder %s117, %s118
    %p129 = scmp.eq.s32.totalorder %s15, 0
    %p130 = por %p128, %p129
    %p131 = scmp.ne.s32.totalorder %s117, %s118
    %p132 = scmp.eq.s32.totalorder %s16, 3
    %p133 = por %p131, %p132
    %p135 = scmp.ne.s32.totalorder %s118, %s134
    %p136 = scmp.eq.s32.totalorder %s16, 0
    %p137 = por %p135, %p136
    %p138 = scmp.le.s32.totalorder 1, %s10
    %p139 = scmp.lt.s32.totalorder %s10, 5
    %p140 = pnand %p138, %p139
    %p141 = pneg %p140
    // Predicated region
    $region9: #{robust_encoder_forward.71} parent=5 // pred_check
      _
    $region10: #{robust_encoder_forward.71} parent=5 // pred_check_branch
      %143 = sbr.rel (%p140) target = $region12
    $region11: #{robust_encoder_forward.71} parent=5 // pred_region
      %s144 = ssub.s32 %s10, 1
      // Predicated region
      $region13: #{robust_encoder_forward.71} parent=11 // pred_check
        %p145 = pneg %p57
      $region14: #{robust_encoder_forward.71} parent=11 // pred_check_branch
        %147 = sbr.rel (%p145) target = $region16
      $region15: #{robust_encoder_forward.71} parent=11 // pred_region
        _
      $region16: #{robust_encoder_forward.71} parent=11 // pred_fallthru
        _
      // Predicated region
      $region17: #{robust_encoder_forward.71} parent=11 // pred_check
        %p148 = pneg %p78
      $region18: #{robust_encoder_forward.71} parent=11 // pred_check_branch
        %150 = sbr.rel (%p148) target = $region20
      $region19: #{robust_encoder_forward.71} parent=11 // pred_region
        _
      $region20: #{robust_encoder_forward.71} parent=11 // pred_fallthru
        _
    $region12: #{robust_encoder_forward.71} parent=5 // pred_fallthru
      _
    %p151 = scmp.lt.s32.totalorder %s10, 4
    // Predicated region
    $region21: #{robust_encoder_forward.71} parent=5 // pred_check
      %p152 = pneg %p151
    $region22: #{robust_encoder_forward.71} parent=5 // pred_check_branch
      %154 = sbr.rel (%p152) target = $region24
    $region23: #{robust_encoder_forward.71} parent=5 // pred_region
      // Predicated region
      $region25: #{robust_encoder_forward.71} parent=23 // pred_check
        %p155 = pneg %p30
      $region26: #{robust_encoder_forward.71} parent=23 // pred_check_branch
        %157 = sbr.rel (%p155) target = $region28
      $region27: #{robust_encoder_forward.71} parent=23 // pred_region
        %s158 = smul.u32 16, %s10
        %p159 = scmp.lt.s32.totalorder %s158, 63
        %s160 = scalar_select %p159, %s158, 63
        %s161 = smul.addr %s160, 4
        %s162 = scalar_lea.vmem %s0, %s161
        %s163 = smul.u32 16, %s10
      $region28: #{robust_encoder_forward.71} parent=23 // pred_fallthru
        _
      // Predicated region
      $region29: #{robust_encoder_forward.71} parent=23 // pred_check
        %p164 = pneg %p98
      $region30: #{robust_encoder_forward.71} parent=23 // pred_check_branch
        %166 = sbr.rel (%p164) target = $region32
      $region31: #{robust_encoder_forward.71} parent=23 // pred_region
        %s167 = smul.u32 16, %s10
        %p168 = scmp.lt.s32.totalorder %s167, 63
        %s169 = scalar_select %p168, %s167, 63
        %s170 = smul.addr %s169, 8
        %s171 = scalar_lea.vmem %s3, %s170
        %s172 = smul.u32 16, %s10
      $region32: #{robust_encoder_forward.71} parent=23 // pred_fallthru
        _
    $region24: #{robust_encoder_forward.71} parent=5 // pred_fallthru
      _
    %p173 = scmp.le.s32.totalorder 1, %s10
    %p174 = scmp.lt.s32.totalorder %s10, 5
    %p175 = pnand %p173, %p174
    %p176 = pneg %p175
    // Predicated region
    $region33: #{robust_encoder_forward.71} parent=5 // pred_check
      _
    $region34: #{robust_encoder_forward.71} parent=5 // pred_check_branch
      %178 = sbr.rel (%p175) target = $region36
    $region35: #{robust_encoder_forward.71} parent=5 // pred_region
      %s179 = ssub.s32 %s10, 1
      %s180 = smul.u32 16, %s15
      %p181 = scmp.lt.s32.totalorder %s180, 63
      %s182 = scalar_select %p181, %s180, 63
      %s183 = smul.addr %s182, 4
      %s184 = scalar_lea.vmem %s0, %s183
      %p185 = pneg %p36
      %p186 = pneg %p33
      %p187 = pneg %p57
      %p188 = pneg %p54
      %p189 = pneg %p78
      %p190 = pneg %p75
      %s191 = smul.u32 16, %s15
      %p192 = scmp.lt.s32.totalorder %s191, 63
      %s193 = scalar_select %p192, %s191, 63
      %s194 = smul.addr %s193, 8
      %s195 = scalar_lea.vmem %s3, %s194
      %p196 = pneg %p104
      %p197 = pneg %p101
      %p198 = pneg %p130
      %p199 = pneg %p127
      %s200 = smul.u32 16, %s15
      %p201 = scmp.lt.s32.totalorder %s200, 63
      %s202 = scalar_select %p201, %s200, 63
      %s203 = smul.addr %s202, 8
      %s204 = scalar_lea.vmem %s4, %s203
      %s205 = smul.u32 16, %s15
      %p206 = scmp.lt.s32.totalorder %s205, 63
      %s207 = scalar_select %p206, %s205, 63
      %s208 = smul.addr %s207, 4
      %s209 = scalar_lea.vmem %s0, %s208
      %s210 = smul.u32 16, %s15
      %s211 = smul.u32 16, %s15
      %p212 = scmp.lt.s32.totalorder %s211, 63
      %s213 = scalar_select %p212, %s211, 63
      %s214 = smul.addr %s213, 8
      %s215 = scalar_lea.vmem %s3, %s214
      %s216 = smul.u32 16, %s15
      %s217 = smul.u32 16, %s15
      %p218 = scmp.lt.s32.totalorder %s217, 63
      %s219 = scalar_select %p218, %s217, 63
      %s220 = smul.addr %s219, 8
      %s221 = scalar_lea.vmem %s4, %s220
      %s222 = smul.u32 16, %s15
      %v224 = vld [vmem:[%s209] sm:$0xf]
      %v225 = vld [vmem:[%s209 + $0x4] sm:$0xf]
      %v226 = vld [vmem:[%s209 + $0x8] sm:$0xf]
      %v227 = vld [vmem:[%s209 + $0xc] sm:$0xf]
      %v228 = vld [vmem:[%s209 + $0x10] sm:$0xf]
      %v229 = vld [vmem:[%s209 + $0x14] sm:$0xf]
      %v230 = vld [vmem:[%s209 + $0x18] sm:$0xf]
      %v231 = vld [vmem:[%s209 + $0x1c] sm:$0xf]
      %v232 = vld [vmem:[%s209 + $0x20] sm:$0xf]
      %v233 = vld [vmem:[%s209 + $0x24] sm:$0xf]
      %v234 = vld [vmem:[%s209 + $0x28] sm:$0xf]
      %v235 = vld [vmem:[%s209 + $0x2c] sm:$0xf]
      %v236 = vld [vmem:[%s209 + $0x30] sm:$0xf]
      %v237 = vld [vmem:[%s209 + $0x34] sm:$0xf]
      %v238 = vld [vmem:[%s209 + $0x38] sm:$0xf]
      %v239 = vld [vmem:[%s209 + $0x3c] sm:$0xf]
      %v240 = vld [vmem:[%s1] sm:$0xf]
      %v241 = vld [vmem:[%s1 + $0x4] sm:$0xf]
      %v242 = vld [vmem:[%s1 + $0x8] sm:$0xf]
      %v243 = vld [vmem:[%s1 + $0xc] sm:$0xf]
      %v244 = vld [vmem:[%s1 + $0x10] sm:$0x3]
      %v245 = vld [vmem:[%s2] sm:$0x1]
      %v247 = vlaneseq
      %v248 = vshrl.u32 %v247, 7
      %v249 = vsub.s32 0, %v248
      %v250 = vrot.slane %v245, %v249
      %v268 = vunpack.c.l.b16 %v224
      %v269 = vunpack.c.l.b16 %v225
      %v270 = vunpack.c.l.b16 %v226
      %v271 = vunpack.c.l.b16 %v227
      %v272 = vunpack.c.l.b16 %v228
      %v273 = vunpack.c.l.b16 %v229
      %v274 = vunpack.c.l.b16 %v230
      %v275 = vunpack.c.l.b16 %v231
      %v276 = vunpack.c.l.b16 %v232
      %v277 = vunpack.c.l.b16 %v233
      %v278 = vunpack.c.l.b16 %v234
      %v279 = vunpack.c.l.b16 %v235
      %v280 = vunpack.c.l.b16 %v236
      %v281 = vunpack.c.l.b16 %v237
      %v282 = vunpack.c.l.b16 %v238
      %v283 = vunpack.c.l.b16 %v239
      %v284 = vpack.c.b16 %v269, %v268
      %v285 = vpack.c.b16 %v271, %v270
      %v286 = vpack.c.b16 %v273, %v272
      %v287 = vpack.c.b16 %v275, %v274
      %v288 = vpack.c.b16 %v277, %v276
      %v289 = vpack.c.b16 %v279, %v278
      %v290 = vpack.c.b16 %v281, %v280
      %v291 = vpack.c.b16 %v283, %v282
      %v297 = vunpack.c.l.b16 %v240
      %v298 = vunpack.c.l.b16 %v241
      %v299 = vunpack.c.l.b16 %v242
      %v300 = vunpack.c.l.b16 %v243
      %v301 = vunpack.c.l.b16 %v244
      %v302 = vpack.c.b16 %v298, %v297
      %v303 = vpack.c.b16 %v300, %v299
      %v304 = vpack.c.b16 %v301, %v301
      %vm307 = vcmask 293888
      %v309 = vsel %vm307, %v284, 0
      %v312 = vsel %vm307, %v285, 0
      %v315 = vsel %vm307, %v286, 0
      %v318 = vsel %vm307, %v287, 0
      %v321 = vsel %vm307, %v288, 0
      %v324 = vsel %vm307, %v289, 0
      %v327 = vsel %vm307, %v290, 0
      %v330 = vsel %vm307, %v291, 0
      %vm332 = vcmask 1041408
      %v334 = vsel %vm332, %v304, 0
      %336 = vmatprep.subr.bf16.mxu0 0
      %337 = vmatpush1.bf16.msra.mxu0 %v302
      %338 = vmatprep.subr.bf16.mxu0 0
      %339 = vmatpush1.bf16.msra.mxu0 %v303
      %340 = vmatprep.subr.bf16.mxu0 0
      %341 = vmatpush1.bf16.msra.mxu0 %v334
      %342 = vmatprep.subr.bf16.mxu0 0
      %343 = vmatpush1.bf16.msra.mxu0 0
      %344 = vmatprep.subr.bf16.mxu0 0
      %345 = vmatpush1.bf16.msra.mxu0 0
      %346 = vmatprep.subr.bf16.mxu0 0
      %347 = vmatpush1.bf16.msra.mxu0 0
      %348 = vmatprep.subr.bf16.mxu0 0
      %349 = vmatpush1.bf16.msra.mxu0 0
      %350 = vmatprep.subr.bf16.mxu0 0
      %351 = vmatpush1.bf16.msra.mxu0 0
      %352 = vmatprep.subr.bf16.mxu0 0
      %353 = vmatpush1.bf16.msra.mxu0 0
      %354 = vmatprep.subr.bf16.mxu0 0
      %355 = vmatpush1.bf16.msra.mxu0 0
      %356 = vmatprep.subr.bf16.mxu0 0
      %357 = vmatpush1.bf16.msra.mxu0 0
      %358 = vmatprep.subr.bf16.mxu0 0
      %359 = vmatpush1.bf16.msra.mxu0 0
      %360 = vmatprep.subr.bf16.mxu0 0
      %361 = vmatpush1.bf16.msra.mxu0 0
      %362 = vmatprep.subr.bf16.mxu0 0
      %363 = vmatpush1.bf16.msra.mxu0 0
      %364 = vmatprep.subr.bf16.mxu0 0
      %365 = vmatpush1.bf16.msra.mxu0 0
      %366 = vmatprep.subr.bf16.mxu0 0
      %367 = vmatpush1.bf16.msra.mxu0 0
      %368 = vmatprep.mubr.bf16.mxu0 0
      %369 = vmatmul.mubr.bf16.gmra.mrb[0].mxu0 %v309
      %v370 = vpop.f32.mrb[0].mxu0
      %v371 = vadd.f32 %v250, %v370
      %v372 = vpop.f32.mrb[0].mxu0
      %v373 = vpop.f32.mrb[0].mxu0
      %v374 = vadd.f32 %v250, %v373
      %v375 = vpop.f32.mrb[0].mxu0
      %376 = vmatprep.mubr.bf16.mxu0 0
      %377 = vmatmul.mubr.bf16.gmra.mrb[0].mxu0 %v312
      %v378 = vpop.f32.mrb[0].mxu0
      %v379 = vadd.f32 %v250, %v378
      %v380 = vpop.f32.mrb[0].mxu0
      %v381 = vpop.f32.mrb[0].mxu0
      %v382 = vadd.f32 %v250, %v381
      %v383 = vpop.f32.mrb[0].mxu0
      %384 = vmatprep.mubr.bf16.mxu0 0
      %385 = vmatmul.mubr.bf16.gmra.mrb[0].mxu0 %v315
      %v386 = vpop.f32.mrb[0].mxu0
      %v387 = vadd.f32 %v250, %v386
      %v388 = vpop.f32.mrb[0].mxu0
      %v389 = vpop.f32.mrb[0].mxu0
      %v390 = vadd.f32 %v250, %v389
      %v391 = vpop.f32.mrb[0].mxu0
      %392 = vmatprep.mubr.bf16.mxu0 0
      %393 = vmatmul.mubr.bf16.gmra.mrb[0].mxu0 %v318
      %v394 = vpop.f32.mrb[0].mxu0
      %v395 = vadd.f32 %v250, %v394
      %v396 = vpop.f32.mrb[0].mxu0
      %v397 = vpop.f32.mrb[0].mxu0
      %v398 = vadd.f32 %v250, %v397
      %v399 = vpop.f32.mrb[0].mxu0
      %400 = vmatprep.mubr.bf16.mxu0 0
      %401 = vmatmul.mubr.bf16.gmra.mrb[0].mxu0 %v321
      %v402 = vpop.f32.mrb[0].mxu0
      %v403 = vadd.f32 %v250, %v402
      %v404 = vpop.f32.mrb[0].mxu0
      %v405 = vpop.f32.mrb[0].mxu0
      %v406 = vadd.f32 %v250, %v405
      %v407 = vpop.f32.mrb[0].mxu0
      %408 = vmatprep.mubr.bf16.mxu0 0
      %409 = vmatmul.mubr.bf16.gmra.mrb[0].mxu0 %v324
      %v410 = vpop.f32.mrb[0].mxu0
      %v411 = vadd.f32 %v250, %v410
      %v412 = vpop.f32.mrb[0].mxu0
      %v413 = vpop.f32.mrb[0].mxu0
      %v414 = vadd.f32 %v250, %v413
      %v415 = vpop.f32.mrb[0].mxu0
      %416 = vmatprep.mubr.bf16.mxu0 0
      %417 = vmatmul.mubr.bf16.gmra.mrb[0].mxu0 %v327
      %v418 = vpop.f32.mrb[0].mxu0
      %v419 = vadd.f32 %v250, %v418
      %v420 = vpop.f32.mrb[0].mxu0
      %v421 = vpop.f32.mrb[0].mxu0
      %v422 = vadd.f32 %v250, %v421
      %v423 = vpop.f32.mrb[0].mxu0
      %424 = vmatprep.mubr.bf16.mxu0 0
      %425 = vmatmul.mubr.bf16.gmra.mrb[0].mxu0 %v330
      %v426 = vpop.f32.mrb[0].mxu0
      %v427 = vadd.f32 %v250, %v426
      %v428 = vpop.f32.mrb[0].mxu0
      %v429 = vpop.f32.mrb[0].mxu0
      %v430 = vadd.f32 %v250, %v429
      %v431 = vpop.f32.mrb[0].mxu0
      %432 = vdwg.mxu0
      %v433 = vld [vmem:[%s215] sm:$0xff]
      %v434 = vld [vmem:[%s215 + $0x8] sm:$0xff]
      %v435 = vld [vmem:[%s215 + $0x10] sm:$0xff]
      %v436 = vld [vmem:[%s215 + $0x18] sm:$0xff]
      %v437 = vld [vmem:[%s215 + $0x20] sm:$0xff]
      %v438 = vld [vmem:[%s215 + $0x28] sm:$0xff]
      %v439 = vld [vmem:[%s215 + $0x30] sm:$0xff]
      %v440 = vld [vmem:[%s215 + $0x38] sm:$0xff]
      %v441 = vld [vmem:[%s215 + $0x40] sm:$0xff]
      %v442 = vld [vmem:[%s215 + $0x48] sm:$0xff]
      %v443 = vld [vmem:[%s215 + $0x50] sm:$0xff]
      %v444 = vld [vmem:[%s215 + $0x58] sm:$0xff]
      %v445 = vld [vmem:[%s215 + $0x60] sm:$0xff]
      %v446 = vld [vmem:[%s215 + $0x68] sm:$0xff]
      %v447 = vld [vmem:[%s215 + $0x70] sm:$0xff]
      %v448 = vld [vmem:[%s215 + $0x78] sm:$0xff]
      %v449 = vtanh.pop %v371
      %v450 = vtanh.pop %v374
      %v451 = vtanh.pop %v379
      %v452 = vtanh.pop %v382
      %v453 = vtanh.pop %v387
      %v454 = vtanh.pop %v390
      %v455 = vtanh.pop %v395
      %v456 = vtanh.pop %v398
      %v457 = vtanh.pop %v403
      %v458 = vtanh.pop %v406
      %v459 = vtanh.pop %v411
      %v460 = vtanh.pop %v414
      %v461 = vtanh.pop %v419
      %v462 = vtanh.pop %v422
      %v463 = vtanh.pop %v427
      %v464 = vtanh.pop %v430
      %v465 = vmul.f32 %v449, 0.1
      %v466 = vmul.f32 %v450, 0.1
      %v467 = vmul.f32 %v451, 0.1
      %v468 = vmul.f32 %v452, 0.1
      %v469 = vmul.f32 %v453, 0.1
      %v470 = vmul.f32 %v454, 0.1
      %v471 = vmul.f32 %v455, 0.1
      %v472 = vmul.f32 %v456, 0.1
      %v473 = vmul.f32 %v457, 0.1
      %v474 = vmul.f32 %v458, 0.1
      %v475 = vmul.f32 %v459, 0.1
      %v476 = vmul.f32 %v460, 0.1
      %v477 = vmul.f32 %v461, 0.1
      %v478 = vmul.f32 %v462, 0.1
      %v479 = vmul.f32 %v463, 0.1
      %v480 = vmul.f32 %v464, 0.1
      %v481 = vadd.f32 %v433, %v465
      %v482 = vadd.f32 %v434, %v466
      %v483 = vadd.f32 %v435, %v467
      %v484 = vadd.f32 %v436, %v468
      %v485 = vadd.f32 %v437, %v469
      %v486 = vadd.f32 %v438, %v470
      %v487 = vadd.f32 %v439, %v471
      %v488 = vadd.f32 %v440, %v472
      %v489 = vadd.f32 %v441, %v473
      %v490 = vadd.f32 %v442, %v474
      %v491 = vadd.f32 %v443, %v475
      %v492 = vadd.f32 %v444, %v476
      %v493 = vadd.f32 %v445, %v477
      %v494 = vadd.f32 %v446, %v478
      %v495 = vadd.f32 %v447, %v479
      %v496 = vadd.f32 %v448, %v480
      %vm497 = vcmask 31744
      %498 = vst.msk [vmem:[%s221] sm:$0xff] %vm497, %v481
      %499 = vst.msk [vmem:[%s221 + $0x8] sm:$0xff] %vm497, %v482
      %500 = vst.msk [vmem:[%s221 + $0x10] sm:$0xff] %vm497, %v483
      %501 = vst.msk [vmem:[%s221 + $0x18] sm:$0xff] %vm497, %v484
      %502 = vst.msk [vmem:[%s221 + $0x20] sm:$0xff] %vm497, %v485
      %503 = vst.msk [vmem:[%s221 + $0x28] sm:$0xff] %vm497, %v486
      %504 = vst.msk [vmem:[%s221 + $0x30] sm:$0xff] %vm497, %v487
      %505 = vst.msk [vmem:[%s221 + $0x38] sm:$0xff] %vm497, %v488
      %506 = vst.msk [vmem:[%s221 + $0x40] sm:$0xff] %vm497, %v489
      %507 = vst.msk [vmem:[%s221 + $0x48] sm:$0xff] %vm497, %v490
      %508 = vst.msk [vmem:[%s221 + $0x50] sm:$0xff] %vm497, %v491
      %509 = vst.msk [vmem:[%s221 + $0x58] sm:$0xff] %vm497, %v492
      %510 = vst.msk [vmem:[%s221 + $0x60] sm:$0xff] %vm497, %v493
      %511 = vst.msk [vmem:[%s221 + $0x68] sm:$0xff] %vm497, %v494
      %512 = vst.msk [vmem:[%s221 + $0x70] sm:$0xff] %vm497, %v495
      %513 = vst.msk [vmem:[%s221 + $0x78] sm:$0xff] %vm497, %v496
      %s514 = smul.u32 16, %s15
      %p515 = scmp.lt.s32.totalorder %s514, 63
      %s516 = scalar_select %p515, %s514, 63
      %s517 = smul.addr %s516, 8
      %s518 = scalar_lea.vmem %s4, %s517
      // Predicated region
      $region37: #{robust_encoder_forward.71} parent=35 // pred_check
        %p519 = pneg %p127
      $region38: #{robust_encoder_forward.71} parent=35 // pred_check_branch
        %521 = sbr.rel (%p519) target = $region40
      $region39: #{robust_encoder_forward.71} parent=35 // pred_region
        %s522 = smul.u32 16, %s15
      $region40: #{robust_encoder_forward.71} parent=35 // pred_fallthru
        _
    $region36: #{robust_encoder_forward.71} parent=5 // pred_fallthru
      _
    %p523 = scmp.le.s32.totalorder 2, %s10
    // Predicated region
    $region41: #{robust_encoder_forward.71} parent=5 // pred_check
      %p524 = pneg %p523
    $region42: #{robust_encoder_forward.71} parent=5 // pred_check_branch
      %526 = sbr.rel (%p524) target = $region44
    $region43: #{robust_encoder_forward.71} parent=5 // pred_region
      %s527 = ssub.s32 %s10, 2
      // Predicated region
      $region45: #{robust_encoder_forward.71} parent=43 // pred_check
        %p528 = pneg %p133
      $region46: #{robust_encoder_forward.71} parent=43 // pred_check_branch
        %530 = sbr.rel (%p528) target = $region48
      $region47: #{robust_encoder_forward.71} parent=43 // pred_region
        %s531 = smul.u32 16, %s16
        %p532 = scmp.lt.s32.totalorder %s531, 63
        %s533 = scalar_select %p532, %s531, 63
        %s534 = smul.addr %s533, 8
        %s535 = scalar_lea.vmem %s4, %s534
      $region48: #{robust_encoder_forward.71} parent=43 // pred_fallthru
        _
    $region44: #{robust_encoder_forward.71} parent=5 // pred_fallthru
      _
  $region6: #{robust_encoder_forward.71} parent=0 // loop_footer
    %s14 = sadd.s32 1, %s10
  $region7: #{robust_encoder_forward.71} parent=0 // loop_footer_branch
    %9 = sbr.rel target = $region3
  $region8: #{robust_encoder_forward.71} parent=0 // loop_exit
    _

</llo_original>
